<compile_context>
chip_gen: v5e
topology: v5e:2x2
jax: 0.10.0
libtpu: 0.0.40
codegen_flags: <defaults>
</compile_context>

<pallas_src>
import math
import numpy as np
import jax
import jax.numpy as jnp
from jax.experimental import pallas as pl
from jax.experimental.pallas import tpu as pltpu

LEAKY_SLOPE = 0.1
NORM_EPS = 1e-6
D_L = 512          # hidden size of the feedforward inside `block`
NEG_INF = -1e30


def _leaky(x):
    return jnp.where(x > 0, x, LEAKY_SLOPE * x)


def _norm(x, alpha, beta):
    # TODO(synk): `Norm` class body not included in the source; assumed the standard
    # transformer-tutorial Norm: alpha*(x-mean)/(std+eps)+beta with unbiased std, eps=1e-6.
    mean = jnp.mean(x, axis=-1, keepdims=True)
    var = jnp.sum((x - mean) ** 2, axis=-1, keepdims=True) / (x.shape[-1] - 1)
    return alpha * (x - mean) / (jnp.sqrt(var) + NORM_EPS) + beta


def _attention(q, k, v, d_k):
    scores = jax.lax.dot_general(q, k, (((1,), (1,)), ((), ())),
                                 preferred_element_type=jnp.float32) / math.sqrt(d_k)
    scores = scores - jnp.max(scores, axis=-1, keepdims=True)
    p = jnp.exp(scores)
    return jnp.dot(p / jnp.sum(p, axis=-1, keepdims=True), v,
                   preferred_element_type=jnp.float32)


def _substitute_group_kernel(
        vitem_ref, kitem_ref, kuser_ref, pref_ref, struct_ref,
        sv_ref, sk_ref, ek_ref, ev_ref, pv_ref, bqk_ref, bqq_ref,
        w1a_ref, b1a_ref, w1b_ref,
        w2a_ref, b2a_ref, w2b_ref,
        w3u_ref, w3p_ref, w3s_ref, b3a_ref, w3b_ref, b3b_ref, w3c_ref,
        nalpha_ref, nbeta_ref,
        wff1_ref, bff1_ref, wff2_ref, bff2_ref,
        wlin_ref, blin_ref,
        convw_ref, convb_ref,
        out_ref):
    f32 = jnp.float32
    n_v, c = vitem_ref.shape
    inv_sqrt_dk = 1.0 / math.sqrt(c)
    inv_nm1 = 1.0 / (c - 1)

    def mm(a, b):
        return jnp.dot(a, b, preferred_element_type=f32)

    # ---- user-invariant projections: computed exactly once per call ----
    vitem1 = mm(_leaky(mm(vitem_ref[...], w1a_ref[...]) + b1a_ref[...]), w1b_ref[...])
    kitem1 = mm(_leaky(mm(kitem_ref[...], w2a_ref[...]) + b2a_ref[...]), w2b_ref[...])
    key_shared = (mm(pref_ref[...], w3p_ref[...])
                  + mm(struct_ref[...], w3s_ref[...])
                  + b3a_ref[...])                               # (n_k, c)
    kuser_proj = mm(kuser_ref[...], w3u_ref[...])               # (n_u, c)  all users at once

    # ---- stack all users along the sublane (M) axis via tiny 0/1 matmuls ----
    sv = sv_ref[...]    # (n_u*n_v, n_v): replicate Vitem rows per user
    sk = sk_ref[...]    # (n_u*n_k, n_k): replicate Kitem / shared-key rows per user
    ek = ek_ref[...]    # (n_u*n_k, n_u): broadcast each user's row over its n_k keys

    # project3 as one stacked matmul chain over (n_u*n_k, c)
    key = _leaky(mm(sk, key_shared) + mm(ek, kuser_proj))
    key = _leaky(mm(key, w3b_ref[...]) + b3b_ref[...])
    key = mm(key, w3c_ref[...])                                 # (n_u*n_k, c)

    q = mm(sv, vitem1)                                          # (n_u*n_v, c)
    v0 = mm(sk, kitem1)                                         # (n_u*n_k, c)

    def norm(x, alpha, beta):
        mean = jnp.mean(x, axis=-1, keepdims=True)
        xm = x - mean
        var = jnp.sum(xm * xm, axis=-1, keepdims=True) * inv_nm1
        inv_std = pl.reciprocal(jnp.sqrt(var) + NORM_EPS, approx=True)   # EUP slot
        return alpha * (xm * inv_std) + beta

    def masked_attention(q2, k2, v2, bias):
        # scale q (40 x 32) once instead of scores (40 x 40)
        scores = jax.lax.dot_general(q2 * inv_sqrt_dk, k2, (((1,), (1,)), ((), ())),
                                     preferred_element_type=f32)
        scores = scores + bias                          # -1e30 off the user's block
        scores = scores - jnp.max(scores, axis=-1, keepdims=True)
        p = jnp.exp(scores)
        p = p * pl.reciprocal(jnp.sum(p, axis=-1, keepdims=True), approx=True)
        return mm(p, v2)

    def run_block(b, q, k, v, bias):
        a_all = nalpha_ref[b]                           # (2, c)
        be_all = nbeta_ref[b]
        a1, a2 = a_all[0:1, :], a_all[1:2, :]
        be1, be2 = be_all[0:1, :], be_all[1:2, :]
        # norm=True, dropout=False (eval mode): dropout layers are identity.
        q = q + masked_attention(norm(q, a1, be1), norm(k, a1, be1),
                                 norm(v, a1, be1), bias)
        q2 = norm(q, a2, be2)
        h = jnp.maximum(mm(q2, wff1_ref[b]) + bff1_ref[b], 0.0)  # (n_u*n_v, D_L), M=40
        return q + mm(h, wff2_ref[b]) + bff2_ref[b]

    ig = run_block(0, q, key, v0, bqk_ref[...])
    ig = run_block(1, ig, ig, ig, bqq_ref[...])
    ig = run_block(2, ig, ig, ig, bqq_ref[...])

    ig = jnp.maximum(ig, 0.0)
    ig = mm(ig, wlin_ref[...]) + blin_ref[...]                   # (n_u*n_v, n_sub)

    # ---- Conv2d(n_u, 1, 1, 1) fold: per-user scalar weight + bias.
    # col_w[r] = convw[r // n_v]; out[v,:] = sum_{r: r%n_v==v} col_w[r]*ig[r,:] + convb
    col_w = mm(ev_ref[...], convw_ref[...])                      # (n_u*n_v, 1)
    out_ref[...] = mm(pv_ref[...], ig * col_w) + convb_ref[...]  # (n_v, n_sub)


def substitute_group_forward(Vitem, Kitem, Kuser, Vscore, Kscore, II, params):
    del Vscore  # unused in the PyTorch forward as well
    preference = Kscore.T
    structure = II
    n_u = Kuser.shape[0]
    n_v = Vitem.shape[0]
    n_k = Kitem.shape[0]
    n_sub = params['wlin'].shape[1]

    # Tiny constant stacking matrices + additive block-diagonal attention masks
    # (pure layout plumbing, built host-side so the kernel only does matmuls).
    iv = np.arange(n_u * n_v)
    ik = np.arange(n_u * n_k)
    S_v = (iv[:, None] % n_v == np.arange(n_v)[None, :]).astype(np.float32)
    S_k = (ik[:, None] % n_k == np.arange(n_k)[None, :]).astype(np.float32)
    E_k = (ik[:, None] // n_k == np.arange(n_u)[None, :]).astype(np.float32)
    E_v = (iv[:, None] // n_v == np.arange(n_u)[None, :]).astype(np.float32)
    P_v = np.ascontiguousarray(S_v.T)   # (n_v, n_u*n_v): sums corresponding rows per user
    bias_qk = np.where(iv[:, None] // n_v == ik[None, :] // n_k, 0.0, NEG_INF).astype(np.float32)
    bias_qq = np.where(iv[:, None] // n_v == iv[None, :] // n_v, 0.0, NEG_INF).astype(np.float32)

    order = ['w1a', 'b1a', 'w1b', 'w2a', 'b2a', 'w2b',
             'w3u', 'w3p', 'w3s', 'b3a', 'w3b', 'b3b', 'w3c',
             'nalpha', 'nbeta', 'wff1', 'bff1', 'wff2', 'bff2',
             'wlin', 'blin', 'convw', 'convb']
    args = [Vitem, Kitem, Kuser, preference, structure,
            jnp.asarray(S_v), jnp.asarray(S_k), jnp.asarray(E_k),
            jnp.asarray(E_v), jnp.asarray(P_v),
            jnp.asarray(bias_qk), jnp.asarray(bias_qq)] + [params[k] for k in order]

    in_specs = [pl.BlockSpec(a.shape, lambda i, nd=a.ndim: (0,) * nd) for a in args]
    out_spec = pl.BlockSpec((n_v, n_sub), lambda i: (0, 0))

    out_vk = pl.pallas_call(
        _substitute_group_kernel,
        out_shape=jax.ShapeDtypeStruct((n_v, n_sub), jnp.float32),
        grid_spec=pltpu.PrefetchScalarGridSpec(
            num_scalar_prefetch=0,
            grid=(1,),                      # single invocation: all users handled in one pass
            in_specs=in_specs,
            out_specs=out_spec),
        compiler_params=pltpu.CompilerParams(dimension_semantics=("arbitrary",)),
    )(*args)
    return out_vk.T    # PyTorch output layout: [N_K(out), N_V]


def reference_forward(Vitem, Kitem, Kuser, Vscore, Kscore, II, p):
    """Pure-JAX reference (mirrors the PyTorch forward, eval mode)."""
    preference = Kscore.T
    structure = II
    C = Vitem.shape[1]
    vitem1 = jnp.dot(_leaky(Vitem @ p['w1a'] + p['b1a']), p['w1b'])
    kitem1 = jnp.dot(_leaky(Kitem @ p['w2a'] + p['b2a']), p['w2b'])

    def run_block(b, q, k, v):
        a1, a2 = p['nalpha'][b, 0:1], p['nalpha'][b, 1:2]
        be1, be2 = p['nbeta'][b, 0:1], p['nbeta'][b, 1:2]
        q2, k2, v2 = _norm(q, a1, be1), _norm(k, a1, be1), _norm(v, a1, be1)
        q = q + _attention(q2, k2, v2, C)
        q2 = _norm(q, a2, be2)
        h = jnp.maximum(q2 @ p['wff1'][b] + p['bff1'][b], 0.0)
        return q + h @ p['wff2'][b] + p['bff2'][b]

    outs = []
    for i in range(Kuser.shape[0]):
        kr = Kuser[i:i + 1]
        key = _leaky(kr @ p['w3u'] + preference @ p['w3p'] + structure @ p['w3s'] + p['b3a'])
        key = _leaky(key @ p['w3b'] + p['b3b'])
        key = key @ p['w3c']
        ig = run_block(0, vitem1, key, kitem1)
        ig = run_block(1, ig, ig, ig)
        ig = run_block(2, ig, ig, ig)
        ig = jnp.maximum(ig, 0.0) @ p['wlin'] + p['blin']
        outs.append(ig.T)
    stacked = jnp.stack(outs, 0)                       # (N_U, N_K, N_V)
    return jnp.tensordot(p['convw'][:, 0], stacked, axes=1) + p['convb'][0, 0]


if __name__ == "__main__":
    C = 32            # item_channels
    MG = 5            # max_group_member  (== Kuser.shape[0] == conv in-channels)
    MS = 10           # max_scene_item
    N_V = 8           # Vitem rows
    N_K = 8           # Kitem rows; substitute_num must equal N_K (ItemGroups[i] += ItemGroup.T)

    keys = iter(jax.random.split(jax.random.PRNGKey(0), 40))

    def rnd(shape, fan_in):
        return jax.random.normal(next(keys), shape, jnp.float32) / math.sqrt(fan_in)

    params = {
        # project1: Linear(C,C,bias)+Leaky, Linear(C,C,no bias)
        'w1a': rnd((C, C), C), 'b1a': rnd((1, C), C), 'w1b': rnd((C, C), C),
        # project2
        'w2a': rnd((C, C), C), 'b2a': rnd((1, C), C), 'w2b': rnd((C, C), C),
        # project3: Linear(C+MG+MS, C, bias) split along input axis, then Linear(C,C,bias), Linear(C,C)
        'w3u': rnd((C, C), C + MG + MS), 'w3p': rnd((MG, C), C + MG + MS),
        'w3s': rnd((MS, C), C + MG + MS), 'b3a': rnd((1, C), C + MG + MS),
        'w3b': rnd((C, C), C), 'b3b': rnd((1, C), C), 'w3c': rnd((C, C), C),
        # blocks 1..3: Norm params (alpha=1, beta=0 like fresh PyTorch init) + feedforward
        'nalpha': jnp.ones((3, 2, C), jnp.float32),
        'nbeta': jnp.zeros((3, 2, C), jnp.float32),
        'wff1': rnd((3, C, D_L), C), 'bff1': rnd((3, 1, D_L), C),
        'wff2': rnd((3, D_L, C), D_L), 'bff2': rnd((3, 1, C), D_L),
        # final Linear(C, substitute_num=N_K)
        'wlin': rnd((C, N_K), C), 'blin': rnd((1, N_K), C),
        # Conv2d(MG, 1, 1, 1): weight (MG,), bias scalar
        'convw': rnd((MG, 1), MG), 'convb': rnd((1, 1), 1),
    }

    Vitem = jax.random.normal(next(keys), (N_V, C), jnp.float32)
    Kitem = jax.random.normal(next(keys), (N_K, C), jnp.float32)
    Kuser = jax.random.normal(next(keys), (MG, C), jnp.float32)
    Vscore = jax.random.normal(next(keys), (MG, N_V), jnp.float32)   # unused by forward
    Kscore = jax.random.normal(next(keys), (MG, N_K), jnp.float32)
    II = jax.random.normal(next(keys), (N_K, MS), jnp.float32)

    out = substitute_group_forward(Vitem, Kitem, Kuser, Vscore, Kscore, II, params)
    out = jax.block_until_ready(out)

    ref = jax.block_until_ready(
        reference_forward(Vitem, Kitem, Kuser, Vscore, Kscore, II, params))

    assert out.shape == (N_K, N_V), out.shape
    np.testing.assert_allclose(np.asarray(out), np.asarray(ref), rtol=2e-2, atol=2e-2)
    print("KERNEL_OK")
</pallas_src>

<mosaic_0001>
module attributes {stable_mosaic.version = 11 : i64} {
  func.func @_substitute_group_kernel(%arg0: i32, %arg1: memref<8x32xf32, #tpu.memory_space<vmem>>, %arg2: memref<8x32xf32, #tpu.memory_space<vmem>>, %arg3: memref<5x32xf32, #tpu.memory_space<vmem>>, %arg4: memref<8x5xf32, #tpu.memory_space<vmem>>, %arg5: memref<8x10xf32, #tpu.memory_space<vmem>>, %arg6: memref<40x8xf32, #tpu.memory_space<vmem>>, %arg7: memref<40x8xf32, #tpu.memory_space<vmem>>, %arg8: memref<40x5xf32, #tpu.memory_space<vmem>>, %arg9: memref<40x5xf32, #tpu.memory_space<vmem>>, %arg10: memref<8x40xf32, #tpu.memory_space<vmem>>, %arg11: memref<40x40xf32, #tpu.memory_space<vmem>>, %arg12: memref<40x40xf32, #tpu.memory_space<vmem>>, %arg13: memref<32x32xf32, #tpu.memory_space<vmem>>, %arg14: memref<1x32xf32, #tpu.memory_space<vmem>>, %arg15: memref<32x32xf32, #tpu.memory_space<vmem>>, %arg16: memref<32x32xf32, #tpu.memory_space<vmem>>, %arg17: memref<1x32xf32, #tpu.memory_space<vmem>>, %arg18: memref<32x32xf32, #tpu.memory_space<vmem>>, %arg19: memref<32x32xf32, #tpu.memory_space<vmem>>, %arg20: memref<5x32xf32, #tpu.memory_space<vmem>>, %arg21: memref<10x32xf32, #tpu.memory_space<vmem>>, %arg22: memref<1x32xf32, #tpu.memory_space<vmem>>, %arg23: memref<32x32xf32, #tpu.memory_space<vmem>>, %arg24: memref<1x32xf32, #tpu.memory_space<vmem>>, %arg25: memref<32x32xf32, #tpu.memory_space<vmem>>, %arg26: memref<3x2x32xf32, #tpu.memory_space<vmem>>, %arg27: memref<3x2x32xf32, #tpu.memory_space<vmem>>, %arg28: memref<3x32x512xf32, #tpu.memory_space<vmem>>, %arg29: memref<3x1x512xf32, #tpu.memory_space<vmem>>, %arg30: memref<3x512x32xf32, #tpu.memory_space<vmem>>, %arg31: memref<3x1x32xf32, #tpu.memory_space<vmem>>, %arg32: memref<32x8xf32, #tpu.memory_space<vmem>>, %arg33: memref<1x8xf32, #tpu.memory_space<vmem>>, %arg34: memref<5x1xf32, #tpu.memory_space<vmem>>, %arg35: memref<1x1xf32, #tpu.memory_space<vmem>>, %arg36: memref<8x8xf32, #tpu.memory_space<vmem>>) attributes {dimension_semantics = [#tpu.dimension_semantics<arbitrary>], iteration_bounds = array<i64: 1>, scalar_prefetch = 0 : i64, scratch_operands = 0 : i64, tpu.core_type = #tpu.core_type<tc>, window_params = [{pipeline_mode = #tpu.pipeline_mode<synchronous>, transform_indices = @transform_0, window_bounds = array<i64: 8, 32>}, {pipeline_mode = #tpu.pipeline_mode<synchronous>, transform_indices = @transform_1, window_bounds = array<i64: 8, 32>}, {pipeline_mode = #tpu.pipeline_mode<synchronous>, transform_indices = @transform_2, window_bounds = array<i64: 5, 32>}, {pipeline_mode = #tpu.pipeline_mode<synchronous>, transform_indices = @transform_3, window_bounds = array<i64: 8, 5>}, {pipeline_mode = #tpu.pipeline_mode<synchronous>, transform_indices = @transform_4, window_bounds = array<i64: 8, 10>}, {pipeline_mode = #tpu.pipeline_mode<synchronous>, transform_indices = @transform_5, window_bounds = array<i64: 40, 8>}, {pipeline_mode = #tpu.pipeline_mode<synchronous>, transform_indices = @transform_6, window_bounds = array<i64: 40, 8>}, {pipeline_mode = #tpu.pipeline_mode<synchronous>, transform_indices = @transform_7, window_bounds = array<i64: 40, 5>}, {pipeline_mode = #tpu.pipeline_mode<synchronous>, transform_indices = @transform_8, window_bounds = array<i64: 40, 5>}, {pipeline_mode = #tpu.pipeline_mode<synchronous>, transform_indices = @transform_9, window_bounds = array<i64: 8, 40>}, {pipeline_mode = #tpu.pipeline_mode<synchronous>, transform_indices = @transform_10, window_bounds = array<i64: 40, 40>}, {pipeline_mode = #tpu.pipeline_mode<synchronous>, transform_indices = @transform_11, window_bounds = array<i64: 40, 40>}, {pipeline_mode = #tpu.pipeline_mode<synchronous>, transform_indices = @transform_12, window_bounds = array<i64: 32, 32>}, {pipeline_mode = #tpu.pipeline_mode<synchronous>, transform_indices = @transform_13, window_bounds = array<i64: 1, 32>}, {pipeline_mode = #tpu.pipeline_mode<synchronous>, transform_indices = @transform_14, window_bounds = array<i64: 32, 32>}, {pipeline_mode = #tpu.pipeline_mode<synchronous>, transform_indices = @transform_15, window_bounds = array<i64: 32, 32>}, {pipeline_mode = #tpu.pipeline_mode<synchronous>, transform_indices = @transform_16, window_bounds = array<i64: 1, 32>}, {pipeline_mode = #tpu.pipeline_mode<synchronous>, transform_indices = @transform_17, window_bounds = array<i64: 32, 32>}, {pipeline_mode = #tpu.pipeline_mode<synchronous>, transform_indices = @transform_18, window_bounds = array<i64: 32, 32>}, {pipeline_mode = #tpu.pipeline_mode<synchronous>, transform_indices = @transform_19, window_bounds = array<i64: 5, 32>}, {pipeline_mode = #tpu.pipeline_mode<synchronous>, transform_indices = @transform_20, window_bounds = array<i64: 10, 32>}, {pipeline_mode = #tpu.pipeline_mode<synchronous>, transform_indices = @transform_21, window_bounds = array<i64: 1, 32>}, {pipeline_mode = #tpu.pipeline_mode<synchronous>, transform_indices = @transform_22, window_bounds = array<i64: 32, 32>}, {pipeline_mode = #tpu.pipeline_mode<synchronous>, transform_indices = @transform_23, window_bounds = array<i64: 1, 32>}, {pipeline_mode = #tpu.pipeline_mode<synchronous>, transform_indices = @transform_24, window_bounds = array<i64: 32, 32>}, {pipeline_mode = #tpu.pipeline_mode<synchronous>, transform_indices = @transform_25, window_bounds = array<i64: 3, 2, 32>}, {pipeline_mode = #tpu.pipeline_mode<synchronous>, transform_indices = @transform_26, window_bounds = array<i64: 3, 2, 32>}, {pipeline_mode = #tpu.pipeline_mode<synchronous>, transform_indices = @transform_27, window_bounds = array<i64: 3, 32, 512>}, {pipeline_mode = #tpu.pipeline_mode<synchronous>, transform_indices = @transform_28, window_bounds = array<i64: 3, 1, 512>}, {pipeline_mode = #tpu.pipeline_mode<synchronous>, transform_indices = @transform_29, window_bounds = array<i64: 3, 512, 32>}, {pipeline_mode = #tpu.pipeline_mode<synchronous>, transform_indices = @transform_30, window_bounds = array<i64: 3, 1, 32>}, {pipeline_mode = #tpu.pipeline_mode<synchronous>, transform_indices = @transform_31, window_bounds = array<i64: 32, 8>}, {pipeline_mode = #tpu.pipeline_mode<synchronous>, transform_indices = @transform_32, window_bounds = array<i64: 1, 8>}, {pipeline_mode = #tpu.pipeline_mode<synchronous>, transform_indices = @transform_33, window_bounds = array<i64: 5, 1>}, {pipeline_mode = #tpu.pipeline_mode<synchronous>, transform_indices = @transform_34, window_bounds = array<i64: 1, 1>}, {pipeline_mode = #tpu.pipeline_mode<synchronous>, transform_indices = @transform_35, window_bounds = array<i64: 8, 8>}]} {
    %c0 = arith.constant 0 : index
    %c0_0 = arith.constant 0 : index
    %0 = vector.load %arg1[%c0, %c0_0] : memref<8x32xf32, #tpu.memory_space<vmem>>, vector<8x32xf32>
    %c0_1 = arith.constant 0 : index
    %c0_2 = arith.constant 0 : index
    %1 = vector.load %arg13[%c0_1, %c0_2] : memref<32x32xf32, #tpu.memory_space<vmem>>, vector<32x32xf32>
    %cst = arith.constant dense<0.000000e+00> : vector<8x32xf32>
    %2 = tpu.matmul %0, %1, %cst {dimension_numbers = #tpu.dot_dimension_numbers<[1], [0], [0], [1], [0, 0, 1, 1], [], []>} : vector<8x32xf32>, vector<32x32xf32>, vector<8x32xf32> -> vector<8x32xf32>
    %c0_3 = arith.constant 0 : index
    %c0_4 = arith.constant 0 : index
    %3 = vector.load %arg14[%c0_3, %c0_4] : memref<1x32xf32, #tpu.memory_space<vmem>>, vector<1x32xf32>
    %4 = vector.broadcast %3 : vector<1x32xf32> to vector<8x32xf32>
    %5 = arith.addf %2, %4 : vector<8x32xf32>
    %cst_5 = arith.constant 0.000000e+00 : f32
    %6 = vector.broadcast %cst_5 : f32 to vector<8x32xf32>
    %7 = arith.cmpf ogt, %5, %6 : vector<8x32xf32>
    %cst_6 = arith.constant 1.000000e-01 : f32
    %8 = vector.broadcast %cst_6 : f32 to vector<8x32xf32>
    %9 = arith.mulf %8, %5 : vector<8x32xf32>
    %10 = arith.select %7, %5, %9 : vector<8x32xi1>, vector<8x32xf32>
    %c0_7 = arith.constant 0 : index
    %c0_8 = arith.constant 0 : index
    %11 = vector.load %arg15[%c0_7, %c0_8] : memref<32x32xf32, #tpu.memory_space<vmem>>, vector<32x32xf32>
    %cst_9 = arith.constant dense<0.000000e+00> : vector<8x32xf32>
    %12 = tpu.matmul %10, %11, %cst_9 {dimension_numbers = #tpu.dot_dimension_numbers<[1], [0], [0], [1], [0, 0, 1, 1], [], []>} : vector<8x32xf32>, vector<32x32xf32>, vector<8x32xf32> -> vector<8x32xf32>
    %c0_10 = arith.constant 0 : index
    %c0_11 = arith.constant 0 : index
    %13 = vector.load %arg2[%c0_10, %c0_11] : memref<8x32xf32, #tpu.memory_space<vmem>>, vector<8x32xf32>
    %c0_12 = arith.constant 0 : index
    %c0_13 = arith.constant 0 : index
    %14 = vector.load %arg16[%c0_12, %c0_13] : memref<32x32xf32, #tpu.memory_space<vmem>>, vector<32x32xf32>
    %cst_14 = arith.constant dense<0.000000e+00> : vector<8x32xf32>
    %15 = tpu.matmul %13, %14, %cst_14 {dimension_numbers = #tpu.dot_dimension_numbers<[1], [0], [0], [1], [0, 0, 1, 1], [], []>} : vector<8x32xf32>, vector<32x32xf32>, vector<8x32xf32> -> vector<8x32xf32>
    %c0_15 = arith.constant 0 : index
    %c0_16 = arith.constant 0 : index
    %16 = vector.load %arg17[%c0_15, %c0_16] : memref<1x32xf32, #tpu.memory_space<vmem>>, vector<1x32xf32>
    %17 = vector.broadcast %16 : vector<1x32xf32> to vector<8x32xf32>
    %18 = arith.addf %15, %17 : vector<8x32xf32>
    %cst_17 = arith.constant 0.000000e+00 : f32
    %19 = vector.broadcast %cst_17 : f32 to vector<8x32xf32>
    %20 = arith.cmpf ogt, %18, %19 : vector<8x32xf32>
    %cst_18 = arith.constant 1.000000e-01 : f32
    %21 = vector.broadcast %cst_18 : f32 to vector<8x32xf32>
    %22 = arith.mulf %21, %18 : vector<8x32xf32>
    %23 = arith.select %20, %18, %22 : vector<8x32xi1>, vector<8x32xf32>
    %c0_19 = arith.constant 0 : index
    %c0_20 = arith.constant 0 : index
    %24 = vector.load %arg18[%c0_19, %c0_20] : memref<32x32xf32, #tpu.memory_space<vmem>>, vector<32x32xf32>
    %cst_21 = arith.constant dense<0.000000e+00> : vector<8x32xf32>
    %25 = tpu.matmul %23, %24, %cst_21 {dimension_numbers = #tpu.dot_dimension_numbers<[1], [0], [0], [1], [0, 0, 1, 1], [], []>} : vector<8x32xf32>, vector<32x32xf32>, vector<8x32xf32> -> vector<8x32xf32>
    %c0_22 = arith.constant 0 : index
    %c0_23 = arith.constant 0 : index
    %26 = vector.load %arg4[%c0_22, %c0_23] : memref<8x5xf32, #tpu.memory_space<vmem>>, vector<8x5xf32>
    %c0_24 = arith.constant 0 : index
    %c0_25 = arith.constant 0 : index
    %27 = vector.load %arg20[%c0_24, %c0_25] : memref<5x32xf32, #tpu.memory_space<vmem>>, vector<5x32xf32>
    %cst_26 = arith.constant dense<0.000000e+00> : vector<8x32xf32>
    %28 = tpu.matmul %26, %27, %cst_26 {dimension_numbers = #tpu.dot_dimension_numbers<[1], [0], [0], [1], [0, 0, 1, 1], [], []>} : vector<8x5xf32>, vector<5x32xf32>, vector<8x32xf32> -> vector<8x32xf32>
    %c0_27 = arith.constant 0 : index
    %c0_28 = arith.constant 0 : index
    %29 = vector.load %arg5[%c0_27, %c0_28] : memref<8x10xf32, #tpu.memory_space<vmem>>, vector<8x10xf32>
    %c0_29 = arith.constant 0 : index
    %c0_30 = arith.constant 0 : index
    %30 = vector.load %arg21[%c0_29, %c0_30] : memref<10x32xf32, #tpu.memory_space<vmem>>, vector<10x32xf32>
    %cst_31 = arith.constant dense<0.000000e+00> : vector<8x32xf32>
    %31 = tpu.matmul %29, %30, %cst_31 {dimension_numbers = #tpu.dot_dimension_numbers<[1], [0], [0], [1], [0, 0, 1, 1], [], []>} : vector<8x10xf32>, vector<10x32xf32>, vector<8x32xf32> -> vector<8x32xf32>
    %32 = arith.addf %28, %31 : vector<8x32xf32>
    %c0_32 = arith.constant 0 : index
    %c0_33 = arith.constant 0 : index
    %33 = vector.load %arg22[%c0_32, %c0_33] : memref<1x32xf32, #tpu.memory_space<vmem>>, vector<1x32xf32>
    %34 = vector.broadcast %33 : vector<1x32xf32> to vector<8x32xf32>
    %35 = arith.addf %32, %34 : vector<8x32xf32>
    %c0_34 = arith.constant 0 : index
    %c0_35 = arith.constant 0 : index
    %36 = vector.load %arg3[%c0_34, %c0_35] : memref<5x32xf32, #tpu.memory_space<vmem>>, vector<5x32xf32>
    %c0_36 = arith.constant 0 : index
    %c0_37 = arith.constant 0 : index
    %37 = vector.load %arg19[%c0_36, %c0_37] : memref<32x32xf32, #tpu.memory_space<vmem>>, vector<32x32xf32>
    %cst_38 = arith.constant dense<0.000000e+00> : vector<5x32xf32>
    %38 = tpu.matmul %36, %37, %cst_38 {dimension_numbers = #tpu.dot_dimension_numbers<[1], [0], [0], [1], [0, 0, 1, 1], [], []>} : vector<5x32xf32>, vector<32x32xf32>, vector<5x32xf32> -> vector<5x32xf32>
    %c0_39 = arith.constant 0 : index
    %c0_40 = arith.constant 0 : index
    %39 = vector.load %arg6[%c0_39, %c0_40] : memref<40x8xf32, #tpu.memory_space<vmem>>, vector<40x8xf32>
    %c0_41 = arith.constant 0 : index
    %c0_42 = arith.constant 0 : index
    %40 = vector.load %arg7[%c0_41, %c0_42] : memref<40x8xf32, #tpu.memory_space<vmem>>, vector<40x8xf32>
    %c0_43 = arith.constant 0 : index
    %c0_44 = arith.constant 0 : index
    %41 = vector.load %arg8[%c0_43, %c0_44] : memref<40x5xf32, #tpu.memory_space<vmem>>, vector<40x5xf32>
    %cst_45 = arith.constant dense<0.000000e+00> : vector<40x32xf32>
    %42 = tpu.matmul %40, %35, %cst_45 {dimension_numbers = #tpu.dot_dimension_numbers<[1], [0], [0], [1], [0, 0, 1, 1], [], []>} : vector<40x8xf32>, vector<8x32xf32>, vector<40x32xf32> -> vector<40x32xf32>
    %cst_46 = arith.constant dense<0.000000e+00> : vector<40x32xf32>
    %43 = tpu.matmul %41, %38, %cst_46 {dimension_numbers = #tpu.dot_dimension_numbers<[1], [0], [0], [1], [0, 0, 1, 1], [], []>} : vector<40x5xf32>, vector<5x32xf32>, vector<40x32xf32> -> vector<40x32xf32>
    %44 = arith.addf %42, %43 : vector<40x32xf32>
    %cst_47 = arith.constant 0.000000e+00 : f32
    %45 = vector.broadcast %cst_47 : f32 to vector<40x32xf32>
    %46 = arith.cmpf ogt, %44, %45 : vector<40x32xf32>
    %cst_48 = arith.constant 1.000000e-01 : f32
    %47 = vector.broadcast %cst_48 : f32 to vector<40x32xf32>
    %48 = arith.mulf %47, %44 : vector<40x32xf32>
    %49 = arith.select %46, %44, %48 : vector<40x32xi1>, vector<40x32xf32>
    %c0_49 = arith.constant 0 : index
    %c0_50 = arith.constant 0 : index
    %50 = vector.load %arg23[%c0_49, %c0_50] : memref<32x32xf32, #tpu.memory_space<vmem>>, vector<32x32xf32>
    %cst_51 = arith.constant dense<0.000000e+00> : vector<40x32xf32>
    %51 = tpu.matmul %49, %50, %cst_51 {dimension_numbers = #tpu.dot_dimension_numbers<[1], [0], [0], [1], [0, 0, 1, 1], [], []>} : vector<40x32xf32>, vector<32x32xf32>, vector<40x32xf32> -> vector<40x32xf32>
    %c0_52 = arith.constant 0 : index
    %c0_53 = arith.constant 0 : index
    %52 = vector.load %arg24[%c0_52, %c0_53] : memref<1x32xf32, #tpu.memory_space<vmem>>, vector<1x32xf32>
    %53 = vector.broadcast %52 : vector<1x32xf32> to vector<40x32xf32>
    %54 = arith.addf %51, %53 : vector<40x32xf32>
    %cst_54 = arith.constant 0.000000e+00 : f32
    %55 = vector.broadcast %cst_54 : f32 to vector<40x32xf32>
    %56 = arith.cmpf ogt, %54, %55 : vector<40x32xf32>
    %cst_55 = arith.constant 1.000000e-01 : f32
    %57 = vector.broadcast %cst_55 : f32 to vector<40x32xf32>
    %58 = arith.mulf %57, %54 : vector<40x32xf32>
    %59 = arith.select %56, %54, %58 : vector<40x32xi1>, vector<40x32xf32>
    %c0_56 = arith.constant 0 : index
    %c0_57 = arith.constant 0 : index
    %60 = vector.load %arg25[%c0_56, %c0_57] : memref<32x32xf32, #tpu.memory_space<vmem>>, vector<32x32xf32>
    %cst_58 = arith.constant dense<0.000000e+00> : vector<40x32xf32>
    %61 = tpu.matmul %59, %60, %cst_58 {dimension_numbers = #tpu.dot_dimension_numbers<[1], [0], [0], [1], [0, 0, 1, 1], [], []>} : vector<40x32xf32>, vector<32x32xf32>, vector<40x32xf32> -> vector<40x32xf32>
    %cst_59 = arith.constant dense<0.000000e+00> : vector<40x32xf32>
    %62 = tpu.matmul %39, %12, %cst_59 {dimension_numbers = #tpu.dot_dimension_numbers<[1], [0], [0], [1], [0, 0, 1, 1], [], []>} : vector<40x8xf32>, vector<8x32xf32>, vector<40x32xf32> -> vector<40x32xf32>
    %cst_60 = arith.constant dense<0.000000e+00> : vector<40x32xf32>
    %63 = tpu.matmul %40, %25, %cst_60 {dimension_numbers = #tpu.dot_dimension_numbers<[1], [0], [0], [1], [0, 0, 1, 1], [], []>} : vector<40x8xf32>, vector<8x32xf32>, vector<40x32xf32> -> vector<40x32xf32>
    %c0_61 = arith.constant 0 : index
    %c0_62 = arith.constant 0 : index
    %64 = vector.load %arg11[%c0_61, %c0_62] : memref<40x40xf32, #tpu.memory_space<vmem>>, vector<40x40xf32>
    %c0_63 = arith.constant 0 : index
    %c0_64 = arith.constant 0 : index
    %c0_65 = arith.constant 0 : index
    %65 = vector.load %arg26[%c0_63, %c0_64, %c0_65] : memref<3x2x32xf32, #tpu.memory_space<vmem>>, vector<1x2x32xf32>
    %66 = vector.shape_cast %65 : vector<1x2x32xf32> to vector<2x32xf32>
    %c0_66 = arith.constant 0 : index
    %c0_67 = arith.constant 0 : index
    %c0_68 = arith.constant 0 : index
    %67 = vector.load %arg27[%c0_66, %c0_67, %c0_68] : memref<3x2x32xf32, #tpu.memory_space<vmem>>, vector<1x2x32xf32>
    %68 = vector.shape_cast %67 : vector<1x2x32xf32> to vector<2x32xf32>
    %69 = vector.extract_strided_slice %66 {offsets = [0, 0], sizes = [1, 32], strides = [1, 1]} : vector<2x32xf32> to vector<1x32xf32>
    %70 = vector.extract_strided_slice %66 {offsets = [1, 0], sizes = [1, 32], strides = [1, 1]} : vector<2x32xf32> to vector<1x32xf32>
    %71 = vector.extract_strided_slice %68 {offsets = [0, 0], sizes = [1, 32], strides = [1, 1]} : vector<2x32xf32> to vector<1x32xf32>
    %72 = vector.extract_strided_slice %68 {offsets = [1, 0], sizes = [1, 32], strides = [1, 1]} : vector<2x32xf32> to vector<1x32xf32>
    %cst_69 = arith.constant dense<0.000000e+00> : vector<40xf32>
    %73 = vector.multi_reduction <add>, %62, %cst_69 [1] : vector<40x32xf32> to vector<40xf32>
    %74 = vector.shape_cast %73 : vector<40xf32> to vector<40x1xf32>
    %cst_70 = arith.constant 3.200000e+01 : f32
    %75 = vector.broadcast %cst_70 : f32 to vector<40x1xf32>
    %76 = arith.divf %74, %75 : vector<40x1xf32>
    %77 = vector.broadcast %76 : vector<40x1xf32> to vector<40x32xf32>
    %78 = arith.subf %62, %77 : vector<40x32xf32>
    %79 = arith.mulf %78, %78 : vector<40x32xf32>
    %cst_71 = arith.constant dense<0.000000e+00> : vector<40xf32>
    %80 = vector.multi_reduction <add>, %79, %cst_71 [1] : vector<40x32xf32> to vector<40xf32>
    %81 = vector.shape_cast %80 : vector<40xf32> to vector<40x1xf32>
    %cst_72 = arith.constant 0.0322580636 : f32
    %82 = vector.broadcast %cst_72 : f32 to vector<40x1xf32>
    %83 = arith.mulf %81, %82 : vector<40x1xf32>
    %84 = math.sqrt %83 : vector<40x1xf32>
    %cst_73 = arith.constant 9.99999997E-7 : f32
    %85 = vector.broadcast %cst_73 : f32 to vector<40x1xf32>
    %86 = arith.addf %84, %85 : vector<40x1xf32>
    %87 = tpu.reciprocal %86 {approx = true} : vector<40x1xf32> -> vector<40x1xf32>
    %88 = vector.broadcast %87 : vector<40x1xf32> to vector<40x32xf32>
    %89 = arith.mulf %78, %88 : vector<40x32xf32>
    %90 = vector.broadcast %69 : vector<1x32xf32> to vector<40x32xf32>
    %91 = arith.mulf %90, %89 : vector<40x32xf32>
    %92 = vector.broadcast %71 : vector<1x32xf32> to vector<40x32xf32>
    %93 = arith.addf %91, %92 : vector<40x32xf32>
    %cst_74 = arith.constant dense<0.000000e+00> : vector<40xf32>
    %94 = vector.multi_reduction <add>, %61, %cst_74 [1] : vector<40x32xf32> to vector<40xf32>
    %95 = vector.shape_cast %94 : vector<40xf32> to vector<40x1xf32>
    %cst_75 = arith.constant 3.200000e+01 : f32
    %96 = vector.broadcast %cst_75 : f32 to vector<40x1xf32>
    %97 = arith.divf %95, %96 : vector<40x1xf32>
    %98 = vector.broadcast %97 : vector<40x1xf32> to vector<40x32xf32>
    %99 = arith.subf %61, %98 : vector<40x32xf32>
    %100 = arith.mulf %99, %99 : vector<40x32xf32>
    %cst_76 = arith.constant dense<0.000000e+00> : vector<40xf32>
    %101 = vector.multi_reduction <add>, %100, %cst_76 [1] : vector<40x32xf32> to vector<40xf32>
    %102 = vector.shape_cast %101 : vector<40xf32> to vector<40x1xf32>
    %cst_77 = arith.constant 0.0322580636 : f32
    %103 = vector.broadcast %cst_77 : f32 to vector<40x1xf32>
    %104 = arith.mulf %102, %103 : vector<40x1xf32>
    %105 = math.sqrt %104 : vector<40x1xf32>
    %cst_78 = arith.constant 9.99999997E-7 : f32
    %106 = vector.broadcast %cst_78 : f32 to vector<40x1xf32>
    %107 = arith.addf %105, %106 : vector<40x1xf32>
    %108 = tpu.reciprocal %107 {approx = true} : vector<40x1xf32> -> vector<40x1xf32>
    %109 = vector.broadcast %108 : vector<40x1xf32> to vector<40x32xf32>
    %110 = arith.mulf %99, %109 : vector<40x32xf32>
    %111 = vector.broadcast %69 : vector<1x32xf32> to vector<40x32xf32>
    %112 = arith.mulf %111, %110 : vector<40x32xf32>
    %113 = vector.broadcast %71 : vector<1x32xf32> to vector<40x32xf32>
    %114 = arith.addf %112, %113 : vector<40x32xf32>
    %cst_79 = arith.constant dense<0.000000e+00> : vector<40xf32>
    %115 = vector.multi_reduction <add>, %63, %cst_79 [1] : vector<40x32xf32> to vector<40xf32>
    %116 = vector.shape_cast %115 : vector<40xf32> to vector<40x1xf32>
    %cst_80 = arith.constant 3.200000e+01 : f32
    %117 = vector.broadcast %cst_80 : f32 to vector<40x1xf32>
    %118 = arith.divf %116, %117 : vector<40x1xf32>
    %119 = vector.broadcast %118 : vector<40x1xf32> to vector<40x32xf32>
    %120 = arith.subf %63, %119 : vector<40x32xf32>
    %121 = arith.mulf %120, %120 : vector<40x32xf32>
    %cst_81 = arith.constant dense<0.000000e+00> : vector<40xf32>
    %122 = vector.multi_reduction <add>, %121, %cst_81 [1] : vector<40x32xf32> to vector<40xf32>
    %123 = vector.shape_cast %122 : vector<40xf32> to vector<40x1xf32>
    %cst_82 = arith.constant 0.0322580636 : f32
    %124 = vector.broadcast %cst_82 : f32 to vector<40x1xf32>
    %125 = arith.mulf %123, %124 : vector<40x1xf32>
    %126 = math.sqrt %125 : vector<40x1xf32>
    %cst_83 = arith.constant 9.99999997E-7 : f32
    %127 = vector.broadcast %cst_83 : f32 to vector<40x1xf32>
    %128 = arith.addf %126, %127 : vector<40x1xf32>
    %129 = tpu.reciprocal %128 {approx = true} : vector<40x1xf32> -> vector<40x1xf32>
    %130 = vector.broadcast %129 : vector<40x1xf32> to vector<40x32xf32>
    %131 = arith.mulf %120, %130 : vector<40x32xf32>
    %132 = vector.broadcast %69 : vector<1x32xf32> to vector<40x32xf32>
    %133 = arith.mulf %132, %131 : vector<40x32xf32>
    %134 = vector.broadcast %71 : vector<1x32xf32> to vector<40x32xf32>
    %135 = arith.addf %133, %134 : vector<40x32xf32>
    %cst_84 = arith.constant 0.176776692 : f32
    %136 = vector.broadcast %cst_84 : f32 to vector<40x32xf32>
    %137 = arith.mulf %93, %136 : vector<40x32xf32>
    %cst_85 = arith.constant dense<0.000000e+00> : vector<40x40xf32>
    %138 = tpu.matmul %137, %114, %cst_85 {dimension_numbers = #tpu.dot_dimension_numbers<[1], [1], [0], [0], [0, 0, 1, 0], [], []>} : vector<40x32xf32>, vector<40x32xf32>, vector<40x40xf32> -> vector<40x40xf32>
    %139 = arith.addf %138, %64 : vector<40x40xf32>
    %cst_86 = arith.constant dense<0xFF800000> : vector<40xf32>
    %140 = vector.multi_reduction <maximumf>, %139, %cst_86 [1] : vector<40x40xf32> to vector<40xf32>
    %141 = vector.shape_cast %140 : vector<40xf32> to vector<40x1xf32>
    %142 = vector.broadcast %141 : vector<40x1xf32> to vector<40x40xf32>
    %143 = arith.subf %139, %142 : vector<40x40xf32>
    %144 = math.exp %143 : vector<40x40xf32>
    %cst_87 = arith.constant dense<0.000000e+00> : vector<40xf32>
    %145 = vector.multi_reduction <add>, %144, %cst_87 [1] : vector<40x40xf32> to vector<40xf32>
    %146 = vector.shape_cast %145 : vector<40xf32> to vector<40x1xf32>
    %147 = tpu.reciprocal %146 {approx = true} : vector<40x1xf32> -> vector<40x1xf32>
    %148 = vector.broadcast %147 : vector<40x1xf32> to vector<40x40xf32>
    %149 = arith.mulf %144, %148 : vector<40x40xf32>
    %cst_88 = arith.constant dense<0.000000e+00> : vector<40x32xf32>
    %150 = tpu.matmul %149, %135, %cst_88 {dimension_numbers = #tpu.dot_dimension_numbers<[1], [0], [0], [1], [0, 0, 1, 1], [], []>} : vector<40x40xf32>, vector<40x32xf32>, vector<40x32xf32> -> vector<40x32xf32>
    %151 = arith.addf %62, %150 : vector<40x32xf32>
    %cst_89 = arith.constant dense<0.000000e+00> : vector<40xf32>
    %152 = vector.multi_reduction <add>, %151, %cst_89 [1] : vector<40x32xf32> to vector<40xf32>
    %153 = vector.shape_cast %152 : vector<40xf32> to vector<40x1xf32>
    %cst_90 = arith.constant 3.200000e+01 : f32
    %154 = vector.broadcast %cst_90 : f32 to vector<40x1xf32>
    %155 = arith.divf %153, %154 : vector<40x1xf32>
    %156 = vector.broadcast %155 : vector<40x1xf32> to vector<40x32xf32>
    %157 = arith.subf %151, %156 : vector<40x32xf32>
    %158 = arith.mulf %157, %157 : vector<40x32xf32>
    %cst_91 = arith.constant dense<0.000000e+00> : vector<40xf32>
    %159 = vector.multi_reduction <add>, %158, %cst_91 [1] : vector<40x32xf32> to vector<40xf32>
    %160 = vector.shape_cast %159 : vector<40xf32> to vector<40x1xf32>
    %cst_92 = arith.constant 0.0322580636 : f32
    %161 = vector.broadcast %cst_92 : f32 to vector<40x1xf32>
    %162 = arith.mulf %160, %161 : vector<40x1xf32>
    %163 = math.sqrt %162 : vector<40x1xf32>
    %cst_93 = arith.constant 9.99999997E-7 : f32
    %164 = vector.broadcast %cst_93 : f32 to vector<40x1xf32>
    %165 = arith.addf %163, %164 : vector<40x1xf32>
    %166 = tpu.reciprocal %165 {approx = true} : vector<40x1xf32> -> vector<40x1xf32>
    %167 = vector.broadcast %166 : vector<40x1xf32> to vector<40x32xf32>
    %168 = arith.mulf %157, %167 : vector<40x32xf32>
    %169 = vector.broadcast %70 : vector<1x32xf32> to vector<40x32xf32>
    %170 = arith.mulf %169, %168 : vector<40x32xf32>
    %171 = vector.broadcast %72 : vector<1x32xf32> to vector<40x32xf32>
    %172 = arith.addf %170, %171 : vector<40x32xf32>
    %c0_94 = arith.constant 0 : index
    %c0_95 = arith.constant 0 : index
    %c0_96 = arith.constant 0 : index
    %173 = vector.load %arg28[%c0_94, %c0_95, %c0_96] : memref<3x32x512xf32, #tpu.memory_space<vmem>>, vector<1x32x512xf32>
    %174 = vector.shape_cast %173 : vector<1x32x512xf32> to vector<32x512xf32>
    %cst_97 = arith.constant dense<0.000000e+00> : vector<40x512xf32>
    %175 = tpu.matmul %172, %174, %cst_97 {dimension_numbers = #tpu.dot_dimension_numbers<[1], [0], [0], [1], [0, 0, 1, 1], [], []>} : vector<40x32xf32>, vector<32x512xf32>, vector<40x512xf32> -> vector<40x512xf32>
    %c0_98 = arith.constant 0 : index
    %c0_99 = arith.constant 0 : index
    %c0_100 = arith.constant 0 : index
    %176 = vector.load %arg29[%c0_98, %c0_99, %c0_100] : memref<3x1x512xf32, #tpu.memory_space<vmem>>, vector<1x1x512xf32>
    %177 = vector.shape_cast %176 : vector<1x1x512xf32> to vector<1x512xf32>
    %178 = vector.broadcast %177 : vector<1x512xf32> to vector<40x512xf32>
    %179 = arith.addf %175, %178 : vector<40x512xf32>
    %cst_101 = arith.constant 0.000000e+00 : f32
    %180 = vector.broadcast %cst_101 : f32 to vector<40x512xf32>
    %181 = arith.maximumf %179, %180 : vector<40x512xf32>
    %c0_102 = arith.constant 0 : index
    %c0_103 = arith.constant 0 : index
    %c0_104 = arith.constant 0 : index
    %182 = vector.load %arg30[%c0_102, %c0_103, %c0_104] : memref<3x512x32xf32, #tpu.memory_space<vmem>>, vector<1x512x32xf32>
    %183 = vector.shape_cast %182 : vector<1x512x32xf32> to vector<512x32xf32>
    %cst_105 = arith.constant dense<0.000000e+00> : vector<40x32xf32>
    %184 = tpu.matmul %181, %183, %cst_105 {dimension_numbers = #tpu.dot_dimension_numbers<[1], [0], [0], [1], [0, 0, 1, 1], [], []>} : vector<40x512xf32>, vector<512x32xf32>, vector<40x32xf32> -> vector<40x32xf32>
    %185 = arith.addf %151, %184 : vector<40x32xf32>
    %c0_106 = arith.constant 0 : index
    %c0_107 = arith.constant 0 : index
    %c0_108 = arith.constant 0 : index
    %186 = vector.load %arg31[%c0_106, %c0_107, %c0_108] : memref<3x1x32xf32, #tpu.memory_space<vmem>>, vector<1x1x32xf32>
    %187 = vector.shape_cast %186 : vector<1x1x32xf32> to vector<1x32xf32>
    %188 = vector.broadcast %187 : vector<1x32xf32> to vector<40x32xf32>
    %189 = arith.addf %185, %188 : vector<40x32xf32>
    %c0_109 = arith.constant 0 : index
    %c0_110 = arith.constant 0 : index
    %190 = vector.load %arg12[%c0_109, %c0_110] : memref<40x40xf32, #tpu.memory_space<vmem>>, vector<40x40xf32>
    %c1 = arith.constant 1 : index
    %c0_111 = arith.constant 0 : index
    %c0_112 = arith.constant 0 : index
    %191 = vector.load %arg26[%c1, %c0_111, %c0_112] : memref<3x2x32xf32, #tpu.memory_space<vmem>>, vector<1x2x32xf32>
    %192 = vector.shape_cast %191 : vector<1x2x32xf32> to vector<2x32xf32>
    %c1_113 = arith.constant 1 : index
    %c0_114 = arith.constant 0 : index
    %c0_115 = arith.constant 0 : index
    %193 = vector.load %arg27[%c1_113, %c0_114, %c0_115] : memref<3x2x32xf32, #tpu.memory_space<vmem>>, vector<1x2x32xf32>
    %194 = vector.shape_cast %193 : vector<1x2x32xf32> to vector<2x32xf32>
    %195 = vector.extract_strided_slice %192 {offsets = [0, 0], sizes = [1, 32], strides = [1, 1]} : vector<2x32xf32> to vector<1x32xf32>
    %196 = vector.extract_strided_slice %192 {offsets = [1, 0], sizes = [1, 32], strides = [1, 1]} : vector<2x32xf32> to vector<1x32xf32>
    %197 = vector.extract_strided_slice %194 {offsets = [0, 0], sizes = [1, 32], strides = [1, 1]} : vector<2x32xf32> to vector<1x32xf32>
    %198 = vector.extract_strided_slice %194 {offsets = [1, 0], sizes = [1, 32], strides = [1, 1]} : vector<2x32xf32> to vector<1x32xf32>
    %cst_116 = arith.constant dense<0.000000e+00> : vector<40xf32>
    %199 = vector.multi_reduction <add>, %189, %cst_116 [1] : vector<40x32xf32> to vector<40xf32>
    %200 = vector.shape_cast %199 : vector<40xf32> to vector<40x1xf32>
    %cst_117 = arith.constant 3.200000e+01 : f32
    %201 = vector.broadcast %cst_117 : f32 to vector<40x1xf32>
    %202 = arith.divf %200, %201 : vector<40x1xf32>
    %203 = vector.broadcast %202 : vector<40x1xf32> to vector<40x32xf32>
    %204 = arith.subf %189, %203 : vector<40x32xf32>
    %205 = arith.mulf %204, %204 : vector<40x32xf32>
    %cst_118 = arith.constant dense<0.000000e+00> : vector<40xf32>
    %206 = vector.multi_reduction <add>, %205, %cst_118 [1] : vector<40x32xf32> to vector<40xf32>
    %207 = vector.shape_cast %206 : vector<40xf32> to vector<40x1xf32>
    %cst_119 = arith.constant 0.0322580636 : f32
    %208 = vector.broadcast %cst_119 : f32 to vector<40x1xf32>
    %209 = arith.mulf %207, %208 : vector<40x1xf32>
    %210 = math.sqrt %209 : vector<40x1xf32>
    %cst_120 = arith.constant 9.99999997E-7 : f32
    %211 = vector.broadcast %cst_120 : f32 to vector<40x1xf32>
    %212 = arith.addf %210, %211 : vector<40x1xf32>
    %213 = tpu.reciprocal %212 {approx = true} : vector<40x1xf32> -> vector<40x1xf32>
    %214 = vector.broadcast %213 : vector<40x1xf32> to vector<40x32xf32>
    %215 = arith.mulf %204, %214 : vector<40x32xf32>
    %216 = vector.broadcast %195 : vector<1x32xf32> to vector<40x32xf32>
    %217 = arith.mulf %216, %215 : vector<40x32xf32>
    %218 = vector.broadcast %197 : vector<1x32xf32> to vector<40x32xf32>
    %219 = arith.addf %217, %218 : vector<40x32xf32>
    %cst_121 = arith.constant dense<0.000000e+00> : vector<40xf32>
    %220 = vector.multi_reduction <add>, %189, %cst_121 [1] : vector<40x32xf32> to vector<40xf32>
    %221 = vector.shape_cast %220 : vector<40xf32> to vector<40x1xf32>
    %cst_122 = arith.constant 3.200000e+01 : f32
    %222 = vector.broadcast %cst_122 : f32 to vector<40x1xf32>
    %223 = arith.divf %221, %222 : vector<40x1xf32>
    %224 = vector.broadcast %223 : vector<40x1xf32> to vector<40x32xf32>
    %225 = arith.subf %189, %224 : vector<40x32xf32>
    %226 = arith.mulf %225, %225 : vector<40x32xf32>
    %cst_123 = arith.constant dense<0.000000e+00> : vector<40xf32>
    %227 = vector.multi_reduction <add>, %226, %cst_123 [1] : vector<40x32xf32> to vector<40xf32>
    %228 = vector.shape_cast %227 : vector<40xf32> to vector<40x1xf32>
    %cst_124 = arith.constant 0.0322580636 : f32
    %229 = vector.broadcast %cst_124 : f32 to vector<40x1xf32>
    %230 = arith.mulf %228, %229 : vector<40x1xf32>
    %231 = math.sqrt %230 : vector<40x1xf32>
    %cst_125 = arith.constant 9.99999997E-7 : f32
    %232 = vector.broadcast %cst_125 : f32 to vector<40x1xf32>
    %233 = arith.addf %231, %232 : vector<40x1xf32>
    %234 = tpu.reciprocal %233 {approx = true} : vector<40x1xf32> -> vector<40x1xf32>
    %235 = vector.broadcast %234 : vector<40x1xf32> to vector<40x32xf32>
    %236 = arith.mulf %225, %235 : vector<40x32xf32>
    %237 = vector.broadcast %195 : vector<1x32xf32> to vector<40x32xf32>
    %238 = arith.mulf %237, %236 : vector<40x32xf32>
    %239 = vector.broadcast %197 : vector<1x32xf32> to vector<40x32xf32>
    %240 = arith.addf %238, %239 : vector<40x32xf32>
    %cst_126 = arith.constant dense<0.000000e+00> : vector<40xf32>
    %241 = vector.multi_reduction <add>, %189, %cst_126 [1] : vector<40x32xf32> to vector<40xf32>
    %242 = vector.shape_cast %241 : vector<40xf32> to vector<40x1xf32>
    %cst_127 = arith.constant 3.200000e+01 : f32
    %243 = vector.broadcast %cst_127 : f32 to vector<40x1xf32>
    %244 = arith.divf %242, %243 : vector<40x1xf32>
    %245 = vector.broadcast %244 : vector<40x1xf32> to vector<40x32xf32>
    %246 = arith.subf %189, %245 : vector<40x32xf32>
    %247 = arith.mulf %246, %246 : vector<40x32xf32>
    %cst_128 = arith.constant dense<0.000000e+00> : vector<40xf32>
    %248 = vector.multi_reduction <add>, %247, %cst_128 [1] : vector<40x32xf32> to vector<40xf32>
    %249 = vector.shape_cast %248 : vector<40xf32> to vector<40x1xf32>
    %cst_129 = arith.constant 0.0322580636 : f32
    %250 = vector.broadcast %cst_129 : f32 to vector<40x1xf32>
    %251 = arith.mulf %249, %250 : vector<40x1xf32>
    %252 = math.sqrt %251 : vector<40x1xf32>
    %cst_130 = arith.constant 9.99999997E-7 : f32
    %253 = vector.broadcast %cst_130 : f32 to vector<40x1xf32>
    %254 = arith.addf %252, %253 : vector<40x1xf32>
    %255 = tpu.reciprocal %254 {approx = true} : vector<40x1xf32> -> vector<40x1xf32>
    %256 = vector.broadcast %255 : vector<40x1xf32> to vector<40x32xf32>
    %257 = arith.mulf %246, %256 : vector<40x32xf32>
    %258 = vector.broadcast %195 : vector<1x32xf32> to vector<40x32xf32>
    %259 = arith.mulf %258, %257 : vector<40x32xf32>
    %260 = vector.broadcast %197 : vector<1x32xf32> to vector<40x32xf32>
    %261 = arith.addf %259, %260 : vector<40x32xf32>
    %cst_131 = arith.constant 0.176776692 : f32
    %262 = vector.broadcast %cst_131 : f32 to vector<40x32xf32>
    %263 = arith.mulf %219, %262 : vector<40x32xf32>
    %cst_132 = arith.constant dense<0.000000e+00> : vector<40x40xf32>
    %264 = tpu.matmul %263, %240, %cst_132 {dimension_numbers = #tpu.dot_dimension_numbers<[1], [1], [0], [0], [0, 0, 1, 0], [], []>} : vector<40x32xf32>, vector<40x32xf32>, vector<40x40xf32> -> vector<40x40xf32>
    %265 = arith.addf %264, %190 : vector<40x40xf32>
    %cst_133 = arith.constant dense<0xFF800000> : vector<40xf32>
    %266 = vector.multi_reduction <maximumf>, %265, %cst_133 [1] : vector<40x40xf32> to vector<40xf32>
    %267 = vector.shape_cast %266 : vector<40xf32> to vector<40x1xf32>
    %268 = vector.broadcast %267 : vector<40x1xf32> to vector<40x40xf32>
    %269 = arith.subf %265, %268 : vector<40x40xf32>
    %270 = math.exp %269 : vector<40x40xf32>
    %cst_134 = arith.constant dense<0.000000e+00> : vector<40xf32>
    %271 = vector.multi_reduction <add>, %270, %cst_134 [1] : vector<40x40xf32> to vector<40xf32>
    %272 = vector.shape_cast %271 : vector<40xf32> to vector<40x1xf32>
    %273 = tpu.reciprocal %272 {approx = true} : vector<40x1xf32> -> vector<40x1xf32>
    %274 = vector.broadcast %273 : vector<40x1xf32> to vector<40x40xf32>
    %275 = arith.mulf %270, %274 : vector<40x40xf32>
    %cst_135 = arith.constant dense<0.000000e+00> : vector<40x32xf32>
    %276 = tpu.matmul %275, %261, %cst_135 {dimension_numbers = #tpu.dot_dimension_numbers<[1], [0], [0], [1], [0, 0, 1, 1], [], []>} : vector<40x40xf32>, vector<40x32xf32>, vector<40x32xf32> -> vector<40x32xf32>
    %277 = arith.addf %189, %276 : vector<40x32xf32>
    %cst_136 = arith.constant dense<0.000000e+00> : vector<40xf32>
    %278 = vector.multi_reduction <add>, %277, %cst_136 [1] : vector<40x32xf32> to vector<40xf32>
    %279 = vector.shape_cast %278 : vector<40xf32> to vector<40x1xf32>
    %cst_137 = arith.constant 3.200000e+01 : f32
    %280 = vector.broadcast %cst_137 : f32 to vector<40x1xf32>
    %281 = arith.divf %279, %280 : vector<40x1xf32>
    %282 = vector.broadcast %281 : vector<40x1xf32> to vector<40x32xf32>
    %283 = arith.subf %277, %282 : vector<40x32xf32>
    %284 = arith.mulf %283, %283 : vector<40x32xf32>
    %cst_138 = arith.constant dense<0.000000e+00> : vector<40xf32>
    %285 = vector.multi_reduction <add>, %284, %cst_138 [1] : vector<40x32xf32> to vector<40xf32>
    %286 = vector.shape_cast %285 : vector<40xf32> to vector<40x1xf32>
    %cst_139 = arith.constant 0.0322580636 : f32
    %287 = vector.broadcast %cst_139 : f32 to vector<40x1xf32>
    %288 = arith.mulf %286, %287 : vector<40x1xf32>
    %289 = math.sqrt %288 : vector<40x1xf32>
    %cst_140 = arith.constant 9.99999997E-7 : f32
    %290 = vector.broadcast %cst_140 : f32 to vector<40x1xf32>
    %291 = arith.addf %289, %290 : vector<40x1xf32>
    %292 = tpu.reciprocal %291 {approx = true} : vector<40x1xf32> -> vector<40x1xf32>
    %293 = vector.broadcast %292 : vector<40x1xf32> to vector<40x32xf32>
    %294 = arith.mulf %283, %293 : vector<40x32xf32>
    %295 = vector.broadcast %196 : vector<1x32xf32> to vector<40x32xf32>
    %296 = arith.mulf %295, %294 : vector<40x32xf32>
    %297 = vector.broadcast %198 : vector<1x32xf32> to vector<40x32xf32>
    %298 = arith.addf %296, %297 : vector<40x32xf32>
    %c1_141 = arith.constant 1 : index
    %c0_142 = arith.constant 0 : index
    %c0_143 = arith.constant 0 : index
    %299 = vector.load %arg28[%c1_141, %c0_142, %c0_143] : memref<3x32x512xf32, #tpu.memory_space<vmem>>, vector<1x32x512xf32>
    %300 = vector.shape_cast %299 : vector<1x32x512xf32> to vector<32x512xf32>
    %cst_144 = arith.constant dense<0.000000e+00> : vector<40x512xf32>
    %301 = tpu.matmul %298, %300, %cst_144 {dimension_numbers = #tpu.dot_dimension_numbers<[1], [0], [0], [1], [0, 0, 1, 1], [], []>} : vector<40x32xf32>, vector<32x512xf32>, vector<40x512xf32> -> vector<40x512xf32>
    %c1_145 = arith.constant 1 : index
    %c0_146 = arith.constant 0 : index
    %c0_147 = arith.constant 0 : index
    %302 = vector.load %arg29[%c1_145, %c0_146, %c0_147] : memref<3x1x512xf32, #tpu.memory_space<vmem>>, vector<1x1x512xf32>
    %303 = vector.shape_cast %302 : vector<1x1x512xf32> to vector<1x512xf32>
    %304 = vector.broadcast %303 : vector<1x512xf32> to vector<40x512xf32>
    %305 = arith.addf %301, %304 : vector<40x512xf32>
    %cst_148 = arith.constant 0.000000e+00 : f32
    %306 = vector.broadcast %cst_148 : f32 to vector<40x512xf32>
    %307 = arith.maximumf %305, %306 : vector<40x512xf32>
    %c1_149 = arith.constant 1 : index
    %c0_150 = arith.constant 0 : index
    %c0_151 = arith.constant 0 : index
    %308 = vector.load %arg30[%c1_149, %c0_150, %c0_151] : memref<3x512x32xf32, #tpu.memory_space<vmem>>, vector<1x512x32xf32>
    %309 = vector.shape_cast %308 : vector<1x512x32xf32> to vector<512x32xf32>
    %cst_152 = arith.constant dense<0.000000e+00> : vector<40x32xf32>
    %310 = tpu.matmul %307, %309, %cst_152 {dimension_numbers = #tpu.dot_dimension_numbers<[1], [0], [0], [1], [0, 0, 1, 1], [], []>} : vector<40x512xf32>, vector<512x32xf32>, vector<40x32xf32> -> vector<40x32xf32>
    %311 = arith.addf %277, %310 : vector<40x32xf32>
    %c1_153 = arith.constant 1 : index
    %c0_154 = arith.constant 0 : index
    %c0_155 = arith.constant 0 : index
    %312 = vector.load %arg31[%c1_153, %c0_154, %c0_155] : memref<3x1x32xf32, #tpu.memory_space<vmem>>, vector<1x1x32xf32>
    %313 = vector.shape_cast %312 : vector<1x1x32xf32> to vector<1x32xf32>
    %314 = vector.broadcast %313 : vector<1x32xf32> to vector<40x32xf32>
    %315 = arith.addf %311, %314 : vector<40x32xf32>
    %c0_156 = arith.constant 0 : index
    %c0_157 = arith.constant 0 : index
    %316 = vector.load %arg12[%c0_156, %c0_157] : memref<40x40xf32, #tpu.memory_space<vmem>>, vector<40x40xf32>
    %c2 = arith.constant 2 : index
    %c0_158 = arith.constant 0 : index
    %c0_159 = arith.constant 0 : index
    %317 = vector.load %arg26[%c2, %c0_158, %c0_159] : memref<3x2x32xf32, #tpu.memory_space<vmem>>, vector<1x2x32xf32>
    %318 = vector.shape_cast %317 : vector<1x2x32xf32> to vector<2x32xf32>
    %c2_160 = arith.constant 2 : index
    %c0_161 = arith.constant 0 : index
    %c0_162 = arith.constant 0 : index
    %319 = vector.load %arg27[%c2_160, %c0_161, %c0_162] : memref<3x2x32xf32, #tpu.memory_space<vmem>>, vector<1x2x32xf32>
    %320 = vector.shape_cast %319 : vector<1x2x32xf32> to vector<2x32xf32>
    %321 = vector.extract_strided_slice %318 {offsets = [0, 0], sizes = [1, 32], strides = [1, 1]} : vector<2x32xf32> to vector<1x32xf32>
    %322 = vector.extract_strided_slice %318 {offsets = [1, 0], sizes = [1, 32], strides = [1, 1]} : vector<2x32xf32> to vector<1x32xf32>
    %323 = vector.extract_strided_slice %320 {offsets = [0, 0], sizes = [1, 32], strides = [1, 1]} : vector<2x32xf32> to vector<1x32xf32>
    %324 = vector.extract_strided_slice %320 {offsets = [1, 0], sizes = [1, 32], strides = [1, 1]} : vector<2x32xf32> to vector<1x32xf32>
    %cst_163 = arith.constant dense<0.000000e+00> : vector<40xf32>
    %325 = vector.multi_reduction <add>, %315, %cst_163 [1] : vector<40x32xf32> to vector<40xf32>
    %326 = vector.shape_cast %325 : vector<40xf32> to vector<40x1xf32>
    %cst_164 = arith.constant 3.200000e+01 : f32
    %327 = vector.broadcast %cst_164 : f32 to vector<40x1xf32>
    %328 = arith.divf %326, %327 : vector<40x1xf32>
    %329 = vector.broadcast %328 : vector<40x1xf32> to vector<40x32xf32>
    %330 = arith.subf %315, %329 : vector<40x32xf32>
    %331 = arith.mulf %330, %330 : vector<40x32xf32>
    %cst_165 = arith.constant dense<0.000000e+00> : vector<40xf32>
    %332 = vector.multi_reduction <add>, %331, %cst_165 [1] : vector<40x32xf32> to vector<40xf32>
    %333 = vector.shape_cast %332 : vector<40xf32> to vector<40x1xf32>
    %cst_166 = arith.constant 0.0322580636 : f32
    %334 = vector.broadcast %cst_166 : f32 to vector<40x1xf32>
    %335 = arith.mulf %333, %334 : vector<40x1xf32>
    %336 = math.sqrt %335 : vector<40x1xf32>
    %cst_167 = arith.constant 9.99999997E-7 : f32
    %337 = vector.broadcast %cst_167 : f32 to vector<40x1xf32>
    %338 = arith.addf %336, %337 : vector<40x1xf32>
    %339 = tpu.reciprocal %338 {approx = true} : vector<40x1xf32> -> vector<40x1xf32>
    %340 = vector.broadcast %339 : vector<40x1xf32> to vector<40x32xf32>
    %341 = arith.mulf %330, %340 : vector<40x32xf32>
    %342 = vector.broadcast %321 : vector<1x32xf32> to vector<40x32xf32>
    %343 = arith.mulf %342, %341 : vector<40x32xf32>
    %344 = vector.broadcast %323 : vector<1x32xf32> to vector<40x32xf32>
    %345 = arith.addf %343, %344 : vector<40x32xf32>
    %cst_168 = arith.constant dense<0.000000e+00> : vector<40xf32>
    %346 = vector.multi_reduction <add>, %315, %cst_168 [1] : vector<40x32xf32> to vector<40xf32>
    %347 = vector.shape_cast %346 : vector<40xf32> to vector<40x1xf32>
    %cst_169 = arith.constant 3.200000e+01 : f32
    %348 = vector.broadcast %cst_169 : f32 to vector<40x1xf32>
    %349 = arith.divf %347, %348 : vector<40x1xf32>
    %350 = vector.broadcast %349 : vector<40x1xf32> to vector<40x32xf32>
    %351 = arith.subf %315, %350 : vector<40x32xf32>
    %352 = arith.mulf %351, %351 : vector<40x32xf32>
    %cst_170 = arith.constant dense<0.000000e+00> : vector<40xf32>
    %353 = vector.multi_reduction <add>, %352, %cst_170 [1] : vector<40x32xf32> to vector<40xf32>
    %354 = vector.shape_cast %353 : vector<40xf32> to vector<40x1xf32>
    %cst_171 = arith.constant 0.0322580636 : f32
    %355 = vector.broadcast %cst_171 : f32 to vector<40x1xf32>
    %356 = arith.mulf %354, %355 : vector<40x1xf32>
    %357 = math.sqrt %356 : vector<40x1xf32>
    %cst_172 = arith.constant 9.99999997E-7 : f32
    %358 = vector.broadcast %cst_172 : f32 to vector<40x1xf32>
    %359 = arith.addf %357, %358 : vector<40x1xf32>
    %360 = tpu.reciprocal %359 {approx = true} : vector<40x1xf32> -> vector<40x1xf32>
    %361 = vector.broadcast %360 : vector<40x1xf32> to vector<40x32xf32>
    %362 = arith.mulf %351, %361 : vector<40x32xf32>
    %363 = vector.broadcast %321 : vector<1x32xf32> to vector<40x32xf32>
    %364 = arith.mulf %363, %362 : vector<40x32xf32>
    %365 = vector.broadcast %323 : vector<1x32xf32> to vector<40x32xf32>
    %366 = arith.addf %364, %365 : vector<40x32xf32>
    %cst_173 = arith.constant dense<0.000000e+00> : vector<40xf32>
    %367 = vector.multi_reduction <add>, %315, %cst_173 [1] : vector<40x32xf32> to vector<40xf32>
    %368 = vector.shape_cast %367 : vector<40xf32> to vector<40x1xf32>
    %cst_174 = arith.constant 3.200000e+01 : f32
    %369 = vector.broadcast %cst_174 : f32 to vector<40x1xf32>
    %370 = arith.divf %368, %369 : vector<40x1xf32>
    %371 = vector.broadcast %370 : vector<40x1xf32> to vector<40x32xf32>
    %372 = arith.subf %315, %371 : vector<40x32xf32>
    %373 = arith.mulf %372, %372 : vector<40x32xf32>
    %cst_175 = arith.constant dense<0.000000e+00> : vector<40xf32>
    %374 = vector.multi_reduction <add>, %373, %cst_175 [1] : vector<40x32xf32> to vector<40xf32>
    %375 = vector.shape_cast %374 : vector<40xf32> to vector<40x1xf32>
    %cst_176 = arith.constant 0.0322580636 : f32
    %376 = vector.broadcast %cst_176 : f32 to vector<40x1xf32>
    %377 = arith.mulf %375, %376 : vector<40x1xf32>
    %378 = math.sqrt %377 : vector<40x1xf32>
    %cst_177 = arith.constant 9.99999997E-7 : f32
    %379 = vector.broadcast %cst_177 : f32 to vector<40x1xf32>
    %380 = arith.addf %378, %379 : vector<40x1xf32>
    %381 = tpu.reciprocal %380 {approx = true} : vector<40x1xf32> -> vector<40x1xf32>
    %382 = vector.broadcast %381 : vector<40x1xf32> to vector<40x32xf32>
    %383 = arith.mulf %372, %382 : vector<40x32xf32>
    %384 = vector.broadcast %321 : vector<1x32xf32> to vector<40x32xf32>
    %385 = arith.mulf %384, %383 : vector<40x32xf32>
    %386 = vector.broadcast %323 : vector<1x32xf32> to vector<40x32xf32>
    %387 = arith.addf %385, %386 : vector<40x32xf32>
    %cst_178 = arith.constant 0.176776692 : f32
    %388 = vector.broadcast %cst_178 : f32 to vector<40x32xf32>
    %389 = arith.mulf %345, %388 : vector<40x32xf32>
    %cst_179 = arith.constant dense<0.000000e+00> : vector<40x40xf32>
    %390 = tpu.matmul %389, %366, %cst_179 {dimension_numbers = #tpu.dot_dimension_numbers<[1], [1], [0], [0], [0, 0, 1, 0], [], []>} : vector<40x32xf32>, vector<40x32xf32>, vector<40x40xf32> -> vector<40x40xf32>
    %391 = arith.addf %390, %316 : vector<40x40xf32>
    %cst_180 = arith.constant dense<0xFF800000> : vector<40xf32>
    %392 = vector.multi_reduction <maximumf>, %391, %cst_180 [1] : vector<40x40xf32> to vector<40xf32>
    %393 = vector.shape_cast %392 : vector<40xf32> to vector<40x1xf32>
    %394 = vector.broadcast %393 : vector<40x1xf32> to vector<40x40xf32>
    %395 = arith.subf %391, %394 : vector<40x40xf32>
    %396 = math.exp %395 : vector<40x40xf32>
    %cst_181 = arith.constant dense<0.000000e+00> : vector<40xf32>
    %397 = vector.multi_reduction <add>, %396, %cst_181 [1] : vector<40x40xf32> to vector<40xf32>
    %398 = vector.shape_cast %397 : vector<40xf32> to vector<40x1xf32>
    %399 = tpu.reciprocal %398 {approx = true} : vector<40x1xf32> -> vector<40x1xf32>
    %400 = vector.broadcast %399 : vector<40x1xf32> to vector<40x40xf32>
    %401 = arith.mulf %396, %400 : vector<40x40xf32>
    %cst_182 = arith.constant dense<0.000000e+00> : vector<40x32xf32>
    %402 = tpu.matmul %401, %387, %cst_182 {dimension_numbers = #tpu.dot_dimension_numbers<[1], [0], [0], [1], [0, 0, 1, 1], [], []>} : vector<40x40xf32>, vector<40x32xf32>, vector<40x32xf32> -> vector<40x32xf32>
    %403 = arith.addf %315, %402 : vector<40x32xf32>
    %cst_183 = arith.constant dense<0.000000e+00> : vector<40xf32>
    %404 = vector.multi_reduction <add>, %403, %cst_183 [1] : vector<40x32xf32> to vector<40xf32>
    %405 = vector.shape_cast %404 : vector<40xf32> to vector<40x1xf32>
    %cst_184 = arith.constant 3.200000e+01 : f32
    %406 = vector.broadcast %cst_184 : f32 to vector<40x1xf32>
    %407 = arith.divf %405, %406 : vector<40x1xf32>
    %408 = vector.broadcast %407 : vector<40x1xf32> to vector<40x32xf32>
    %409 = arith.subf %403, %408 : vector<40x32xf32>
    %410 = arith.mulf %409, %409 : vector<40x32xf32>
    %cst_185 = arith.constant dense<0.000000e+00> : vector<40xf32>
    %411 = vector.multi_reduction <add>, %410, %cst_185 [1] : vector<40x32xf32> to vector<40xf32>
    %412 = vector.shape_cast %411 : vector<40xf32> to vector<40x1xf32>
    %cst_186 = arith.constant 0.0322580636 : f32
    %413 = vector.broadcast %cst_186 : f32 to vector<40x1xf32>
    %414 = arith.mulf %412, %413 : vector<40x1xf32>
    %415 = math.sqrt %414 : vector<40x1xf32>
    %cst_187 = arith.constant 9.99999997E-7 : f32
    %416 = vector.broadcast %cst_187 : f32 to vector<40x1xf32>
    %417 = arith.addf %415, %416 : vector<40x1xf32>
    %418 = tpu.reciprocal %417 {approx = true} : vector<40x1xf32> -> vector<40x1xf32>
    %419 = vector.broadcast %418 : vector<40x1xf32> to vector<40x32xf32>
    %420 = arith.mulf %409, %419 : vector<40x32xf32>
    %421 = vector.broadcast %322 : vector<1x32xf32> to vector<40x32xf32>
    %422 = arith.mulf %421, %420 : vector<40x32xf32>
    %423 = vector.broadcast %324 : vector<1x32xf32> to vector<40x32xf32>
    %424 = arith.addf %422, %423 : vector<40x32xf32>
    %c2_188 = arith.constant 2 : index
    %c0_189 = arith.constant 0 : index
    %c0_190 = arith.constant 0 : index
    %425 = vector.load %arg28[%c2_188, %c0_189, %c0_190] : memref<3x32x512xf32, #tpu.memory_space<vmem>>, vector<1x32x512xf32>
    %426 = vector.shape_cast %425 : vector<1x32x512xf32> to vector<32x512xf32>
    %cst_191 = arith.constant dense<0.000000e+00> : vector<40x512xf32>
    %427 = tpu.matmul %424, %426, %cst_191 {dimension_numbers = #tpu.dot_dimension_numbers<[1], [0], [0], [1], [0, 0, 1, 1], [], []>} : vector<40x32xf32>, vector<32x512xf32>, vector<40x512xf32> -> vector<40x512xf32>
    %c2_192 = arith.constant 2 : index
    %c0_193 = arith.constant 0 : index
    %c0_194 = arith.constant 0 : index
    %428 = vector.load %arg29[%c2_192, %c0_193, %c0_194] : memref<3x1x512xf32, #tpu.memory_space<vmem>>, vector<1x1x512xf32>
    %429 = vector.shape_cast %428 : vector<1x1x512xf32> to vector<1x512xf32>
    %430 = vector.broadcast %429 : vector<1x512xf32> to vector<40x512xf32>
    %431 = arith.addf %427, %430 : vector<40x512xf32>
    %cst_195 = arith.constant 0.000000e+00 : f32
    %432 = vector.broadcast %cst_195 : f32 to vector<40x512xf32>
    %433 = arith.maximumf %431, %432 : vector<40x512xf32>
    %c2_196 = arith.constant 2 : index
    %c0_197 = arith.constant 0 : index
    %c0_198 = arith.constant 0 : index
    %434 = vector.load %arg30[%c2_196, %c0_197, %c0_198] : memref<3x512x32xf32, #tpu.memory_space<vmem>>, vector<1x512x32xf32>
    %435 = vector.shape_cast %434 : vector<1x512x32xf32> to vector<512x32xf32>
    %cst_199 = arith.constant dense<0.000000e+00> : vector<40x32xf32>
    %436 = tpu.matmul %433, %435, %cst_199 {dimension_numbers = #tpu.dot_dimension_numbers<[1], [0], [0], [1], [0, 0, 1, 1], [], []>} : vector<40x512xf32>, vector<512x32xf32>, vector<40x32xf32> -> vector<40x32xf32>
    %437 = arith.addf %403, %436 : vector<40x32xf32>
    %c2_200 = arith.constant 2 : index
    %c0_201 = arith.constant 0 : index
    %c0_202 = arith.constant 0 : index
    %438 = vector.load %arg31[%c2_200, %c0_201, %c0_202] : memref<3x1x32xf32, #tpu.memory_space<vmem>>, vector<1x1x32xf32>
    %439 = vector.shape_cast %438 : vector<1x1x32xf32> to vector<1x32xf32>
    %440 = vector.broadcast %439 : vector<1x32xf32> to vector<40x32xf32>
    %441 = arith.addf %437, %440 : vector<40x32xf32>
    %cst_203 = arith.constant 0.000000e+00 : f32
    %442 = vector.broadcast %cst_203 : f32 to vector<40x32xf32>
    %443 = arith.maximumf %441, %442 : vector<40x32xf32>
    %c0_204 = arith.constant 0 : index
    %c0_205 = arith.constant 0 : index
    %444 = vector.load %arg32[%c0_204, %c0_205] : memref<32x8xf32, #tpu.memory_space<vmem>>, vector<32x8xf32>
    %cst_206 = arith.constant dense<0.000000e+00> : vector<40x8xf32>
    %445 = tpu.matmul %443, %444, %cst_206 {dimension_numbers = #tpu.dot_dimension_numbers<[1], [0], [0], [1], [0, 0, 1, 1], [], []>} : vector<40x32xf32>, vector<32x8xf32>, vector<40x8xf32> -> vector<40x8xf32>
    %c0_207 = arith.constant 0 : index
    %c0_208 = arith.constant 0 : index
    %446 = vector.load %arg33[%c0_207, %c0_208] : memref<1x8xf32, #tpu.memory_space<vmem>>, vector<1x8xf32>
    %447 = vector.broadcast %446 : vector<1x8xf32> to vector<40x8xf32>
    %448 = arith.addf %445, %447 : vector<40x8xf32>
    %c0_209 = arith.constant 0 : index
    %c0_210 = arith.constant 0 : index
    %449 = vector.load %arg9[%c0_209, %c0_210] : memref<40x5xf32, #tpu.memory_space<vmem>>, vector<40x5xf32>
    %c0_211 = arith.constant 0 : index
    %c0_212 = arith.constant 0 : index
    %450 = vector.load %arg34[%c0_211, %c0_212] : memref<5x1xf32, #tpu.memory_space<vmem>>, vector<5x1xf32>
    %cst_213 = arith.constant dense<0.000000e+00> : vector<40x1xf32>
    %451 = tpu.matmul %449, %450, %cst_213 {dimension_numbers = #tpu.dot_dimension_numbers<[1], [0], [0], [1], [0, 0, 1, 1], [], []>} : vector<40x5xf32>, vector<5x1xf32>, vector<40x1xf32> -> vector<40x1xf32>
    %c0_214 = arith.constant 0 : index
    %c0_215 = arith.constant 0 : index
    %452 = vector.load %arg10[%c0_214, %c0_215] : memref<8x40xf32, #tpu.memory_space<vmem>>, vector<8x40xf32>
    %453 = vector.broadcast %451 : vector<40x1xf32> to vector<40x8xf32>
    %454 = arith.mulf %448, %453 : vector<40x8xf32>
    %cst_216 = arith.constant dense<0.000000e+00> : vector<8x8xf32>
    %455 = tpu.matmul %452, %454, %cst_216 {dimension_numbers = #tpu.dot_dimension_numbers<[1], [0], [0], [1], [0, 0, 1, 1], [], []>} : vector<8x40xf32>, vector<40x8xf32>, vector<8x8xf32> -> vector<8x8xf32>
    %c0_217 = arith.constant 0 : index
    %c0_218 = arith.constant 0 : index
    %456 = vector.load %arg35[%c0_217, %c0_218] : memref<1x1xf32, #tpu.memory_space<vmem>>, vector<1x1xf32>
    %457 = vector.broadcast %456 : vector<1x1xf32> to vector<8x8xf32>
    %458 = arith.addf %455, %457 : vector<8x8xf32>
    %c0_219 = arith.constant 0 : index
    %c0_220 = arith.constant 0 : index
    %459 = vector.load %arg36[%c0_219, %c0_220] : memref<8x8xf32, #tpu.memory_space<vmem>>, vector<8x8xf32>
    tpu.vector_store %arg36[%c0_219, %c0_220], %458 {strides = array<i32>} : memref<8x8xf32, #tpu.memory_space<vmem>>, vector<8x8xf32>,
    return
  }
  func.func @transform_0(%arg0: i32) -> (i32, i32) {
    %c0_i32 = arith.constant 0 : i32
    %c0_i32_0 = arith.constant 0 : i32
    %c0_i32_1 = arith.constant 0 : i32
    return %c0_i32, %c0_i32_0 : i32, i32
  }
  func.func @transform_1(%arg0: i32) -> (i32, i32) {
    %c0_i32 = arith.constant 0 : i32
    %c0_i32_0 = arith.constant 0 : i32
    %c0_i32_1 = arith.constant 0 : i32
    return %c0_i32, %c0_i32_0 : i32, i32
  }
  func.func @transform_2(%arg0: i32) -> (i32, i32) {
    %c0_i32 = arith.constant 0 : i32
    %c0_i32_0 = arith.constant 0 : i32
    %c0_i32_1 = arith.constant 0 : i32
    return %c0_i32, %c0_i32_0 : i32, i32
  }
  func.func @transform_3(%arg0: i32) -> (i32, i32) {
    %c0_i32 = arith.constant 0 : i32
    %c0_i32_0 = arith.constant 0 : i32
    %c0_i32_1 = arith.constant 0 : i32
    return %c0_i32, %c0_i32_0 : i32, i32
  }
  func.func @transform_4(%arg0: i32) -> (i32, i32) {
    %c0_i32 = arith.constant 0 : i32
    %c0_i32_0 = arith.constant 0 : i32
    %c0_i32_1 = arith.constant 0 : i32
    return %c0_i32, %c0_i32_0 : i32, i32
  }
  func.func @transform_5(%arg0: i32) -> (i32, i32) {
    %c0_i32 = arith.constant 0 : i32
    %c0_i32_0 = arith.constant 0 : i32
    %c0_i32_1 = arith.constant 0 : i32
    return %c0_i32, %c0_i32_0 : i32, i32
  }
  func.func @transform_6(%arg0: i32) -> (i32, i32) {
    %c0_i32 = arith.constant 0 : i32
    %c0_i32_0 = arith.constant 0 : i32
    %c0_i32_1 = arith.constant 0 : i32
    return %c0_i32, %c0_i32_0 : i32, i32
  }
  func.func @transform_7(%arg0: i32) -> (i32, i32) {
    %c0_i32 = arith.constant 0 : i32
    %c0_i32_0 = arith.constant 0 : i32
    %c0_i32_1 = arith.constant 0 : i32
    return %c0_i32, %c0_i32_0 : i32, i32
  }
  func.func @transform_8(%arg0: i32) -> (i32, i32) {
    %c0_i32 = arith.constant 0 : i32
    %c0_i32_0 = arith.constant 0 : i32
    %c0_i32_1 = arith.constant 0 : i32
    return %c0_i32, %c0_i32_0 : i32, i32
  }
  func.func @transform_9(%arg0: i32) -> (i32, i32) {
    %c0_i32 = arith.constant 0 : i32
    %c0_i32_0 = arith.constant 0 : i32
    %c0_i32_1 = arith.constant 0 : i32
    return %c0_i32, %c0_i32_0 : i32, i32
  }
  func.func @transform_10(%arg0: i32) -> (i32, i32) {
    %c0_i32 = arith.constant 0 : i32
    %c0_i32_0 = arith.constant 0 : i32
    %c0_i32_1 = arith.constant 0 : i32
    return %c0_i32, %c0_i32_0 : i32, i32
  }
  func.func @transform_11(%arg0: i32) -> (i32, i32) {
    %c0_i32 = arith.constant 0 : i32
    %c0_i32_0 = arith.constant 0 : i32
    %c0_i32_1 = arith.constant 0 : i32
    return %c0_i32, %c0_i32_0 : i32, i32
  }
  func.func @transform_12(%arg0: i32) -> (i32, i32) {
    %c0_i32 = arith.constant 0 : i32
    %c0_i32_0 = arith.constant 0 : i32
    %c0_i32_1 = arith.constant 0 : i32
    return %c0_i32, %c0_i32_0 : i32, i32
  }
  func.func @transform_13(%arg0: i32) -> (i32, i32) {
    %c0_i32 = arith.constant 0 : i32
    %c0_i32_0 = arith.constant 0 : i32
    %c0_i32_1 = arith.constant 0 : i32
    return %c0_i32, %c0_i32_0 : i32, i32
  }
  func.func @transform_14(%arg0: i32) -> (i32, i32) {
    %c0_i32 = arith.constant 0 : i32
    %c0_i32_0 = arith.constant 0 : i32
    %c0_i32_1 = arith.constant 0 : i32
    return %c0_i32, %c0_i32_0 : i32, i32
  }
  func.func @transform_15(%arg0: i32) -> (i32, i32) {
    %c0_i32 = arith.constant 0 : i32
    %c0_i32_0 = arith.constant 0 : i32
    %c0_i32_1 = arith.constant 0 : i32
    return %c0_i32, %c0_i32_0 : i32, i32
  }
  func.func @transform_16(%arg0: i32) -> (i32, i32) {
    %c0_i32 = arith.constant 0 : i32
    %c0_i32_0 = arith.constant 0 : i32
    %c0_i32_1 = arith.constant 0 : i32
    return %c0_i32, %c0_i32_0 : i32, i32
  }
  func.func @transform_17(%arg0: i32) -> (i32, i32) {
    %c0_i32 = arith.constant 0 : i32
    %c0_i32_0 = arith.constant 0 : i32
    %c0_i32_1 = arith.constant 0 : i32
    return %c0_i32, %c0_i32_0 : i32, i32
  }
  func.func @transform_18(%arg0: i32) -> (i32, i32) {
    %c0_i32 = arith.constant 0 : i32
    %c0_i32_0 = arith.constant 0 : i32
    %c0_i32_1 = arith.constant 0 : i32
    return %c0_i32, %c0_i32_0 : i32, i32
  }
  func.func @transform_19(%arg0: i32) -> (i32, i32) {
    %c0_i32 = arith.constant 0 : i32
    %c0_i32_0 = arith.constant 0 : i32
    %c0_i32_1 = arith.constant 0 : i32
    return %c0_i32, %c0_i32_0 : i32, i32
  }
  func.func @transform_20(%arg0: i32) -> (i32, i32) {
    %c0_i32 = arith.constant 0 : i32
    %c0_i32_0 = arith.constant 0 : i32
    %c0_i32_1 = arith.constant 0 : i32
    return %c0_i32, %c0_i32_0 : i32, i32
  }
  func.func @transform_21(%arg0: i32) -> (i32, i32) {
    %c0_i32 = arith.constant 0 : i32
    %c0_i32_0 = arith.constant 0 : i32
    %c0_i32_1 = arith.constant 0 : i32
    return %c0_i32, %c0_i32_0 : i32, i32
  }
  func.func @transform_22(%arg0: i32) -> (i32, i32) {
    %c0_i32 = arith.constant 0 : i32
    %c0_i32_0 = arith.constant 0 : i32
    %c0_i32_1 = arith.constant 0 : i32
    return %c0_i32, %c0_i32_0 : i32, i32
  }
  func.func @transform_23(%arg0: i32) -> (i32, i32) {
    %c0_i32 = arith.constant 0 : i32
    %c0_i32_0 = arith.constant 0 : i32
    %c0_i32_1 = arith.constant 0 : i32
    return %c0_i32, %c0_i32_0 : i32, i32
  }
  func.func @transform_24(%arg0: i32) -> (i32, i32) {
    %c0_i32 = arith.constant 0 : i32
    %c0_i32_0 = arith.constant 0 : i32
    %c0_i32_1 = arith.constant 0 : i32
    return %c0_i32, %c0_i32_0 : i32, i32
  }
  func.func @transform_25(%arg0: i32) -> (i32, i32, i32) {
    %c0_i32 = arith.constant 0 : i32
    %c0_i32_0 = arith.constant 0 : i32
    %c0_i32_1 = arith.constant 0 : i32
    %c0_i32_2 = arith.constant 0 : i32
    return %c0_i32, %c0_i32_0, %c0_i32_1 : i32, i32, i32
  }
  func.func @transform_26(%arg0: i32) -> (i32, i32, i32) {
    %c0_i32 = arith.constant 0 : i32
    %c0_i32_0 = arith.constant 0 : i32
    %c0_i32_1 = arith.constant 0 : i32
    %c0_i32_2 = arith.constant 0 : i32
    return %c0_i32, %c0_i32_0, %c0_i32_1 : i32, i32, i32
  }
  func.func @transform_27(%arg0: i32) -> (i32, i32, i32) {
    %c0_i32 = arith.constant 0 : i32
    %c0_i32_0 = arith.constant 0 : i32
    %c0_i32_1 = arith.constant 0 : i32
    %c0_i32_2 = arith.constant 0 : i32
    return %c0_i32, %c0_i32_0, %c0_i32_1 : i32, i32, i32
  }
  func.func @transform_28(%arg0: i32) -> (i32, i32, i32) {
    %c0_i32 = arith.constant 0 : i32
    %c0_i32_0 = arith.constant 0 : i32
    %c0_i32_1 = arith.constant 0 : i32
    %c0_i32_2 = arith.constant 0 : i32
    return %c0_i32, %c0_i32_0, %c0_i32_1 : i32, i32, i32
  }
  func.func @transform_29(%arg0: i32) -> (i32, i32, i32) {
    %c0_i32 = arith.constant 0 : i32
    %c0_i32_0 = arith.constant 0 : i32
    %c0_i32_1 = arith.constant 0 : i32
    %c0_i32_2 = arith.constant 0 : i32
    return %c0_i32, %c0_i32_0, %c0_i32_1 : i32, i32, i32
  }
  func.func @transform_30(%arg0: i32) -> (i32, i32, i32) {
    %c0_i32 = arith.constant 0 : i32
    %c0_i32_0 = arith.constant 0 : i32
    %c0_i32_1 = arith.constant 0 : i32
    %c0_i32_2 = arith.constant 0 : i32
    return %c0_i32, %c0_i32_0, %c0_i32_1 : i32, i32, i32
  }
  func.func @transform_31(%arg0: i32) -> (i32, i32) {
    %c0_i32 = arith.constant 0 : i32
    %c0_i32_0 = arith.constant 0 : i32
    %c0_i32_1 = arith.constant 0 : i32
    return %c0_i32, %c0_i32_0 : i32, i32
  }
  func.func @transform_32(%arg0: i32) -> (i32, i32) {
    %c0_i32 = arith.constant 0 : i32
    %c0_i32_0 = arith.constant 0 : i32
    %c0_i32_1 = arith.constant 0 : i32
    return %c0_i32, %c0_i32_0 : i32, i32
  }
  func.func @transform_33(%arg0: i32) -> (i32, i32) {
    %c0_i32 = arith.constant 0 : i32
    %c0_i32_0 = arith.constant 0 : i32
    %c0_i32_1 = arith.constant 0 : i32
    return %c0_i32, %c0_i32_0 : i32, i32
  }
  func.func @transform_34(%arg0: i32) -> (i32, i32) {
    %c0_i32 = arith.constant 0 : i32
    %c0_i32_0 = arith.constant 0 : i32
    %c0_i32_1 = arith.constant 0 : i32
    return %c0_i32, %c0_i32_0 : i32, i32
  }
  func.func @transform_35(%arg0: i32) -> (i32, i32) {
    %c0_i32 = arith.constant 0 : i32
    %c0_i32_0 = arith.constant 0 : i32
    %c0_i32_1 = arith.constant 0 : i32
    return %c0_i32, %c0_i32_0 : i32, i32
  }
}

</mosaic_0001>

<llo_original>
// kernel: tpu_custom_call.1
$region0: #{tpu_custom_call.1}
  #allocation0 [shape = 'u32[]', space=smem, size = 0x4, offset = 0x4, fixed_abs, tag = 'smem constant byte address 0x4 - core index']
  #allocation1 [shape = 'u32[72,128]{1,0:T(1,128)}', space=vmem, size = 0x9000, scoped, tag = 'internal scratch']
  #allocation2 [shape = 'f32[1,1]{1,0:T(1,128)S(1)}', space=vmem, size = 0x200, scoped, tag = 'scoped memory for tpu_custom_call.1']
  %s0 = inlined_call_operand.smem [shape: u32[36], index: -1, kind: input, shape index: {}]
  %s1 = sld [smem:[%s0]]
  %s2 = scalar_lea.smem %s0, 1
  %s3 = sld [smem:[%s2]]
  %s4 = scalar_lea.smem %s0, 2
  %s5 = sld [smem:[%s4]]
  %s6 = scalar_lea.smem %s0, 3
  %s7 = sld [smem:[%s6]]
  %s8 = scalar_lea.smem %s0, 4
  %s9 = sld [smem:[%s8]]
  %s10 = scalar_lea.smem %s0, 5
  %s11 = sld [smem:[%s10]]
  %s12 = scalar_lea.smem %s0, 6
  %s13 = sld [smem:[%s12]]
  %s14 = scalar_lea.smem %s0, 7
  %s15 = sld [smem:[%s14]]
  %s16 = scalar_lea.smem %s0, 8
  %s17 = sld [smem:[%s16]]
  %s18 = scalar_lea.smem %s0, 9
  %s19 = sld [smem:[%s18]]
  %s20 = scalar_lea.smem %s0, 10
  %s21 = sld [smem:[%s20]]
  %s22 = scalar_lea.smem %s0, 11
  %s23 = sld [smem:[%s22]]
  %s24 = scalar_lea.smem %s0, 12
  %s25 = sld [smem:[%s24]]
  %s26 = scalar_lea.smem %s0, 13
  %s27 = sld [smem:[%s26]]
  %s28 = scalar_lea.smem %s0, 14
  %s29 = sld [smem:[%s28]]
  %s30 = scalar_lea.smem %s0, 15
  %s31 = sld [smem:[%s30]]
  %s32 = scalar_lea.smem %s0, 16
  %s33 = sld [smem:[%s32]]
  %s34 = scalar_lea.smem %s0, 17
  %s35 = sld [smem:[%s34]]
  %s36 = scalar_lea.smem %s0, 18
  %s37 = sld [smem:[%s36]]
  %s38 = scalar_lea.smem %s0, 19
  %s39 = sld [smem:[%s38]]
  %s40 = scalar_lea.smem %s0, 20
  %s41 = sld [smem:[%s40]]
  %s42 = scalar_lea.smem %s0, 21
  %s43 = sld [smem:[%s42]]
  %s44 = scalar_lea.smem %s0, 22
  %s45 = sld [smem:[%s44]]
  %s46 = scalar_lea.smem %s0, 23
  %s47 = sld [smem:[%s46]]
  %s48 = scalar_lea.smem %s0, 24
  %s49 = sld [smem:[%s48]]
  %s50 = scalar_lea.smem %s0, 25
  %s51 = sld [smem:[%s50]]
  %s52 = scalar_lea.smem %s0, 26
  %s53 = sld [smem:[%s52]]
  %s54 = scalar_lea.smem %s0, 27
  %s55 = sld [smem:[%s54]]
  %s56 = scalar_lea.smem %s0, 28
  %s57 = sld [smem:[%s56]]
  %s58 = scalar_lea.smem %s0, 29
  %s59 = sld [smem:[%s58]]
  %s60 = scalar_lea.smem %s0, 30
  %s61 = sld [smem:[%s60]]
  %s62 = scalar_lea.smem %s0, 31
  %s63 = sld [smem:[%s62]]
  %s64 = scalar_lea.smem %s0, 32
  %s65 = sld [smem:[%s64]]
  %s66 = scalar_lea.smem %s0, 33
  %s67 = sld [smem:[%s66]]
  %s68 = scalar_lea.smem %s0, 34
  %s69 = sld [smem:[%s68]]
  %s70 = scalar_lea.smem %s0, 35
  %s71 = sld [smem:[%s70]]
  %s72 = sld [smem:[#allocation0]]
  $region150: #{tpu_custom_call.1} parent=0
    _
  %s74 = ssub.s32 1, %s72
  %s75 = scalar_select 0, %s74, %s72
  %v76 = vstv %s69
  %77 = vst [vmem:[#allocation2] sm:$0x1] %v76
  $region1: #{tpu_custom_call.1} parent=0
    #allocation3 [shape = 'u8[4096]{0}', space=vmem, size = 0x1000, scoped, tag = 'output window, operand 0, single buffered']
    #allocation4 [shape = 's32[1]{0}', space=sflag, size = 0x4, scoped, tag = 'scoped memory for tpu_custom_call.1']
    %78 = vsyncpa [#allocation4], 0
    // Predicated region
    $region2: #{tpu_custom_call.1} parent=1 // pred_check
      _
    $region3: #{tpu_custom_call.1} parent=1 // pred_check_branch
      %80 = sbr.rel (0) target = $region5
    $region4: #{tpu_custom_call.1} parent=1 // pred_region
      _
    $region5: #{tpu_custom_call.1} parent=1 // pred_fallthru
      _
    // Predicated region
    $region6: #{tpu_custom_call.1} parent=1 // pred_check
      _
    $region7: #{tpu_custom_call.1} parent=1 // pred_check_branch
      %82 = sbr.rel (0) target = $region9
    $region8: #{tpu_custom_call.1} parent=1 // pred_region
      _
    $region9: #{tpu_custom_call.1} parent=1 // pred_fallthru
      _
    // Predicated region
    $region10: #{tpu_custom_call.1} parent=1 // pred_check
      _
    $region11: #{tpu_custom_call.1} parent=1 // pred_check_branch
      %84 = sbr.rel (0) target = $region13
    $region12: #{tpu_custom_call.1} parent=1 // pred_region
      _
    $region13: #{tpu_custom_call.1} parent=1 // pred_fallthru
      _
    // Predicated region
    $region14: #{tpu_custom_call.1} parent=1 // pred_check
      _
    $region15: #{tpu_custom_call.1} parent=1 // pred_check_branch
      %86 = sbr.rel (0) target = $region17
    $region16: #{tpu_custom_call.1} parent=1 // pred_region
      _
    $region17: #{tpu_custom_call.1} parent=1 // pred_fallthru
      _
    // Predicated region
    $region18: #{tpu_custom_call.1} parent=1 // pred_check
      _
    $region19: #{tpu_custom_call.1} parent=1 // pred_check_branch
      %88 = sbr.rel (0) target = $region21
    $region20: #{tpu_custom_call.1} parent=1 // pred_region
      _
    $region21: #{tpu_custom_call.1} parent=1 // pred_fallthru
      _
    // Predicated region
    $region22: #{tpu_custom_call.1} parent=1 // pred_check
      _
    $region23: #{tpu_custom_call.1} parent=1 // pred_check_branch
      %90 = sbr.rel (0) target = $region25
    $region24: #{tpu_custom_call.1} parent=1 // pred_region
      _
    $region25: #{tpu_custom_call.1} parent=1 // pred_fallthru
      _
    // Predicated region
    $region26: #{tpu_custom_call.1} parent=1 // pred_check
      _
    $region27: #{tpu_custom_call.1} parent=1 // pred_check_branch
      %92 = sbr.rel (0) target = $region29
    $region28: #{tpu_custom_call.1} parent=1 // pred_region
      _
    $region29: #{tpu_custom_call.1} parent=1 // pred_fallthru
      _
    // Predicated region
    $region30: #{tpu_custom_call.1} parent=1 // pred_check
      _
    $region31: #{tpu_custom_call.1} parent=1 // pred_check_branch
      %94 = sbr.rel (0) target = $region33
    $region32: #{tpu_custom_call.1} parent=1 // pred_region
      _
    $region33: #{tpu_custom_call.1} parent=1 // pred_fallthru
      _
    // Predicated region
    $region34: #{tpu_custom_call.1} parent=1 // pred_check
      _
    $region35: #{tpu_custom_call.1} parent=1 // pred_check_branch
      %96 = sbr.rel (0) target = $region37
    $region36: #{tpu_custom_call.1} parent=1 // pred_region
      _
    $region37: #{tpu_custom_call.1} parent=1 // pred_fallthru
      _
    // Predicated region
    $region38: #{tpu_custom_call.1} parent=1 // pred_check
      _
    $region39: #{tpu_custom_call.1} parent=1 // pred_check_branch
      %98 = sbr.rel (0) target = $region41
    $region40: #{tpu_custom_call.1} parent=1 // pred_region
      _
    $region41: #{tpu_custom_call.1} parent=1 // pred_fallthru
      _
    // Predicated region
    $region42: #{tpu_custom_call.1} parent=1 // pred_check
      _
    $region43: #{tpu_custom_call.1} parent=1 // pred_check_branch
      %100 = sbr.rel (0) target = $region45
    $region44: #{tpu_custom_call.1} parent=1 // pred_region
      _
    $region45: #{tpu_custom_call.1} parent=1 // pred_fallthru
      _
    // Predicated region
    $region46: #{tpu_custom_call.1} parent=1 // pred_check
      _
    $region47: #{tpu_custom_call.1} parent=1 // pred_check_branch
      %102 = sbr.rel (0) target = $region49
    $region48: #{tpu_custom_call.1} parent=1 // pred_region
      _
    $region49: #{tpu_custom_call.1} parent=1 // pred_fallthru
      _
    // Predicated region
    $region50: #{tpu_custom_call.1} parent=1 // pred_check
      _
    $region51: #{tpu_custom_call.1} parent=1 // pred_check_branch
      %104 = sbr.rel (0) target = $region53
    $region52: #{tpu_custom_call.1} parent=1 // pred_region
      _
    $region53: #{tpu_custom_call.1} parent=1 // pred_fallthru
      _
    // Predicated region
    $region54: #{tpu_custom_call.1} parent=1 // pred_check
      _
    $region55: #{tpu_custom_call.1} parent=1 // pred_check_branch
      %106 = sbr.rel (0) target = $region57
    $region56: #{tpu_custom_call.1} parent=1 // pred_region
      _
    $region57: #{tpu_custom_call.1} parent=1 // pred_fallthru
      _
    // Predicated region
    $region58: #{tpu_custom_call.1} parent=1 // pred_check
      _
    $region59: #{tpu_custom_call.1} parent=1 // pred_check_branch
      %108 = sbr.rel (0) target = $region61
    $region60: #{tpu_custom_call.1} parent=1 // pred_region
      _
    $region61: #{tpu_custom_call.1} parent=1 // pred_fallthru
      _
    // Predicated region
    $region62: #{tpu_custom_call.1} parent=1 // pred_check
      _
    $region63: #{tpu_custom_call.1} parent=1 // pred_check_branch
      %110 = sbr.rel (0) target = $region65
    $region64: #{tpu_custom_call.1} parent=1 // pred_region
      _
    $region65: #{tpu_custom_call.1} parent=1 // pred_fallthru
      _
    // Predicated region
    $region66: #{tpu_custom_call.1} parent=1 // pred_check
      _
    $region67: #{tpu_custom_call.1} parent=1 // pred_check_branch
      %112 = sbr.rel (0) target = $region69
    $region68: #{tpu_custom_call.1} parent=1 // pred_region
      _
    $region69: #{tpu_custom_call.1} parent=1 // pred_fallthru
      _
    // Predicated region
    $region70: #{tpu_custom_call.1} parent=1 // pred_check
      _
    $region71: #{tpu_custom_call.1} parent=1 // pred_check_branch
      %114 = sbr.rel (0) target = $region73
    $region72: #{tpu_custom_call.1} parent=1 // pred_region
      _
    $region73: #{tpu_custom_call.1} parent=1 // pred_fallthru
      _
    // Predicated region
    $region74: #{tpu_custom_call.1} parent=1 // pred_check
      _
    $region75: #{tpu_custom_call.1} parent=1 // pred_check_branch
      %116 = sbr.rel (0) target = $region77
    $region76: #{tpu_custom_call.1} parent=1 // pred_region
      _
    $region77: #{tpu_custom_call.1} parent=1 // pred_fallthru
      _
    // Predicated region
    $region78: #{tpu_custom_call.1} parent=1 // pred_check
      _
    $region79: #{tpu_custom_call.1} parent=1 // pred_check_branch
      %118 = sbr.rel (0) target = $region81
    $region80: #{tpu_custom_call.1} parent=1 // pred_region
      _
    $region81: #{tpu_custom_call.1} parent=1 // pred_fallthru
      _
    // Predicated region
    $region82: #{tpu_custom_call.1} parent=1 // pred_check
      _
    $region83: #{tpu_custom_call.1} parent=1 // pred_check_branch
      %120 = sbr.rel (0) target = $region85
    $region84: #{tpu_custom_call.1} parent=1 // pred_region
      _
    $region85: #{tpu_custom_call.1} parent=1 // pred_fallthru
      _
    // Predicated region
    $region86: #{tpu_custom_call.1} parent=1 // pred_check
      _
    $region87: #{tpu_custom_call.1} parent=1 // pred_check_branch
      %122 = sbr.rel (0) target = $region89
    $region88: #{tpu_custom_call.1} parent=1 // pred_region
      _
    $region89: #{tpu_custom_call.1} parent=1 // pred_fallthru
      _
    // Predicated region
    $region90: #{tpu_custom_call.1} parent=1 // pred_check
      _
    $region91: #{tpu_custom_call.1} parent=1 // pred_check_branch
      %124 = sbr.rel (0) target = $region93
    $region92: #{tpu_custom_call.1} parent=1 // pred_region
      _
    $region93: #{tpu_custom_call.1} parent=1 // pred_fallthru
      _
    // Predicated region
    $region94: #{tpu_custom_call.1} parent=1 // pred_check
      _
    $region95: #{tpu_custom_call.1} parent=1 // pred_check_branch
      %126 = sbr.rel (0) target = $region97
    $region96: #{tpu_custom_call.1} parent=1 // pred_region
      _
    $region97: #{tpu_custom_call.1} parent=1 // pred_fallthru
      _
    // Predicated region
    $region98: #{tpu_custom_call.1} parent=1 // pred_check
      _
    $region99: #{tpu_custom_call.1} parent=1 // pred_check_branch
      %128 = sbr.rel (0) target = $region101
    $region100: #{tpu_custom_call.1} parent=1 // pred_region
      _
    $region101: #{tpu_custom_call.1} parent=1 // pred_fallthru
      _
    // Predicated region
    $region102: #{tpu_custom_call.1} parent=1 // pred_check
      _
    $region103: #{tpu_custom_call.1} parent=1 // pred_check_branch
      %130 = sbr.rel (0) target = $region105
    $region104: #{tpu_custom_call.1} parent=1 // pred_region
      _
    $region105: #{tpu_custom_call.1} parent=1 // pred_fallthru
      _
    // Predicated region
    $region106: #{tpu_custom_call.1} parent=1 // pred_check
      _
    $region107: #{tpu_custom_call.1} parent=1 // pred_check_branch
      %132 = sbr.rel (0) target = $region109
    $region108: #{tpu_custom_call.1} parent=1 // pred_region
      _
    $region109: #{tpu_custom_call.1} parent=1 // pred_fallthru
      _
    // Predicated region
    $region110: #{tpu_custom_call.1} parent=1 // pred_check
      _
    $region111: #{tpu_custom_call.1} parent=1 // pred_check_branch
      %134 = sbr.rel (0) target = $region113
    $region112: #{tpu_custom_call.1} parent=1 // pred_region
      _
    $region113: #{tpu_custom_call.1} parent=1 // pred_fallthru
      _
    // Predicated region
    $region114: #{tpu_custom_call.1} parent=1 // pred_check
      _
    $region115: #{tpu_custom_call.1} parent=1 // pred_check_branch
      %136 = sbr.rel (0) target = $region117
    $region116: #{tpu_custom_call.1} parent=1 // pred_region
      _
    $region117: #{tpu_custom_call.1} parent=1 // pred_fallthru
      _
    // Predicated region
    $region118: #{tpu_custom_call.1} parent=1 // pred_check
      _
    $region119: #{tpu_custom_call.1} parent=1 // pred_check_branch
      %138 = sbr.rel (0) target = $region121
    $region120: #{tpu_custom_call.1} parent=1 // pred_region
      _
    $region121: #{tpu_custom_call.1} parent=1 // pred_fallthru
      _
    // Predicated region
    $region122: #{tpu_custom_call.1} parent=1 // pred_check
      _
    $region123: #{tpu_custom_call.1} parent=1 // pred_check_branch
      %140 = sbr.rel (0) target = $region125
    $region124: #{tpu_custom_call.1} parent=1 // pred_region
      _
    $region125: #{tpu_custom_call.1} parent=1 // pred_fallthru
      _
    // Predicated region
    $region126: #{tpu_custom_call.1} parent=1 // pred_check
      _
    $region127: #{tpu_custom_call.1} parent=1 // pred_check_branch
      %142 = sbr.rel (0) target = $region129
    $region128: #{tpu_custom_call.1} parent=1 // pred_region
      _
    $region129: #{tpu_custom_call.1} parent=1 // pred_fallthru
      _
    // Predicated region
    $region130: #{tpu_custom_call.1} parent=1 // pred_check
      _
    $region131: #{tpu_custom_call.1} parent=1 // pred_check_branch
      %144 = sbr.rel (0) target = $region133
    $region132: #{tpu_custom_call.1} parent=1 // pred_region
      _
    $region133: #{tpu_custom_call.1} parent=1 // pred_fallthru
      _
    // Predicated region
    $region134: #{tpu_custom_call.1} parent=1 // pred_check
      _
    $region135: #{tpu_custom_call.1} parent=1 // pred_check_branch
      %146 = sbr.rel (0) target = $region137
    $region136: #{tpu_custom_call.1} parent=1 // pred_region
      _
    $region137: #{tpu_custom_call.1} parent=1 // pred_fallthru
      _
    // Predicated region
    $region138: #{tpu_custom_call.1} parent=1 // pred_check
      _
    $region139: #{tpu_custom_call.1} parent=1 // pred_check_branch
      %148 = sbr.rel (0) target = $region141
    $region140: #{tpu_custom_call.1} parent=1 // pred_region
      _
    $region141: #{tpu_custom_call.1} parent=1 // pred_fallthru
      _
    %v149 = vld [vmem:[%s1] sm:$0xff]
    %v150 = vld [vmem:[%s25] sm:$0xff]
    %v151 = vld [vmem:[%s25 + $0x8] sm:$0xff]
    %v152 = vld [vmem:[%s25 + $0x10] sm:$0xff]
    %v153 = vld [vmem:[%s25 + $0x18] sm:$0xff]
    %v154 = vld [vmem:[%s27] sm:$0x1]
    %v156 = vperm.slane %v154, 0
    %vm158 = vcmask 261120
    %v160 = vsel %vm158, %v149, 0
    %162 = vmatpush.msra.mxu0 0.0
    %163 = vmatpush.msra.mxu0 0.0
    %164 = vmatpush.msra.mxu0 0.0
    %165 = vmatpush.msra.mxu0 0.0
    %166 = vmatpush.msra.mxu0 0.0
    %167 = vmatpush.msra.mxu0 0.0
    %168 = vmatpush.msra.mxu0 0.0
    %169 = vmatpush.msra.mxu0 0.0
    %170 = vmatpush.msra.mxu0 0.0
    %171 = vmatpush.msra.mxu0 0.0
    %172 = vmatpush.msra.mxu0 0.0
    %173 = vmatpush.msra.mxu0 0.0
    %174 = vmatpush.msra.mxu0 %v153
    %175 = vmatpush.msra.mxu0 %v152
    %176 = vmatpush.msra.mxu0 %v151
    %177 = vmatpush.msra.mxu0 %v150
    %178 = vmatmul.f32.gmra.mxu0 %v160
    %v179 = vpop.f32.mrf.mxu0
    %v180 = vadd.f32 %v156, %v179
    %181 = vdwg.mxu0
    %vm182 = vcmp.gt.f32.partialorder %v180, 0.0
    %v183 = vmul.f32 %v180, 0.1
    %v184 = vsel %vm182, %v180, %v183
    %v185 = vld [vmem:[%s29] sm:$0xff]
    %v186 = vld [vmem:[%s29 + $0x8] sm:$0xff]
    %v187 = vld [vmem:[%s29 + $0x10] sm:$0xff]
    %v188 = vld [vmem:[%s29 + $0x18] sm:$0xff]
    %v190 = vsel %vm158, %v184, 0
    %192 = vmatpush.msra.mxu0 0.0
    %193 = vmatpush.msra.mxu0 0.0
    %194 = vmatpush.msra.mxu0 0.0
    %195 = vmatpush.msra.mxu0 0.0
    %196 = vmatpush.msra.mxu0 0.0
    %197 = vmatpush.msra.mxu0 0.0
    %198 = vmatpush.msra.mxu0 0.0
    %199 = vmatpush.msra.mxu0 0.0
    %200 = vmatpush.msra.mxu0 0.0
    %201 = vmatpush.msra.mxu0 0.0
    %202 = vmatpush.msra.mxu0 0.0
    %203 = vmatpush.msra.mxu0 0.0
    %204 = vmatpush.msra.mxu0 %v188
    %205 = vmatpush.msra.mxu0 %v187
    %206 = vmatpush.msra.mxu0 %v186
    %207 = vmatpush.msra.mxu0 %v185
    %208 = vmatmul.f32.gmra.mxu0 %v190
    %v209 = vpop.f32.mrf.mxu0
    %v210 = vadd.f32 0.0, %v209
    %211 = vdwg.mxu0
    %v212 = vld [vmem:[%s3] sm:$0xff]
    %v213 = vld [vmem:[%s31] sm:$0xff]
    %v214 = vld [vmem:[%s31 + $0x8] sm:$0xff]
    %v215 = vld [vmem:[%s31 + $0x10] sm:$0xff]
    %v216 = vld [vmem:[%s31 + $0x18] sm:$0xff]
    %v217 = vld [vmem:[%s33] sm:$0x1]
    %v219 = vperm.slane %v217, 0
    %v222 = vsel %vm158, %v212, 0
    %224 = vmatpush.msra.mxu0 0.0
    %225 = vmatpush.msra.mxu0 0.0
    %226 = vmatpush.msra.mxu0 0.0
    %227 = vmatpush.msra.mxu0 0.0
    %228 = vmatpush.msra.mxu0 0.0
    %229 = vmatpush.msra.mxu0 0.0
    %230 = vmatpush.msra.mxu0 0.0
    %231 = vmatpush.msra.mxu0 0.0
    %232 = vmatpush.msra.mxu0 0.0
    %233 = vmatpush.msra.mxu0 0.0
    %234 = vmatpush.msra.mxu0 0.0
    %235 = vmatpush.msra.mxu0 0.0
    %236 = vmatpush.msra.mxu0 %v216
    %237 = vmatpush.msra.mxu0 %v215
    %238 = vmatpush.msra.mxu0 %v214
    %239 = vmatpush.msra.mxu0 %v213
    %240 = vmatmul.f32.gmra.mxu0 %v222
    %v241 = vpop.f32.mrf.mxu0
    %v242 = vadd.f32 %v219, %v241
    %243 = vdwg.mxu0
    %vm244 = vcmp.gt.f32.partialorder %v242, 0.0
    %v245 = vmul.f32 %v242, 0.1
    %v246 = vsel %vm244, %v242, %v245
    %v247 = vld [vmem:[%s35] sm:$0xff]
    %v248 = vld [vmem:[%s35 + $0x8] sm:$0xff]
    %v249 = vld [vmem:[%s35 + $0x10] sm:$0xff]
    %v250 = vld [vmem:[%s35 + $0x18] sm:$0xff]
    %v252 = vsel %vm158, %v246, 0
    %254 = vmatpush.msra.mxu0 0.0
    %255 = vmatpush.msra.mxu0 0.0
    %256 = vmatpush.msra.mxu0 0.0
    %257 = vmatpush.msra.mxu0 0.0
    %258 = vmatpush.msra.mxu0 0.0
    %259 = vmatpush.msra.mxu0 0.0
    %260 = vmatpush.msra.mxu0 0.0
    %261 = vmatpush.msra.mxu0 0.0
    %262 = vmatpush.msra.mxu0 0.0
    %263 = vmatpush.msra.mxu0 0.0
    %264 = vmatpush.msra.mxu0 0.0
    %265 = vmatpush.msra.mxu0 0.0
    %266 = vmatpush.msra.mxu0 %v250
    %267 = vmatpush.msra.mxu0 %v249
    %268 = vmatpush.msra.mxu0 %v248
    %269 = vmatpush.msra.mxu0 %v247
    %270 = vmatmul.f32.gmra.mxu0 %v252
    %v271 = vpop.f32.mrf.mxu0
    %v272 = vadd.f32 0.0, %v271
    %273 = vdwg.mxu0
    %v274 = vld [vmem:[%s7] sm:$0xff]
    %v275 = vld [vmem:[%s39] sm:$0x1f]
    %v276 = vld [vmem:[%s9] sm:$0xff]
    %v277 = vld [vmem:[%s41] sm:$0xff]
    %v278 = vld [vmem:[%s41 + $0x8] sm:$0x3]
    %vm279 = vcmask 80896
    %v281 = vsel %vm279, %v276, 0
    %vm283 = vcmask 1041408
    %v285 = vsel %vm283, %v278, 0
    %287 = vmatpush.msra.mxu0 0.0
    %288 = vmatpush.msra.mxu0 0.0
    %289 = vmatpush.msra.mxu0 0.0
    %290 = vmatpush.msra.mxu0 0.0
    %291 = vmatpush.msra.mxu0 0.0
    %292 = vmatpush.msra.mxu0 0.0
    %293 = vmatpush.msra.mxu0 0.0
    %294 = vmatpush.msra.mxu0 0.0
    %295 = vmatpush.msra.mxu0 0.0
    %296 = vmatpush.msra.mxu0 0.0
    %297 = vmatpush.msra.mxu0 0.0
    %298 = vmatpush.msra.mxu0 0.0
    %299 = vmatpush.msra.mxu0 0.0
    %300 = vmatpush.msra.mxu0 0.0
    %301 = vmatpush.msra.mxu0 %v285
    %302 = vmatpush.msra.mxu0 %v277
    %303 = vmatmul.f32.gmra.mxu0 %v281
    %v304 = vpop.f32.mrf.mxu0
    %v305 = vadd.f32 0.0, %v304
    %306 = vdwg.mxu0
    %vm307 = vcmask 39936
    %v309 = vsel %vm307, %v274, 0
    %vm311 = vcmask 1044480
    %v313 = vsel %vm311, %v275, 0
    %315 = vmatpush.msra.mxu0 0.0
    %316 = vmatpush.msra.mxu0 0.0
    %317 = vmatpush.msra.mxu0 0.0
    %318 = vmatpush.msra.mxu0 0.0
    %319 = vmatpush.msra.mxu0 0.0
    %320 = vmatpush.msra.mxu0 0.0
    %321 = vmatpush.msra.mxu0 0.0
    %322 = vmatpush.msra.mxu0 0.0
    %323 = vmatpush.msra.mxu0 0.0
    %324 = vmatpush.msra.mxu0 0.0
    %325 = vmatpush.msra.mxu0 0.0
    %326 = vmatpush.msra.mxu0 0.0
    %327 = vmatpush.msra.mxu0 0.0
    %328 = vmatpush.msra.mxu0 0.0
    %329 = vmatpush.msra.mxu0 0.0
    %330 = vmatpush.msra.mxu0 %v313
    %331 = vmatmul.f32.gmra.mxu0 %v309
    %v332 = vpop.f32.mrf.mxu0
    %v333 = vadd.f32 %v305, %v332
    %334 = vdwg.mxu0
    %v335 = vld [vmem:[%s43] sm:$0x1]
    %v337 = vperm.slane %v335, 0
    %v339 = vadd.f32 %v333, %v337
    %v340 = vld [vmem:[%s5] sm:$0x1f]
    %v341 = vld [vmem:[%s37] sm:$0xff]
    %v342 = vld [vmem:[%s37 + $0x8] sm:$0xff]
    %v343 = vld [vmem:[%s37 + $0x10] sm:$0xff]
    %v344 = vld [vmem:[%s37 + $0x18] sm:$0xff]
    %v346 = vsel %vm158, %v340, 0
    %348 = vmatpush.msra.mxu0 0.0
    %349 = vmatpush.msra.mxu0 0.0
    %350 = vmatpush.msra.mxu0 0.0
    %351 = vmatpush.msra.mxu0 0.0
    %352 = vmatpush.msra.mxu0 0.0
    %353 = vmatpush.msra.mxu0 0.0
    %354 = vmatpush.msra.mxu0 0.0
    %355 = vmatpush.msra.mxu0 0.0
    %356 = vmatpush.msra.mxu0 0.0
    %357 = vmatpush.msra.mxu0 0.0
    %358 = vmatpush.msra.mxu0 0.0
    %359 = vmatpush.msra.mxu0 0.0
    %360 = vmatpush.msra.mxu0 %v344
    %361 = vmatpush.msra.mxu0 %v343
    %362 = vmatpush.msra.mxu0 %v342
    %363 = vmatpush.msra.mxu0 %v341
    %364 = vmatmul.f32.gmra.mxu0 %v346
    %v365 = vpop.f32.mrf.mxu0
    %v366 = vadd.f32 0.0, %v365
    %367 = vdwg.mxu0
    %v368 = vld [vmem:[%s11] sm:$0xff]
    %v369 = vld [vmem:[%s11 + $0x8] sm:$0xff]
    %v370 = vld [vmem:[%s11 + $0x10] sm:$0xff]
    %v371 = vld [vmem:[%s11 + $0x18] sm:$0xff]
    %v372 = vld [vmem:[%s11 + $0x20] sm:$0xff]
    %v373 = vld [vmem:[%s13] sm:$0xff]
    %v374 = vld [vmem:[%s13 + $0x8] sm:$0xff]
    %v375 = vld [vmem:[%s13 + $0x10] sm:$0xff]
    %v376 = vld [vmem:[%s13 + $0x18] sm:$0xff]
    %v377 = vld [vmem:[%s13 + $0x20] sm:$0xff]
    %v378 = vld [vmem:[%s15] sm:$0xff]
    %v379 = vld [vmem:[%s15 + $0x8] sm:$0xff]
    %v380 = vld [vmem:[%s15 + $0x10] sm:$0xff]
    %v381 = vld [vmem:[%s15 + $0x18] sm:$0xff]
    %v382 = vld [vmem:[%s15 + $0x20] sm:$0xff]
    %v384 = vsel %vm307, %v378, 0
    %v387 = vsel %vm307, %v379, 0
    %v390 = vsel %vm307, %v380, 0
    %v393 = vsel %vm307, %v381, 0
    %v396 = vsel %vm307, %v382, 0
    %v399 = vsel %vm311, %v366, 0
    %401 = vmatpush.msra.mxu0 0.0
    %402 = vmatpush.msra.mxu0 0.0
    %403 = vmatpush.msra.mxu0 0.0
    %404 = vmatpush.msra.mxu0 0.0
    %405 = vmatpush.msra.mxu0 0.0
    %406 = vmatpush.msra.mxu0 0.0
    %407 = vmatpush.msra.mxu0 0.0
    %408 = vmatpush.msra.mxu0 0.0
    %409 = vmatpush.msra.mxu0 0.0
    %410 = vmatpush.msra.mxu0 0.0
    %411 = vmatpush.msra.mxu0 0.0
    %412 = vmatpush.msra.mxu0 0.0
    %413 = vmatpush.msra.mxu0 0.0
    %414 = vmatpush.msra.mxu0 0.0
    %415 = vmatpush.msra.mxu0 0.0
    %416 = vmatpush.msra.mxu0 %v399
    %417 = vmatmul.f32.gmra.mxu0 %v384
    %v418 = vpop.f32.mrf.mxu0
    %v419 = vadd.f32 0.0, %v418
    %420 = vmatmul.f32.gmra.mxu0 %v387
    %v421 = vpop.f32.mrf.mxu0
    %v422 = vadd.f32 0.0, %v421
    %423 = vmatmul.f32.gmra.mxu0 %v390
    %v424 = vpop.f32.mrf.mxu0
    %v425 = vadd.f32 0.0, %v424
    %426 = vmatmul.f32.gmra.mxu0 %v393
    %v427 = vpop.f32.mrf.mxu0
    %v428 = vadd.f32 0.0, %v427
    %429 = vmatmul.f32.gmra.mxu0 %v396
    %v430 = vpop.f32.mrf.mxu0
    %v431 = vadd.f32 0.0, %v430
    %432 = vdwg.mxu0
    %vm433 = vcmask 64512
    %v435 = vsel %vm433, %v373, 0
    %v438 = vsel %vm433, %v374, 0
    %v441 = vsel %vm433, %v375, 0
    %v444 = vsel %vm433, %v376, 0
    %v447 = vsel %vm433, %v377, 0
    %449 = vmatpush.msra.mxu0 0.0
    %450 = vmatpush.msra.mxu0 0.0
    %451 = vmatpush.msra.mxu0 0.0
    %452 = vmatpush.msra.mxu0 0.0
    %453 = vmatpush.msra.mxu0 0.0
    %454 = vmatpush.msra.mxu0 0.0
    %455 = vmatpush.msra.mxu0 0.0
    %456 = vmatpush.msra.mxu0 0.0
    %457 = vmatpush.msra.mxu0 0.0
    %458 = vmatpush.msra.mxu0 0.0
    %459 = vmatpush.msra.mxu0 0.0
    %460 = vmatpush.msra.mxu0 0.0
    %461 = vmatpush.msra.mxu0 0.0
    %462 = vmatpush.msra.mxu0 0.0
    %463 = vmatpush.msra.mxu0 0.0
    %464 = vmatpush.msra.mxu0 %v339
    %465 = vmatmul.f32.gmra.mxu0 %v435
    %v466 = vpop.f32.mrf.mxu0
    %v467 = vadd.f32 %v419, %v466
    %468 = vmatmul.f32.gmra.mxu0 %v438
    %v469 = vpop.f32.mrf.mxu0
    %v470 = vadd.f32 %v422, %v469
    %471 = vmatmul.f32.gmra.mxu0 %v441
    %v472 = vpop.f32.mrf.mxu0
    %v473 = vadd.f32 %v425, %v472
    %474 = vmatmul.f32.gmra.mxu0 %v444
    %v475 = vpop.f32.mrf.mxu0
    %v476 = vadd.f32 %v428, %v475
    %477 = vmatmul.f32.gmra.mxu0 %v447
    %v478 = vpop.f32.mrf.mxu0
    %v479 = vadd.f32 %v431, %v478
    %480 = vdwg.mxu0
    %vm481 = vcmp.gt.f32.partialorder %v467, 0.0
    %vm482 = vcmp.gt.f32.partialorder %v470, 0.0
    %vm483 = vcmp.gt.f32.partialorder %v473, 0.0
    %vm484 = vcmp.gt.f32.partialorder %v476, 0.0
    %vm485 = vcmp.gt.f32.partialorder %v479, 0.0
    %v486 = vmul.f32 %v467, 0.1
    %v487 = vmul.f32 %v470, 0.1
    %v488 = vmul.f32 %v473, 0.1
    %v489 = vmul.f32 %v476, 0.1
    %v490 = vmul.f32 %v479, 0.1
    %v491 = vsel %vm481, %v467, %v486
    %v492 = vsel %vm482, %v470, %v487
    %v493 = vsel %vm483, %v473, %v488
    %v494 = vsel %vm484, %v476, %v489
    %v495 = vsel %vm485, %v479, %v490
    %v496 = vld [vmem:[%s45] sm:$0xff]
    %v497 = vld [vmem:[%s45 + $0x8] sm:$0xff]
    %v498 = vld [vmem:[%s45 + $0x10] sm:$0xff]
    %v499 = vld [vmem:[%s45 + $0x18] sm:$0xff]
    %v500 = vld [vmem:[%s47] sm:$0x1]
    %v502 = vperm.slane %v500, 0
    %v505 = vsel %vm158, %v491, 0
    %v508 = vsel %vm158, %v492, 0
    %v511 = vsel %vm158, %v493, 0
    %v514 = vsel %vm158, %v494, 0
    %v517 = vsel %vm158, %v495, 0
    %519 = vmatpush.msra.mxu0 0.0
    %520 = vmatpush.msra.mxu0 0.0
    %521 = vmatpush.msra.mxu0 0.0
    %522 = vmatpush.msra.mxu0 0.0
    %523 = vmatpush.msra.mxu0 0.0
    %524 = vmatpush.msra.mxu0 0.0
    %525 = vmatpush.msra.mxu0 0.0
    %526 = vmatpush.msra.mxu0 0.0
    %527 = vmatpush.msra.mxu0 0.0
    %528 = vmatpush.msra.mxu0 0.0
    %529 = vmatpush.msra.mxu0 0.0
    %530 = vmatpush.msra.mxu0 0.0
    %531 = vmatpush.msra.mxu0 %v499
    %532 = vmatpush.msra.mxu0 %v498
    %533 = vmatpush.msra.mxu0 %v497
    %534 = vmatpush.msra.mxu0 %v496
    %535 = vmatmul.f32.gmra.mxu0 %v505
    %v536 = vpop.f32.mrf.mxu0
    %v537 = vadd.f32 %v502, %v536
    %538 = vmatmul.f32.gmra.mxu0 %v508
    %v539 = vpop.f32.mrf.mxu0
    %v540 = vadd.f32 %v502, %v539
    %541 = vmatmul.f32.gmra.mxu0 %v511
    %v542 = vpop.f32.mrf.mxu0
    %v543 = vadd.f32 %v502, %v542
    %544 = vmatmul.f32.gmra.mxu0 %v514
    %v545 = vpop.f32.mrf.mxu0
    %v546 = vadd.f32 %v502, %v545
    %547 = vmatmul.f32.gmra.mxu0 %v517
    %v548 = vpop.f32.mrf.mxu0
    %v549 = vadd.f32 %v502, %v548
    %550 = vdwg.mxu0
    %vm551 = vcmp.gt.f32.partialorder %v537, 0.0
    %vm552 = vcmp.gt.f32.partialorder %v540, 0.0
    %vm553 = vcmp.gt.f32.partialorder %v543, 0.0
    %vm554 = vcmp.gt.f32.partialorder %v546, 0.0
    %vm555 = vcmp.gt.f32.partialorder %v549, 0.0
    %v556 = vmul.f32 %v537, 0.1
    %v557 = vmul.f32 %v540, 0.1
    %v558 = vmul.f32 %v543, 0.1
    %v559 = vmul.f32 %v546, 0.1
    %v560 = vmul.f32 %v549, 0.1
    %v561 = vsel %vm551, %v537, %v556
    %v562 = vsel %vm552, %v540, %v557
    %v563 = vsel %vm553, %v543, %v558
    %v564 = vsel %vm554, %v546, %v559
    %v565 = vsel %vm555, %v549, %v560
    %v566 = vld [vmem:[%s49] sm:$0xff]
    %v567 = vld [vmem:[%s49 + $0x8] sm:$0xff]
    %v568 = vld [vmem:[%s49 + $0x10] sm:$0xff]
    %v569 = vld [vmem:[%s49 + $0x18] sm:$0xff]
    %v571 = vsel %vm158, %v561, 0
    %v574 = vsel %vm158, %v562, 0
    %v577 = vsel %vm158, %v563, 0
    %v580 = vsel %vm158, %v564, 0
    %v583 = vsel %vm158, %v565, 0
    %585 = vmatpush.msra.mxu0 0.0
    %586 = vmatpush.msra.mxu0 0.0
    %587 = vmatpush.msra.mxu0 0.0
    %588 = vmatpush.msra.mxu0 0.0
    %589 = vmatpush.msra.mxu0 0.0
    %590 = vmatpush.msra.mxu0 0.0
    %591 = vmatpush.msra.mxu0 0.0
    %592 = vmatpush.msra.mxu0 0.0
    %593 = vmatpush.msra.mxu0 0.0
    %594 = vmatpush.msra.mxu0 0.0
    %595 = vmatpush.msra.mxu0 0.0
    %596 = vmatpush.msra.mxu0 0.0
    %597 = vmatpush.msra.mxu0 %v569
    %598 = vmatpush.msra.mxu0 %v568
    %599 = vmatpush.msra.mxu0 %v567
    %600 = vmatpush.msra.mxu0 %v566
    %601 = vmatmul.f32.gmra.mxu0 %v571
    %v602 = vpop.f32.mrf.mxu0
    %v603 = vadd.f32 0.0, %v602
    %604 = vmatmul.f32.gmra.mxu0 %v574
    %v605 = vpop.f32.mrf.mxu0
    %v606 = vadd.f32 0.0, %v605
    %607 = vmatmul.f32.gmra.mxu0 %v577
    %v608 = vpop.f32.mrf.mxu0
    %v609 = vadd.f32 0.0, %v608
    %610 = vmatmul.f32.gmra.mxu0 %v580
    %v611 = vpop.f32.mrf.mxu0
    %v612 = vadd.f32 0.0, %v611
    %613 = vmatmul.f32.gmra.mxu0 %v583
    %v614 = vpop.f32.mrf.mxu0
    %v615 = vadd.f32 0.0, %v614
    %616 = vdwg.mxu0
    %v618 = vsel %vm433, %v368, 0
    %v621 = vsel %vm433, %v369, 0
    %v624 = vsel %vm433, %v370, 0
    %v627 = vsel %vm433, %v371, 0
    %v630 = vsel %vm433, %v372, 0
    %632 = vmatpush.msra.mxu0 0.0
    %633 = vmatpush.msra.mxu0 0.0
    %634 = vmatpush.msra.mxu0 0.0
    %635 = vmatpush.msra.mxu0 0.0
    %636 = vmatpush.msra.mxu0 0.0
    %637 = vmatpush.msra.mxu0 0.0
    %638 = vmatpush.msra.mxu0 0.0
    %639 = vmatpush.msra.mxu0 0.0
    %640 = vmatpush.msra.mxu0 0.0
    %641 = vmatpush.msra.mxu0 0.0
    %642 = vmatpush.msra.mxu0 0.0
    %643 = vmatpush.msra.mxu0 0.0
    %644 = vmatpush.msra.mxu0 0.0
    %645 = vmatpush.msra.mxu0 0.0
    %646 = vmatpush.msra.mxu0 0.0
    %647 = vmatpush.msra.mxu0 %v210
    %648 = vmatmul.f32.gmra.mxu0 %v618
    %v649 = vpop.f32.mrf.mxu0
    %v650 = vadd.f32 0.0, %v649
    %651 = vmatmul.f32.gmra.mxu0 %v621
    %v652 = vpop.f32.mrf.mxu0
    %v653 = vadd.f32 0.0, %v652
    %654 = vmatmul.f32.gmra.mxu0 %v624
    %v655 = vpop.f32.mrf.mxu0
    %v656 = vadd.f32 0.0, %v655
    %657 = vmatmul.f32.gmra.mxu0 %v627
    %v658 = vpop.f32.mrf.mxu0
    %v659 = vadd.f32 0.0, %v658
    %660 = vmatmul.f32.gmra.mxu0 %v630
    %v661 = vpop.f32.mrf.mxu0
    %v662 = vadd.f32 0.0, %v661
    %663 = vdwg.mxu0
    %664 = vmatpush.msra.mxu0 0.0
    %665 = vmatpush.msra.mxu0 0.0
    %666 = vmatpush.msra.mxu0 0.0
    %667 = vmatpush.msra.mxu0 0.0
    %668 = vmatpush.msra.mxu0 0.0
    %669 = vmatpush.msra.mxu0 0.0
    %670 = vmatpush.msra.mxu0 0.0
    %671 = vmatpush.msra.mxu0 0.0
    %672 = vmatpush.msra.mxu0 0.0
    %673 = vmatpush.msra.mxu0 0.0
    %674 = vmatpush.msra.mxu0 0.0
    %675 = vmatpush.msra.mxu0 0.0
    %676 = vmatpush.msra.mxu0 0.0
    %677 = vmatpush.msra.mxu0 0.0
    %678 = vmatpush.msra.mxu0 0.0
    %679 = vmatpush.msra.mxu0 %v272
    %680 = vmatmul.f32.gmra.mxu0 %v435
    %v681 = vpop.f32.mrf.mxu0
    %v682 = vadd.f32 0.0, %v681
    %683 = vmatmul.f32.gmra.mxu0 %v438
    %v684 = vpop.f32.mrf.mxu0
    %v685 = vadd.f32 0.0, %v684
    %686 = vmatmul.f32.gmra.mxu0 %v441
    %v687 = vpop.f32.mrf.mxu0
    %v688 = vadd.f32 0.0, %v687
    %689 = vmatmul.f32.gmra.mxu0 %v444
    %v690 = vpop.f32.mrf.mxu0
    %v691 = vadd.f32 0.0, %v690
    %692 = vmatmul.f32.gmra.mxu0 %v447
    %v693 = vpop.f32.mrf.mxu0
    %v694 = vadd.f32 0.0, %v693
    %695 = vdwg.mxu0
    %v696 = vld [vmem:[%s21] sm:$0xff]
    %v697 = vld [vmem:[%s21 + $0x8] sm:$0xff]
    %v698 = vld [vmem:[%s21 + $0x10] sm:$0xff]
    %v699 = vld [vmem:[%s21 + $0x18] sm:$0xff]
    %v700 = vld [vmem:[%s21 + $0x20] sm:$0xff]
    %v701 = vld [vmem:[%s51] sm:$0x3]
    %v702 = vld [vmem:[%s53] sm:$0x3]
    %v703 = vsel %vm158, %v650, 0.0
    %704 = vadd.xlane.f32.xlu0 %v703
    %v705 = vpop.xlane.xlu0 %704
    %v706 = vsel %vm158, %v653, 0.0
    %707 = vadd.xlane.f32.xlu0 %v706
    %v708 = vpop.xlane.xlu0 %707
    %v709 = vsel %vm158, %v656, 0.0
    %710 = vadd.xlane.f32.xlu0 %v709
    %v711 = vpop.xlane.xlu0 %710
    %v712 = vsel %vm158, %v659, 0.0
    %713 = vadd.xlane.f32.xlu0 %v712
    %v714 = vpop.xlane.xlu0 %713
    %v715 = vsel %vm158, %v662, 0.0
    %716 = vadd.xlane.f32.xlu0 %v715
    %v717 = vpop.xlane.xlu0 %716
    %v718 = vrcp.pop 32.0
    %v719 = vmul.f32 32.0, %v718
    %v720 = vsub.f32 1.0, %v719
    %v721 = vmul.f32 %v718, %v720
    %v722 = vadd.f32 %v718, %v721
    %vm723 = vweird.f32 %v718
    %v724 = vsel %vm723, %v718, %v722
    %v725 = vmul.f32 %v705, %v724
    %v726 = vmul.f32 %v708, %v724
    %v727 = vmul.f32 %v711, %v724
    %v728 = vmul.f32 %v714, %v724
    %v729 = vmul.f32 %v717, %v724
    %v730 = vsub.f32 %v650, %v725
    %v731 = vsub.f32 %v653, %v726
    %v732 = vsub.f32 %v656, %v727
    %v733 = vsub.f32 %v659, %v728
    %v734 = vsub.f32 %v662, %v729
    %v735 = vmul.f32 %v730, %v730
    %v736 = vmul.f32 %v731, %v731
    %v737 = vmul.f32 %v732, %v732
    %v738 = vmul.f32 %v733, %v733
    %v739 = vmul.f32 %v734, %v734
    %v740 = vsel %vm158, %v735, 0.0
    %741 = vadd.xlane.f32.xlu0 %v740
    %v742 = vpop.xlane.xlu0 %741
    %v743 = vsel %vm158, %v736, 0.0
    %744 = vadd.xlane.f32.xlu0 %v743
    %v745 = vpop.xlane.xlu0 %744
    %v746 = vsel %vm158, %v737, 0.0
    %747 = vadd.xlane.f32.xlu0 %v746
    %v748 = vpop.xlane.xlu0 %747
    %v749 = vsel %vm158, %v738, 0.0
    %750 = vadd.xlane.f32.xlu0 %v749
    %v751 = vpop.xlane.xlu0 %750
    %v752 = vsel %vm158, %v739, 0.0
    %753 = vadd.xlane.f32.xlu0 %v752
    %v754 = vpop.xlane.xlu0 %753
    %v755 = vmul.f32 %v742, 0.032258064
    %v756 = vmul.f32 %v745, 0.032258064
    %v757 = vmul.f32 %v748, 0.032258064
    %v758 = vmul.f32 %v751, 0.032258064
    %v759 = vmul.f32 %v754, 0.032258064
    %v760 = vrsqrt.pop %v755
    %v761 = vmul.f32 %v760, %v755
    %v762 = vmul.f32 %v761, %v760
    %v763 = vmul.f32 0.5, %v762
    %v764 = vsub.f32 1.5, %v763
    %v765 = vmul.f32 %v760, %v764
    %v766 = vmul.f32 %v755, %v765
    %vm767 = vcmp.eq.f32.partialorder %v755, inf
    %v768 = vsel %vm767, %v755, %v766
    %vm769 = vcmp.eq.f32.partialorder %v755, 0.0
    %v770 = vand.u32 %v755, 2147483648
    %v771 = vsel %vm769, %v770, %v768
    %v772 = vrsqrt.pop %v756
    %v773 = vmul.f32 %v772, %v756
    %v774 = vmul.f32 %v773, %v772
    %v775 = vmul.f32 0.5, %v774
    %v776 = vsub.f32 1.5, %v775
    %v777 = vmul.f32 %v772, %v776
    %v778 = vmul.f32 %v756, %v777
    %vm779 = vcmp.eq.f32.partialorder %v756, inf
    %v780 = vsel %vm779, %v756, %v778
    %vm781 = vcmp.eq.f32.partialorder %v756, 0.0
    %v782 = vand.u32 %v756, 2147483648
    %v783 = vsel %vm781, %v782, %v780
    %v784 = vrsqrt.pop %v757
    %v785 = vmul.f32 %v784, %v757
    %v786 = vmul.f32 %v785, %v784
    %v787 = vmul.f32 0.5, %v786
    %v788 = vsub.f32 1.5, %v787
    %v789 = vmul.f32 %v784, %v788
    %v790 = vmul.f32 %v757, %v789
    %vm791 = vcmp.eq.f32.partialorder %v757, inf
    %v792 = vsel %vm791, %v757, %v790
    %vm793 = vcmp.eq.f32.partialorder %v757, 0.0
    %v794 = vand.u32 %v757, 2147483648
    %v795 = vsel %vm793, %v794, %v792
    %v796 = vrsqrt.pop %v758
    %v797 = vmul.f32 %v796, %v758
    %v798 = vmul.f32 %v797, %v796
    %v799 = vmul.f32 0.5, %v798
    %v800 = vsub.f32 1.5, %v799
    %v801 = vmul.f32 %v796, %v800
    %v802 = vmul.f32 %v758, %v801
    %vm803 = vcmp.eq.f32.partialorder %v758, inf
    %v804 = vsel %vm803, %v758, %v802
    %vm805 = vcmp.eq.f32.partialorder %v758, 0.0
    %v806 = vand.u32 %v758, 2147483648
    %v807 = vsel %vm805, %v806, %v804
    %v808 = vrsqrt.pop %v759
    %v809 = vmul.f32 %v808, %v759
    %v810 = vmul.f32 %v809, %v808
    %v811 = vmul.f32 0.5, %v810
    %v812 = vsub.f32 1.5, %v811
    %v813 = vmul.f32 %v808, %v812
    %v814 = vmul.f32 %v759, %v813
    %vm815 = vcmp.eq.f32.partialorder %v759, inf
    %v816 = vsel %vm815, %v759, %v814
    %vm817 = vcmp.eq.f32.partialorder %v759, 0.0
    %v818 = vand.u32 %v759, 2147483648
    %v819 = vsel %vm817, %v818, %v816
    %v820 = vadd.f32 %v771, 1e-06
    %v821 = vadd.f32 %v783, 1e-06
    %v822 = vadd.f32 %v795, 1e-06
    %v823 = vadd.f32 %v807, 1e-06
    %v824 = vadd.f32 %v819, 1e-06
    %v825 = vrcp.pop %v820
    %v826 = vrcp.pop %v821
    %v827 = vrcp.pop %v822
    %v828 = vrcp.pop %v823
    %v829 = vrcp.pop %v824
    %v830 = vmul.f32 %v730, %v825
    %v831 = vmul.f32 %v731, %v826
    %v832 = vmul.f32 %v732, %v827
    %v833 = vmul.f32 %v733, %v828
    %v834 = vmul.f32 %v734, %v829
    %v835 = vperm.slane %v701, 0
    %v836 = vmul.f32 %v835, %v830
    %v837 = vmul.f32 %v835, %v831
    %v838 = vmul.f32 %v835, %v832
    %v839 = vmul.f32 %v835, %v833
    %v840 = vmul.f32 %v835, %v834
    %v841 = vperm.slane %v702, 0
    %v842 = vadd.f32 %v836, %v841
    %v843 = vadd.f32 %v837, %v841
    %v844 = vadd.f32 %v838, %v841
    %v845 = vadd.f32 %v839, %v841
    %v846 = vadd.f32 %v840, %v841
    %v847 = vsel %vm158, %v603, 0.0
    %848 = vadd.xlane.f32.xlu0 %v847
    %v849 = vpop.xlane.xlu0 %848
    %v850 = vsel %vm158, %v606, 0.0
    %851 = vadd.xlane.f32.xlu0 %v850
    %v852 = vpop.xlane.xlu0 %851
    %v853 = vsel %vm158, %v609, 0.0
    %854 = vadd.xlane.f32.xlu0 %v853
    %v855 = vpop.xlane.xlu0 %854
    %v856 = vsel %vm158, %v612, 0.0
    %857 = vadd.xlane.f32.xlu0 %v856
    %v858 = vpop.xlane.xlu0 %857
    %v859 = vsel %vm158, %v615, 0.0
    %860 = vadd.xlane.f32.xlu0 %v859
    %v861 = vpop.xlane.xlu0 %860
    %v862 = vmul.f32 %v849, %v724
    %v863 = vmul.f32 %v852, %v724
    %v864 = vmul.f32 %v855, %v724
    %v865 = vmul.f32 %v858, %v724
    %v866 = vmul.f32 %v861, %v724
    %v867 = vsub.f32 %v603, %v862
    %v868 = vsub.f32 %v606, %v863
    %v869 = vsub.f32 %v609, %v864
    %v870 = vsub.f32 %v612, %v865
    %v871 = vsub.f32 %v615, %v866
    %v872 = vmul.f32 %v867, %v867
    %v873 = vmul.f32 %v868, %v868
    %v874 = vmul.f32 %v869, %v869
    %v875 = vmul.f32 %v870, %v870
    %v876 = vmul.f32 %v871, %v871
    %v877 = vsel %vm158, %v872, 0.0
    %878 = vadd.xlane.f32.xlu0 %v877
    %v879 = vpop.xlane.xlu0 %878
    %v880 = vsel %vm158, %v873, 0.0
    %881 = vadd.xlane.f32.xlu0 %v880
    %v882 = vpop.xlane.xlu0 %881
    %v883 = vsel %vm158, %v874, 0.0
    %884 = vadd.xlane.f32.xlu0 %v883
    %v885 = vpop.xlane.xlu0 %884
    %v886 = vsel %vm158, %v875, 0.0
    %887 = vadd.xlane.f32.xlu0 %v886
    %v888 = vpop.xlane.xlu0 %887
    %v889 = vsel %vm158, %v876, 0.0
    %890 = vadd.xlane.f32.xlu0 %v889
    %v891 = vpop.xlane.xlu0 %890
    %v892 = vmul.f32 %v879, 0.032258064
    %v893 = vmul.f32 %v882, 0.032258064
    %v894 = vmul.f32 %v885, 0.032258064
    %v895 = vmul.f32 %v888, 0.032258064
    %v896 = vmul.f32 %v891, 0.032258064
    %v897 = vrsqrt.pop %v892
    %v898 = vmul.f32 %v897, %v892
    %v899 = vmul.f32 %v898, %v897
    %v900 = vmul.f32 0.5, %v899
    %v901 = vsub.f32 1.5, %v900
    %v902 = vmul.f32 %v897, %v901
    %v903 = vmul.f32 %v892, %v902
    %vm904 = vcmp.eq.f32.partialorder %v892, inf
    %v905 = vsel %vm904, %v892, %v903
    %vm906 = vcmp.eq.f32.partialorder %v892, 0.0
    %v907 = vand.u32 %v892, 2147483648
    %v908 = vsel %vm906, %v907, %v905
    %v909 = vrsqrt.pop %v893
    %v910 = vmul.f32 %v909, %v893
    %v911 = vmul.f32 %v910, %v909
    %v912 = vmul.f32 0.5, %v911
    %v913 = vsub.f32 1.5, %v912
    %v914 = vmul.f32 %v909, %v913
    %v915 = vmul.f32 %v893, %v914
    %vm916 = vcmp.eq.f32.partialorder %v893, inf
    %v917 = vsel %vm916, %v893, %v915
    %vm918 = vcmp.eq.f32.partialorder %v893, 0.0
    %v919 = vand.u32 %v893, 2147483648
    %v920 = vsel %vm918, %v919, %v917
    %v921 = vrsqrt.pop %v894
    %v922 = vmul.f32 %v921, %v894
    %v923 = vmul.f32 %v922, %v921
    %v924 = vmul.f32 0.5, %v923
    %v925 = vsub.f32 1.5, %v924
    %v926 = vmul.f32 %v921, %v925
    %v927 = vmul.f32 %v894, %v926
    %vm928 = vcmp.eq.f32.partialorder %v894, inf
    %v929 = vsel %vm928, %v894, %v927
    %vm930 = vcmp.eq.f32.partialorder %v894, 0.0
    %v931 = vand.u32 %v894, 2147483648
    %v932 = vsel %vm930, %v931, %v929
    %v933 = vrsqrt.pop %v895
    %v934 = vmul.f32 %v933, %v895
    %v935 = vmul.f32 %v934, %v933
    %v936 = vmul.f32 0.5, %v935
    %v937 = vsub.f32 1.5, %v936
    %v938 = vmul.f32 %v933, %v937
    %v939 = vmul.f32 %v895, %v938
    %vm940 = vcmp.eq.f32.partialorder %v895, inf
    %v941 = vsel %vm940, %v895, %v939
    %vm942 = vcmp.eq.f32.partialorder %v895, 0.0
    %v943 = vand.u32 %v895, 2147483648
    %v944 = vsel %vm942, %v943, %v941
    %v945 = vrsqrt.pop %v896
    %v946 = vmul.f32 %v945, %v896
    %v947 = vmul.f32 %v946, %v945
    %v948 = vmul.f32 0.5, %v947
    %v949 = vsub.f32 1.5, %v948
    %v950 = vmul.f32 %v945, %v949
    %v951 = vmul.f32 %v896, %v950
    %vm952 = vcmp.eq.f32.partialorder %v896, inf
    %v953 = vsel %vm952, %v896, %v951
    %vm954 = vcmp.eq.f32.partialorder %v896, 0.0
    %v955 = vand.u32 %v896, 2147483648
    %v956 = vsel %vm954, %v955, %v953
    %v957 = vadd.f32 %v908, 1e-06
    %v958 = vadd.f32 %v920, 1e-06
    %v959 = vadd.f32 %v932, 1e-06
    %v960 = vadd.f32 %v944, 1e-06
    %v961 = vadd.f32 %v956, 1e-06
    %v962 = vrcp.pop %v957
    %v963 = vrcp.pop %v958
    %v964 = vrcp.pop %v959
    %v965 = vrcp.pop %v960
    %v966 = vrcp.pop %v961
    %v967 = vmul.f32 %v867, %v962
    %v968 = vmul.f32 %v868, %v963
    %v969 = vmul.f32 %v869, %v964
    %v970 = vmul.f32 %v870, %v965
    %v971 = vmul.f32 %v871, %v966
    %v972 = vmul.f32 %v835, %v967
    %v973 = vmul.f32 %v835, %v968
    %v974 = vmul.f32 %v835, %v969
    %v975 = vmul.f32 %v835, %v970
    %v976 = vmul.f32 %v835, %v971
    %v977 = vadd.f32 %v972, %v841
    %v978 = vadd.f32 %v973, %v841
    %v979 = vadd.f32 %v974, %v841
    %v980 = vadd.f32 %v975, %v841
    %v981 = vadd.f32 %v976, %v841
    %v982 = vsel %vm158, %v682, 0.0
    %983 = vadd.xlane.f32.xlu0 %v982
    %v984 = vpop.xlane.xlu0 %983
    %v985 = vsel %vm158, %v685, 0.0
    %986 = vadd.xlane.f32.xlu0 %v985
    %v987 = vpop.xlane.xlu0 %986
    %v988 = vsel %vm158, %v688, 0.0
    %989 = vadd.xlane.f32.xlu0 %v988
    %v990 = vpop.xlane.xlu0 %989
    %v991 = vsel %vm158, %v691, 0.0
    %992 = vadd.xlane.f32.xlu0 %v991
    %v993 = vpop.xlane.xlu0 %992
    %v994 = vsel %vm158, %v694, 0.0
    %995 = vadd.xlane.f32.xlu0 %v994
    %v996 = vpop.xlane.xlu0 %995
    %v997 = vmul.f32 %v984, %v724
    %v998 = vmul.f32 %v987, %v724
    %v999 = vmul.f32 %v990, %v724
    %v1000 = vmul.f32 %v993, %v724
    %v1001 = vmul.f32 %v996, %v724
    %v1002 = vsub.f32 %v682, %v997
    %v1003 = vsub.f32 %v685, %v998
    %v1004 = vsub.f32 %v688, %v999
    %v1005 = vsub.f32 %v691, %v1000
    %v1006 = vsub.f32 %v694, %v1001
    %v1007 = vmul.f32 %v1002, %v1002
    %v1008 = vmul.f32 %v1003, %v1003
    %v1009 = vmul.f32 %v1004, %v1004
    %v1010 = vmul.f32 %v1005, %v1005
    %v1011 = vmul.f32 %v1006, %v1006
    %v1012 = vsel %vm158, %v1007, 0.0
    %1013 = vadd.xlane.f32.xlu0 %v1012
    %v1014 = vpop.xlane.xlu0 %1013
    %v1015 = vsel %vm158, %v1008, 0.0
    %1016 = vadd.xlane.f32.xlu0 %v1015
    %v1017 = vpop.xlane.xlu0 %1016
    %v1018 = vsel %vm158, %v1009, 0.0
    %1019 = vadd.xlane.f32.xlu0 %v1018
    %v1020 = vpop.xlane.xlu0 %1019
    %v1021 = vsel %vm158, %v1010, 0.0
    %1022 = vadd.xlane.f32.xlu0 %v1021
    %v1023 = vpop.xlane.xlu0 %1022
    %v1024 = vsel %vm158, %v1011, 0.0
    %1025 = vadd.xlane.f32.xlu0 %v1024
    %v1026 = vpop.xlane.xlu0 %1025
    %v1027 = vmul.f32 %v1014, 0.032258064
    %v1028 = vmul.f32 %v1017, 0.032258064
    %v1029 = vmul.f32 %v1020, 0.032258064
    %v1030 = vmul.f32 %v1023, 0.032258064
    %v1031 = vmul.f32 %v1026, 0.032258064
    %v1032 = vrsqrt.pop %v1027
    %v1033 = vmul.f32 %v1032, %v1027
    %v1034 = vmul.f32 %v1033, %v1032
    %v1035 = vmul.f32 0.5, %v1034
    %v1036 = vsub.f32 1.5, %v1035
    %v1037 = vmul.f32 %v1032, %v1036
    %v1038 = vmul.f32 %v1027, %v1037
    %vm1039 = vcmp.eq.f32.partialorder %v1027, inf
    %v1040 = vsel %vm1039, %v1027, %v1038
    %vm1041 = vcmp.eq.f32.partialorder %v1027, 0.0
    %v1042 = vand.u32 %v1027, 2147483648
    %v1043 = vsel %vm1041, %v1042, %v1040
    %v1044 = vrsqrt.pop %v1028
    %v1045 = vmul.f32 %v1044, %v1028
    %v1046 = vmul.f32 %v1045, %v1044
    %v1047 = vmul.f32 0.5, %v1046
    %v1048 = vsub.f32 1.5, %v1047
    %v1049 = vmul.f32 %v1044, %v1048
    %v1050 = vmul.f32 %v1028, %v1049
    %vm1051 = vcmp.eq.f32.partialorder %v1028, inf
    %v1052 = vsel %vm1051, %v1028, %v1050
    %vm1053 = vcmp.eq.f32.partialorder %v1028, 0.0
    %v1054 = vand.u32 %v1028, 2147483648
    %v1055 = vsel %vm1053, %v1054, %v1052
    %v1056 = vrsqrt.pop %v1029
    %v1057 = vmul.f32 %v1056, %v1029
    %v1058 = vmul.f32 %v1057, %v1056
    %v1059 = vmul.f32 0.5, %v1058
    %v1060 = vsub.f32 1.5, %v1059
    %v1061 = vmul.f32 %v1056, %v1060
    %v1062 = vmul.f32 %v1029, %v1061
    %vm1063 = vcmp.eq.f32.partialorder %v1029, inf
    %v1064 = vsel %vm1063, %v1029, %v1062
    %vm1065 = vcmp.eq.f32.partialorder %v1029, 0.0
    %v1066 = vand.u32 %v1029, 2147483648
    %v1067 = vsel %vm1065, %v1066, %v1064
    %v1068 = vrsqrt.pop %v1030
    %v1069 = vmul.f32 %v1068, %v1030
    %v1070 = vmul.f32 %v1069, %v1068
    %v1071 = vmul.f32 0.5, %v1070
    %v1072 = vsub.f32 1.5, %v1071
    %v1073 = vmul.f32 %v1068, %v1072
    %v1074 = vmul.f32 %v1030, %v1073
    %vm1075 = vcmp.eq.f32.partialorder %v1030, inf
    %v1076 = vsel %vm1075, %v1030, %v1074
    %vm1077 = vcmp.eq.f32.partialorder %v1030, 0.0
    %v1078 = vand.u32 %v1030, 2147483648
    %v1079 = vsel %vm1077, %v1078, %v1076
    %v1080 = vrsqrt.pop %v1031
    %v1081 = vmul.f32 %v1080, %v1031
    %v1082 = vmul.f32 %v1081, %v1080
    %v1083 = vmul.f32 0.5, %v1082
    %v1084 = vsub.f32 1.5, %v1083
    %v1085 = vmul.f32 %v1080, %v1084
    %v1086 = vmul.f32 %v1031, %v1085
    %vm1087 = vcmp.eq.f32.partialorder %v1031, inf
    %v1088 = vsel %vm1087, %v1031, %v1086
    %vm1089 = vcmp.eq.f32.partialorder %v1031, 0.0
    %v1090 = vand.u32 %v1031, 2147483648
    %v1091 = vsel %vm1089, %v1090, %v1088
    %v1092 = vadd.f32 %v1043, 1e-06
    %v1093 = vadd.f32 %v1055, 1e-06
    %v1094 = vadd.f32 %v1067, 1e-06
    %v1095 = vadd.f32 %v1079, 1e-06
    %v1096 = vadd.f32 %v1091, 1e-06
    %v1097 = vrcp.pop %v1092
    %v1098 = vrcp.pop %v1093
    %v1099 = vrcp.pop %v1094
    %v1100 = vrcp.pop %v1095
    %v1101 = vrcp.pop %v1096
    %v1102 = vmul.f32 %v1002, %v1097
    %v1103 = vmul.f32 %v1003, %v1098
    %v1104 = vmul.f32 %v1004, %v1099
    %v1105 = vmul.f32 %v1005, %v1100
    %v1106 = vmul.f32 %v1006, %v1101
    %v1107 = vmul.f32 %v835, %v1102
    %v1108 = vmul.f32 %v835, %v1103
    %v1109 = vmul.f32 %v835, %v1104
    %v1110 = vmul.f32 %v835, %v1105
    %v1111 = vmul.f32 %v835, %v1106
    %v1112 = vadd.f32 %v1107, %v841
    %v1113 = vadd.f32 %v1108, %v841
    %v1114 = vadd.f32 %v1109, %v841
    %v1115 = vadd.f32 %v1110, %v841
    %v1116 = vadd.f32 %v1111, %v841
    %v1117 = vmul.f32 %v842, 0.17677669
    %v1118 = vmul.f32 %v843, 0.17677669
    %v1119 = vmul.f32 %v844, 0.17677669
    %v1120 = vmul.f32 %v845, 0.17677669
    %v1121 = vmul.f32 %v846, 0.17677669
    %v1123 = vsel %vm158, %v1117, 0
    %v1126 = vsel %vm158, %v1118, 0
    %v1129 = vsel %vm158, %v1119, 0
    %v1132 = vsel %vm158, %v1120, 0
    %v1135 = vsel %vm158, %v1121, 0
    %v1138 = vsel %vm158, %v977, 0
    %v1141 = vsel %vm158, %v978, 0
    %v1144 = vsel %vm158, %v979, 0
    %v1147 = vsel %vm158, %v980, 0
    %v1150 = vsel %vm158, %v981, 0
    %1152 = vmatpush.xpose.msra.mxu0 0.0
    %1153 = vmatpush.xpose.msra.mxu0 0.0
    %1154 = vmatpush.xpose.msra.mxu0 0.0
    %1155 = vmatpush.xpose.msra.mxu0 0.0
    %1156 = vmatpush.xpose.msra.mxu0 0.0
    %1157 = vmatpush.xpose.msra.mxu0 0.0
    %1158 = vmatpush.xpose.msra.mxu0 0.0
    %1159 = vmatpush.xpose.msra.mxu0 0.0
    %1160 = vmatpush.xpose.msra.mxu0 0.0
    %1161 = vmatpush.xpose.msra.mxu0 0.0
    %1162 = vmatpush.xpose.msra.mxu0 0.0
    %1163 = vmatpush.xpose.msra.mxu0 %v1150
    %1164 = vmatpush.xpose.msra.mxu0 %v1147
    %1165 = vmatpush.xpose.msra.mxu0 %v1144
    %1166 = vmatpush.xpose.msra.mxu0 %v1141
    %1167 = vmatpush.xpose.msra.mxu0 %v1138
    %1168 = vmatmul.f32.gmra.mxu0 %v1123
    %v1169 = vpop.f32.mrf.mxu0
    %v1170 = vadd.f32 %v696, %v1169
    %1171 = vmatmul.f32.gmra.mxu0 %v1126
    %v1172 = vpop.f32.mrf.mxu0
    %v1173 = vadd.f32 %v697, %v1172
    %1174 = vmatmul.f32.gmra.mxu0 %v1129
    %v1175 = vpop.f32.mrf.mxu0
    %v1176 = vadd.f32 %v698, %v1175
    %1177 = vmatmul.f32.gmra.mxu0 %v1132
    %v1178 = vpop.f32.mrf.mxu0
    %v1179 = vadd.f32 %v699, %v1178
    %1180 = vmatmul.f32.gmra.mxu0 %v1135
    %v1181 = vpop.f32.mrf.mxu0
    %v1182 = vadd.f32 %v700, %v1181
    %1183 = vdwg.mxu0
    %vm1184 = vcmask 326656
    %v1185 = vsel %vm1184, %v1170, -inf
    %1186 = vmax.xlane.f32.xlu0 %v1185
    %v1187 = vpop.xlane.xlu0 %1186
    %v1188 = vsel %vm1184, %v1173, -inf
    %1189 = vmax.xlane.f32.xlu0 %v1188
    %v1190 = vpop.xlane.xlu0 %1189
    %v1191 = vsel %vm1184, %v1176, -inf
    %1192 = vmax.xlane.f32.xlu0 %v1191
    %v1193 = vpop.xlane.xlu0 %1192
    %v1194 = vsel %vm1184, %v1179, -inf
    %1195 = vmax.xlane.f32.xlu0 %v1194
    %v1196 = vpop.xlane.xlu0 %1195
    %v1197 = vsel %vm1184, %v1182, -inf
    %1198 = vmax.xlane.f32.xlu0 %v1197
    %v1199 = vpop.xlane.xlu0 %1198
    %v1200 = vsub.f32 %v1170, %v1187
    %v1201 = vsub.f32 %v1173, %v1190
    %v1202 = vsub.f32 %v1176, %v1193
    %v1203 = vsub.f32 %v1179, %v1196
    %v1204 = vsub.f32 %v1182, %v1199
    %v1205 = vmul.f32 %v1200, 1.442695
    %v1206 = vpow.pop %v1205
    %v1207 = vmul.f32 %v1201, 1.442695
    %v1208 = vpow.pop %v1207
    %v1209 = vmul.f32 %v1202, 1.442695
    %v1210 = vpow.pop %v1209
    %v1211 = vmul.f32 %v1203, 1.442695
    %v1212 = vpow.pop %v1211
    %v1213 = vmul.f32 %v1204, 1.442695
    %v1214 = vpow.pop %v1213
    %v1215 = vsel %vm1184, %v1206, 0.0
    %1216 = vadd.xlane.f32.xlu0 %v1215
    %v1217 = vpop.xlane.xlu0 %1216
    %v1218 = vsel %vm1184, %v1208, 0.0
    %1219 = vadd.xlane.f32.xlu0 %v1218
    %v1220 = vpop.xlane.xlu0 %1219
    %v1221 = vsel %vm1184, %v1210, 0.0
    %1222 = vadd.xlane.f32.xlu0 %v1221
    %v1223 = vpop.xlane.xlu0 %1222
    %v1224 = vsel %vm1184, %v1212, 0.0
    %1225 = vadd.xlane.f32.xlu0 %v1224
    %v1226 = vpop.xlane.xlu0 %1225
    %v1227 = vsel %vm1184, %v1214, 0.0
    %1228 = vadd.xlane.f32.xlu0 %v1227
    %v1229 = vpop.xlane.xlu0 %1228
    %v1230 = vrcp.pop %v1217
    %v1231 = vrcp.pop %v1220
    %v1232 = vrcp.pop %v1223
    %v1233 = vrcp.pop %v1226
    %v1234 = vrcp.pop %v1229
    %v1235 = vmul.f32 %v1206, %v1230
    %v1236 = vmul.f32 %v1208, %v1231
    %v1237 = vmul.f32 %v1210, %v1232
    %v1238 = vmul.f32 %v1212, %v1233
    %v1239 = vmul.f32 %v1214, %v1234
    %v1241 = vsel %vm1184, %v1235, 0
    %v1244 = vsel %vm1184, %v1236, 0
    %v1247 = vsel %vm1184, %v1237, 0
    %v1250 = vsel %vm1184, %v1238, 0
    %v1253 = vsel %vm1184, %v1239, 0
    %1255 = vmatpush.msra.mxu0 0.0
    %1256 = vmatpush.msra.mxu0 0.0
    %1257 = vmatpush.msra.mxu0 0.0
    %1258 = vmatpush.msra.mxu0 0.0
    %1259 = vmatpush.msra.mxu0 0.0
    %1260 = vmatpush.msra.mxu0 0.0
    %1261 = vmatpush.msra.mxu0 0.0
    %1262 = vmatpush.msra.mxu0 0.0
    %1263 = vmatpush.msra.mxu0 0.0
    %1264 = vmatpush.msra.mxu0 0.0
    %1265 = vmatpush.msra.mxu0 0.0
    %1266 = vmatpush.msra.mxu0 %v1116
    %1267 = vmatpush.msra.mxu0 %v1115
    %1268 = vmatpush.msra.mxu0 %v1114
    %1269 = vmatpush.msra.mxu0 %v1113
    %1270 = vmatpush.msra.mxu0 %v1112
    %1271 = vmatmul.f32.gmra.mxu0 %v1241
    %v1272 = vpop.f32.mrf.mxu0
    %v1273 = vadd.f32 0.0, %v1272
    %1274 = vmatmul.f32.gmra.mxu0 %v1244
    %v1275 = vpop.f32.mrf.mxu0
    %v1276 = vadd.f32 0.0, %v1275
    %1277 = vmatmul.f32.gmra.mxu0 %v1247
    %v1278 = vpop.f32.mrf.mxu0
    %v1279 = vadd.f32 0.0, %v1278
    %1280 = vmatmul.f32.gmra.mxu0 %v1250
    %v1281 = vpop.f32.mrf.mxu0
    %v1282 = vadd.f32 0.0, %v1281
    %1283 = vmatmul.f32.gmra.mxu0 %v1253
    %v1284 = vpop.f32.mrf.mxu0
    %v1285 = vadd.f32 0.0, %v1284
    %1286 = vdwg.mxu0
    %v1287 = vadd.f32 %v650, %v1273
    %v1288 = vadd.f32 %v653, %v1276
    %v1289 = vadd.f32 %v656, %v1279
    %v1290 = vadd.f32 %v659, %v1282
    %v1291 = vadd.f32 %v662, %v1285
    %v1292 = vsel %vm158, %v1287, 0.0
    %1293 = vadd.xlane.f32.xlu0 %v1292
    %v1294 = vpop.xlane.xlu0 %1293
    %v1295 = vsel %vm158, %v1288, 0.0
    %1296 = vadd.xlane.f32.xlu0 %v1295
    %v1297 = vpop.xlane.xlu0 %1296
    %v1298 = vsel %vm158, %v1289, 0.0
    %1299 = vadd.xlane.f32.xlu0 %v1298
    %v1300 = vpop.xlane.xlu0 %1299
    %v1301 = vsel %vm158, %v1290, 0.0
    %1302 = vadd.xlane.f32.xlu0 %v1301
    %v1303 = vpop.xlane.xlu0 %1302
    %v1304 = vsel %vm158, %v1291, 0.0
    %1305 = vadd.xlane.f32.xlu0 %v1304
    %v1306 = vpop.xlane.xlu0 %1305
    %v1307 = vmul.f32 %v1294, %v724
    %v1308 = vmul.f32 %v1297, %v724
    %v1309 = vmul.f32 %v1300, %v724
    %v1310 = vmul.f32 %v1303, %v724
    %v1311 = vmul.f32 %v1306, %v724
    %v1312 = vsub.f32 %v1287, %v1307
    %v1313 = vsub.f32 %v1288, %v1308
    %v1314 = vsub.f32 %v1289, %v1309
    %v1315 = vsub.f32 %v1290, %v1310
    %v1316 = vsub.f32 %v1291, %v1311
    %v1317 = vmul.f32 %v1312, %v1312
    %v1318 = vmul.f32 %v1313, %v1313
    %v1319 = vmul.f32 %v1314, %v1314
    %v1320 = vmul.f32 %v1315, %v1315
    %v1321 = vmul.f32 %v1316, %v1316
    %v1322 = vsel %vm158, %v1317, 0.0
    %1323 = vadd.xlane.f32.xlu0 %v1322
    %v1324 = vpop.xlane.xlu0 %1323
    %v1325 = vsel %vm158, %v1318, 0.0
    %1326 = vadd.xlane.f32.xlu0 %v1325
    %v1327 = vpop.xlane.xlu0 %1326
    %v1328 = vsel %vm158, %v1319, 0.0
    %1329 = vadd.xlane.f32.xlu0 %v1328
    %v1330 = vpop.xlane.xlu0 %1329
    %v1331 = vsel %vm158, %v1320, 0.0
    %1332 = vadd.xlane.f32.xlu0 %v1331
    %v1333 = vpop.xlane.xlu0 %1332
    %v1334 = vsel %vm158, %v1321, 0.0
    %1335 = vadd.xlane.f32.xlu0 %v1334
    %v1336 = vpop.xlane.xlu0 %1335
    %v1337 = vmul.f32 %v1324, 0.032258064
    %v1338 = vmul.f32 %v1327, 0.032258064
    %v1339 = vmul.f32 %v1330, 0.032258064
    %v1340 = vmul.f32 %v1333, 0.032258064
    %v1341 = vmul.f32 %v1336, 0.032258064
    %v1342 = vrsqrt.pop %v1337
    %v1343 = vmul.f32 %v1342, %v1337
    %v1344 = vmul.f32 %v1343, %v1342
    %v1345 = vmul.f32 0.5, %v1344
    %v1346 = vsub.f32 1.5, %v1345
    %v1347 = vmul.f32 %v1342, %v1346
    %v1348 = vmul.f32 %v1337, %v1347
    %vm1349 = vcmp.eq.f32.partialorder %v1337, inf
    %v1350 = vsel %vm1349, %v1337, %v1348
    %vm1351 = vcmp.eq.f32.partialorder %v1337, 0.0
    %v1352 = vand.u32 %v1337, 2147483648
    %v1353 = vsel %vm1351, %v1352, %v1350
    %v1354 = vrsqrt.pop %v1338
    %v1355 = vmul.f32 %v1354, %v1338
    %v1356 = vmul.f32 %v1355, %v1354
    %v1357 = vmul.f32 0.5, %v1356
    %v1358 = vsub.f32 1.5, %v1357
    %v1359 = vmul.f32 %v1354, %v1358
    %v1360 = vmul.f32 %v1338, %v1359
    %vm1361 = vcmp.eq.f32.partialorder %v1338, inf
    %v1362 = vsel %vm1361, %v1338, %v1360
    %vm1363 = vcmp.eq.f32.partialorder %v1338, 0.0
    %v1364 = vand.u32 %v1338, 2147483648
    %v1365 = vsel %vm1363, %v1364, %v1362
    %v1366 = vrsqrt.pop %v1339
    %v1367 = vmul.f32 %v1366, %v1339
    %v1368 = vmul.f32 %v1367, %v1366
    %v1369 = vmul.f32 0.5, %v1368
    %v1370 = vsub.f32 1.5, %v1369
    %v1371 = vmul.f32 %v1366, %v1370
    %v1372 = vmul.f32 %v1339, %v1371
    %vm1373 = vcmp.eq.f32.partialorder %v1339, inf
    %v1374 = vsel %vm1373, %v1339, %v1372
    %vm1375 = vcmp.eq.f32.partialorder %v1339, 0.0
    %v1376 = vand.u32 %v1339, 2147483648
    %v1377 = vsel %vm1375, %v1376, %v1374
    %v1378 = vrsqrt.pop %v1340
    %v1379 = vmul.f32 %v1378, %v1340
    %v1380 = vmul.f32 %v1379, %v1378
    %v1381 = vmul.f32 0.5, %v1380
    %v1382 = vsub.f32 1.5, %v1381
    %v1383 = vmul.f32 %v1378, %v1382
    %v1384 = vmul.f32 %v1340, %v1383
    %vm1385 = vcmp.eq.f32.partialorder %v1340, inf
    %v1386 = vsel %vm1385, %v1340, %v1384
    %vm1387 = vcmp.eq.f32.partialorder %v1340, 0.0
    %v1388 = vand.u32 %v1340, 2147483648
    %v1389 = vsel %vm1387, %v1388, %v1386
    %v1390 = vrsqrt.pop %v1341
    %v1391 = vmul.f32 %v1390, %v1341
    %v1392 = vmul.f32 %v1391, %v1390
    %v1393 = vmul.f32 0.5, %v1392
    %v1394 = vsub.f32 1.5, %v1393
    %v1395 = vmul.f32 %v1390, %v1394
    %v1396 = vmul.f32 %v1341, %v1395
    %vm1397 = vcmp.eq.f32.partialorder %v1341, inf
    %v1398 = vsel %vm1397, %v1341, %v1396
    %vm1399 = vcmp.eq.f32.partialorder %v1341, 0.0
    %v1400 = vand.u32 %v1341, 2147483648
    %v1401 = vsel %vm1399, %v1400, %v1398
    %v1402 = vadd.f32 %v1353, 1e-06
    %v1403 = vadd.f32 %v1365, 1e-06
    %v1404 = vadd.f32 %v1377, 1e-06
    %v1405 = vadd.f32 %v1389, 1e-06
    %v1406 = vadd.f32 %v1401, 1e-06
    %v1407 = vrcp.pop %v1402
    %v1408 = vrcp.pop %v1403
    %v1409 = vrcp.pop %v1404
    %v1410 = vrcp.pop %v1405
    %v1411 = vrcp.pop %v1406
    %v1412 = vmul.f32 %v1312, %v1407
    %v1413 = vmul.f32 %v1313, %v1408
    %v1414 = vmul.f32 %v1314, %v1409
    %v1415 = vmul.f32 %v1315, %v1410
    %v1416 = vmul.f32 %v1316, %v1411
    %v1417 = vperm.slane %v701, 1
    %v1418 = vmul.f32 %v1417, %v1412
    %v1419 = vmul.f32 %v1417, %v1413
    %v1420 = vmul.f32 %v1417, %v1414
    %v1421 = vmul.f32 %v1417, %v1415
    %v1422 = vmul.f32 %v1417, %v1416
    %v1423 = vperm.slane %v702, 1
    %v1424 = vadd.f32 %v1418, %v1423
    %v1425 = vadd.f32 %v1419, %v1423
    %v1426 = vadd.f32 %v1420, %v1423
    %v1427 = vadd.f32 %v1421, %v1423
    %v1428 = vadd.f32 %v1422, %v1423
    %v1429 = vld [vmem:[%s55] sm:$0xff]
    %v1430 = vld [vmem:[%s55 + $0x8] sm:$0xff]
    %v1431 = vld [vmem:[%s55 + $0x10] sm:$0xff]
    %v1432 = vld [vmem:[%s55 + $0x18] sm:$0xff]
    %v1433 = vld [vmem:[%s55 + $0x20] sm:$0xff]
    %v1434 = vld [vmem:[%s55 + $0x28] sm:$0xff]
    %v1435 = vld [vmem:[%s55 + $0x30] sm:$0xff]
    %v1436 = vld [vmem:[%s55 + $0x38] sm:$0xff]
    %v1437 = vld [vmem:[%s55 + $0x40] sm:$0xff]
    %v1438 = vld [vmem:[%s55 + $0x48] sm:$0xff]
    %v1439 = vld [vmem:[%s55 + $0x50] sm:$0xff]
    %v1440 = vld [vmem:[%s55 + $0x58] sm:$0xff]
    %v1441 = vld [vmem:[%s55 + $0x60] sm:$0xff]
    %v1442 = vld [vmem:[%s55 + $0x68] sm:$0xff]
    %v1443 = vld [vmem:[%s55 + $0x70] sm:$0xff]
    %v1444 = vld [vmem:[%s55 + $0x78] sm:$0xff]
    %v1445 = vld [vmem:[%s57] sm:$0xf]
    %v1447 = vperm.slane %v1445, 0
    %v1448 = vperm.slane %v1445, 1
    %v1449 = vperm.slane %v1445, 2
    %v1450 = vperm.slane %v1445, 3
    %v1456 = vsel %vm158, %v1424, 0
    %v1459 = vsel %vm158, %v1425, 0
    %v1462 = vsel %vm158, %v1426, 0
    %v1465 = vsel %vm158, %v1427, 0
    %v1468 = vsel %vm158, %v1428, 0
    %1470 = vmatpush.msra.mxu0 0.0
    %1471 = vmatpush.msra.mxu0 0.0
    %1472 = vmatpush.msra.mxu0 0.0
    %1473 = vmatpush.msra.mxu0 0.0
    %1474 = vmatpush.msra.mxu0 0.0
    %1475 = vmatpush.msra.mxu0 0.0
    %1476 = vmatpush.msra.mxu0 0.0
    %1477 = vmatpush.msra.mxu0 0.0
    %1478 = vmatpush.msra.mxu0 0.0
    %1479 = vmatpush.msra.mxu0 0.0
    %1480 = vmatpush.msra.mxu0 0.0
    %1481 = vmatpush.msra.mxu0 0.0
    %1482 = vmatpush.msra.mxu0 %v1441
    %1483 = vmatpush.msra.mxu0 %v1437
    %1484 = vmatpush.msra.mxu0 %v1433
    %1485 = vmatpush.msra.mxu0 %v1429
    %1486 = vmatmul.f32.gmra.mxu0 %v1456
    %v1487 = vpop.f32.mrf.mxu0
    %v1488 = vadd.f32 %v1447, %v1487
    %1489 = vmatmul.f32.gmra.mxu0 %v1459
    %v1490 = vpop.f32.mrf.mxu0
    %v1491 = vadd.f32 %v1447, %v1490
    %1492 = vmatmul.f32.gmra.mxu0 %v1462
    %v1493 = vpop.f32.mrf.mxu0
    %v1494 = vadd.f32 %v1447, %v1493
    %1495 = vmatmul.f32.gmra.mxu0 %v1465
    %v1496 = vpop.f32.mrf.mxu0
    %v1497 = vadd.f32 %v1447, %v1496
    %1498 = vmatmul.f32.gmra.mxu0 %v1468
    %v1499 = vpop.f32.mrf.mxu0
    %v1500 = vadd.f32 %v1447, %v1499
    %1501 = vdwg.mxu0
    %1502 = vmatpush.msra.mxu0 0.0
    %1503 = vmatpush.msra.mxu0 0.0
    %1504 = vmatpush.msra.mxu0 0.0
    %1505 = vmatpush.msra.mxu0 0.0
    %1506 = vmatpush.msra.mxu0 0.0
    %1507 = vmatpush.msra.mxu0 0.0
    %1508 = vmatpush.msra.mxu0 0.0
    %1509 = vmatpush.msra.mxu0 0.0
    %1510 = vmatpush.msra.mxu0 0.0
    %1511 = vmatpush.msra.mxu0 0.0
    %1512 = vmatpush.msra.mxu0 0.0
    %1513 = vmatpush.msra.mxu0 0.0
    %1514 = vmatpush.msra.mxu0 %v1442
    %1515 = vmatpush.msra.mxu0 %v1438
    %1516 = vmatpush.msra.mxu0 %v1434
    %1517 = vmatpush.msra.mxu0 %v1430
    %1518 = vmatmul.f32.gmra.mxu0 %v1456
    %v1519 = vpop.f32.mrf.mxu0
    %v1520 = vadd.f32 %v1448, %v1519
    %1521 = vmatmul.f32.gmra.mxu0 %v1459
    %v1522 = vpop.f32.mrf.mxu0
    %v1523 = vadd.f32 %v1448, %v1522
    %1524 = vmatmul.f32.gmra.mxu0 %v1462
    %v1525 = vpop.f32.mrf.mxu0
    %v1526 = vadd.f32 %v1448, %v1525
    %1527 = vmatmul.f32.gmra.mxu0 %v1465
    %v1528 = vpop.f32.mrf.mxu0
    %v1529 = vadd.f32 %v1448, %v1528
    %1530 = vmatmul.f32.gmra.mxu0 %v1468
    %v1531 = vpop.f32.mrf.mxu0
    %v1532 = vadd.f32 %v1448, %v1531
    %1533 = vdwg.mxu0
    %1534 = vmatpush.msra.mxu0 0.0
    %1535 = vmatpush.msra.mxu0 0.0
    %1536 = vmatpush.msra.mxu0 0.0
    %1537 = vmatpush.msra.mxu0 0.0
    %1538 = vmatpush.msra.mxu0 0.0
    %1539 = vmatpush.msra.mxu0 0.0
    %1540 = vmatpush.msra.mxu0 0.0
    %1541 = vmatpush.msra.mxu0 0.0
    %1542 = vmatpush.msra.mxu0 0.0
    %1543 = vmatpush.msra.mxu0 0.0
    %1544 = vmatpush.msra.mxu0 0.0
    %1545 = vmatpush.msra.mxu0 0.0
    %1546 = vmatpush.msra.mxu0 %v1443
    %1547 = vmatpush.msra.mxu0 %v1439
    %1548 = vmatpush.msra.mxu0 %v1435
    %1549 = vmatpush.msra.mxu0 %v1431
    %1550 = vmatmul.f32.gmra.mxu0 %v1456
    %v1551 = vpop.f32.mrf.mxu0
    %v1552 = vadd.f32 %v1449, %v1551
    %1553 = vmatmul.f32.gmra.mxu0 %v1459
    %v1554 = vpop.f32.mrf.mxu0
    %v1555 = vadd.f32 %v1449, %v1554
    %1556 = vmatmul.f32.gmra.mxu0 %v1462
    %v1557 = vpop.f32.mrf.mxu0
    %v1558 = vadd.f32 %v1449, %v1557
    %1559 = vmatmul.f32.gmra.mxu0 %v1465
    %v1560 = vpop.f32.mrf.mxu0
    %v1561 = vadd.f32 %v1449, %v1560
    %1562 = vmatmul.f32.gmra.mxu0 %v1468
    %v1563 = vpop.f32.mrf.mxu0
    %v1564 = vadd.f32 %v1449, %v1563
    %1565 = vdwg.mxu0
    %1566 = vmatpush.msra.mxu0 0.0
    %1567 = vmatpush.msra.mxu0 0.0
    %1568 = vmatpush.msra.mxu0 0.0
    %1569 = vmatpush.msra.mxu0 0.0
    %1570 = vmatpush.msra.mxu0 0.0
    %1571 = vmatpush.msra.mxu0 0.0
    %1572 = vmatpush.msra.mxu0 0.0
    %1573 = vmatpush.msra.mxu0 0.0
    %1574 = vmatpush.msra.mxu0 0.0
    %1575 = vmatpush.msra.mxu0 0.0
    %1576 = vmatpush.msra.mxu0 0.0
    %1577 = vmatpush.msra.mxu0 0.0
    %1578 = vmatpush.msra.mxu0 %v1444
    %1579 = vmatpush.msra.mxu0 %v1440
    %1580 = vmatpush.msra.mxu0 %v1436
    %1581 = vmatpush.msra.mxu0 %v1432
    %1582 = vmatmul.f32.gmra.mxu0 %v1456
    %v1583 = vpop.f32.mrf.mxu0
    %v1584 = vadd.f32 %v1450, %v1583
    %1585 = vmatmul.f32.gmra.mxu0 %v1459
    %v1586 = vpop.f32.mrf.mxu0
    %v1587 = vadd.f32 %v1450, %v1586
    %1588 = vmatmul.f32.gmra.mxu0 %v1462
    %v1589 = vpop.f32.mrf.mxu0
    %v1590 = vadd.f32 %v1450, %v1589
    %1591 = vmatmul.f32.gmra.mxu0 %v1465
    %v1592 = vpop.f32.mrf.mxu0
    %v1593 = vadd.f32 %v1450, %v1592
    %1594 = vmatmul.f32.gmra.mxu0 %v1468
    %v1595 = vpop.f32.mrf.mxu0
    %v1596 = vadd.f32 %v1450, %v1595
    %1597 = vdwg.mxu0
    %v1598 = vmax.f32 %v1488, 0.0
    %v1599 = vmax.f32 %v1520, 0.0
    %v1600 = vmax.f32 %v1552, 0.0
    %v1601 = vmax.f32 %v1584, 0.0
    %v1602 = vmax.f32 %v1491, 0.0
    %v1603 = vmax.f32 %v1523, 0.0
    %v1604 = vmax.f32 %v1555, 0.0
    %v1605 = vmax.f32 %v1587, 0.0
    %v1606 = vmax.f32 %v1494, 0.0
    %v1607 = vmax.f32 %v1526, 0.0
    %v1608 = vmax.f32 %v1558, 0.0
    %v1609 = vmax.f32 %v1590, 0.0
    %v1610 = vmax.f32 %v1497, 0.0
    %v1611 = vmax.f32 %v1529, 0.0
    %v1612 = vmax.f32 %v1561, 0.0
    %v1613 = vmax.f32 %v1593, 0.0
    %v1614 = vmax.f32 %v1500, 0.0
    %v1615 = vmax.f32 %v1532, 0.0
    %v1616 = vmax.f32 %v1564, 0.0
    %v1617 = vmax.f32 %v1596, 0.0
    %v1618 = vld [vmem:[%s59] sm:$0xff]
    %v1619 = vld [vmem:[%s59 + $0x8] sm:$0xff]
    %v1620 = vld [vmem:[%s59 + $0x10] sm:$0xff]
    %v1621 = vld [vmem:[%s59 + $0x18] sm:$0xff]
    %v1622 = vld [vmem:[%s59 + $0x20] sm:$0xff]
    %v1623 = vld [vmem:[%s59 + $0x28] sm:$0xff]
    %v1624 = vld [vmem:[%s59 + $0x30] sm:$0xff]
    %v1625 = vld [vmem:[%s59 + $0x38] sm:$0xff]
    %v1626 = vld [vmem:[%s59 + $0x40] sm:$0xff]
    %v1627 = vld [vmem:[%s59 + $0x48] sm:$0xff]
    %v1628 = vld [vmem:[%s59 + $0x50] sm:$0xff]
    %v1629 = vld [vmem:[%s59 + $0x58] sm:$0xff]
    %v1630 = vld [vmem:[%s59 + $0x60] sm:$0xff]
    %v1631 = vld [vmem:[%s59 + $0x68] sm:$0xff]
    %v1632 = vld [vmem:[%s59 + $0x70] sm:$0xff]
    %v1633 = vld [vmem:[%s59 + $0x78] sm:$0xff]
    %v1634 = vld [vmem:[%s59 + $0x80] sm:$0xff]
    %v1635 = vld [vmem:[%s59 + $0x88] sm:$0xff]
    %v1636 = vld [vmem:[%s59 + $0x90] sm:$0xff]
    %v1637 = vld [vmem:[%s59 + $0x98] sm:$0xff]
    %v1638 = vld [vmem:[%s59 + $0xa0] sm:$0xff]
    %v1639 = vld [vmem:[%s59 + $0xa8] sm:$0xff]
    %v1640 = vld [vmem:[%s59 + $0xb0] sm:$0xff]
    %v1641 = vld [vmem:[%s59 + $0xb8] sm:$0xff]
    %v1642 = vld [vmem:[%s59 + $0xc0] sm:$0xff]
    %v1643 = vld [vmem:[%s59 + $0xc8] sm:$0xff]
    %v1644 = vld [vmem:[%s59 + $0xd0] sm:$0xff]
    %v1645 = vld [vmem:[%s59 + $0xd8] sm:$0xff]
    %v1646 = vld [vmem:[%s59 + $0xe0] sm:$0xff]
    %v1647 = vld [vmem:[%s59 + $0xe8] sm:$0xff]
    %v1648 = vld [vmem:[%s59 + $0xf0] sm:$0xff]
    %v1649 = vld [vmem:[%s59 + $0xf8] sm:$0xff]
    %v1650 = vld [vmem:[%s59 + $0x100] sm:$0xff]
    %v1651 = vld [vmem:[%s59 + $0x108] sm:$0xff]
    %v1652 = vld [vmem:[%s59 + $0x110] sm:$0xff]
    %v1653 = vld [vmem:[%s59 + $0x118] sm:$0xff]
    %v1654 = vld [vmem:[%s59 + $0x120] sm:$0xff]
    %v1655 = vld [vmem:[%s59 + $0x128] sm:$0xff]
    %v1656 = vld [vmem:[%s59 + $0x130] sm:$0xff]
    %v1657 = vld [vmem:[%s59 + $0x138] sm:$0xff]
    %v1658 = vld [vmem:[%s59 + $0x140] sm:$0xff]
    %v1659 = vld [vmem:[%s59 + $0x148] sm:$0xff]
    %v1660 = vld [vmem:[%s59 + $0x150] sm:$0xff]
    %v1661 = vld [vmem:[%s59 + $0x158] sm:$0xff]
    %v1662 = vld [vmem:[%s59 + $0x160] sm:$0xff]
    %v1663 = vld [vmem:[%s59 + $0x168] sm:$0xff]
    %v1664 = vld [vmem:[%s59 + $0x170] sm:$0xff]
    %v1665 = vld [vmem:[%s59 + $0x178] sm:$0xff]
    %v1666 = vld [vmem:[%s59 + $0x180] sm:$0xff]
    %v1667 = vld [vmem:[%s59 + $0x188] sm:$0xff]
    %v1668 = vld [vmem:[%s59 + $0x190] sm:$0xff]
    %v1669 = vld [vmem:[%s59 + $0x198] sm:$0xff]
    %v1670 = vld [vmem:[%s59 + $0x1a0] sm:$0xff]
    %v1671 = vld [vmem:[%s59 + $0x1a8] sm:$0xff]
    %v1672 = vld [vmem:[%s59 + $0x1b0] sm:$0xff]
    %v1673 = vld [vmem:[%s59 + $0x1b8] sm:$0xff]
    %v1674 = vld [vmem:[%s59 + $0x1c0] sm:$0xff]
    %v1675 = vld [vmem:[%s59 + $0x1c8] sm:$0xff]
    %v1676 = vld [vmem:[%s59 + $0x1d0] sm:$0xff]
    %v1677 = vld [vmem:[%s59 + $0x1d8] sm:$0xff]
    %v1678 = vld [vmem:[%s59 + $0x1e0] sm:$0xff]
    %v1679 = vld [vmem:[%s59 + $0x1e8] sm:$0xff]
    %v1680 = vld [vmem:[%s59 + $0x1f0] sm:$0xff]
    %v1681 = vld [vmem:[%s59 + $0x1f8] sm:$0xff]
    %1682 = vmatpush.msra.mxu0 %v1633
    %1683 = vmatpush.msra.mxu0 %v1632
    %1684 = vmatpush.msra.mxu0 %v1631
    %1685 = vmatpush.msra.mxu0 %v1630
    %1686 = vmatpush.msra.mxu0 %v1629
    %1687 = vmatpush.msra.mxu0 %v1628
    %1688 = vmatpush.msra.mxu0 %v1627
    %1689 = vmatpush.msra.mxu0 %v1626
    %1690 = vmatpush.msra.mxu0 %v1625
    %1691 = vmatpush.msra.mxu0 %v1624
    %1692 = vmatpush.msra.mxu0 %v1623
    %1693 = vmatpush.msra.mxu0 %v1622
    %1694 = vmatpush.msra.mxu0 %v1621
    %1695 = vmatpush.msra.mxu0 %v1620
    %1696 = vmatpush.msra.mxu0 %v1619
    %1697 = vmatpush.msra.mxu0 %v1618
    %1698 = vmatmul.f32.gmra.mxu0 %v1598
    %v1699 = vpop.f32.mrf.mxu0
    %v1700 = vadd.f32 0.0, %v1699
    %1701 = vmatmul.f32.gmra.mxu0 %v1602
    %v1702 = vpop.f32.mrf.mxu0
    %v1703 = vadd.f32 0.0, %v1702
    %1704 = vmatmul.f32.gmra.mxu0 %v1606
    %v1705 = vpop.f32.mrf.mxu0
    %v1706 = vadd.f32 0.0, %v1705
    %1707 = vmatmul.f32.gmra.mxu0 %v1610
    %v1708 = vpop.f32.mrf.mxu0
    %v1709 = vadd.f32 0.0, %v1708
    %1710 = vmatmul.f32.gmra.mxu0 %v1614
    %v1711 = vpop.f32.mrf.mxu0
    %v1712 = vadd.f32 0.0, %v1711
    %1713 = vdwg.mxu0
    %1714 = vmatpush.msra.mxu0 %v1649
    %1715 = vmatpush.msra.mxu0 %v1648
    %1716 = vmatpush.msra.mxu0 %v1647
    %1717 = vmatpush.msra.mxu0 %v1646
    %1718 = vmatpush.msra.mxu0 %v1645
    %1719 = vmatpush.msra.mxu0 %v1644
    %1720 = vmatpush.msra.mxu0 %v1643
    %1721 = vmatpush.msra.mxu0 %v1642
    %1722 = vmatpush.msra.mxu0 %v1641
    %1723 = vmatpush.msra.mxu0 %v1640
    %1724 = vmatpush.msra.mxu0 %v1639
    %1725 = vmatpush.msra.mxu0 %v1638
    %1726 = vmatpush.msra.mxu0 %v1637
    %1727 = vmatpush.msra.mxu0 %v1636
    %1728 = vmatpush.msra.mxu0 %v1635
    %1729 = vmatpush.msra.mxu0 %v1634
    %1730 = vmatmul.f32.gmra.mxu0 %v1599
    %v1731 = vpop.f32.mrf.mxu0
    %v1732 = vadd.f32 %v1700, %v1731
    %1733 = vmatmul.f32.gmra.mxu0 %v1603
    %v1734 = vpop.f32.mrf.mxu0
    %v1735 = vadd.f32 %v1703, %v1734
    %1736 = vmatmul.f32.gmra.mxu0 %v1607
    %v1737 = vpop.f32.mrf.mxu0
    %v1738 = vadd.f32 %v1706, %v1737
    %1739 = vmatmul.f32.gmra.mxu0 %v1611
    %v1740 = vpop.f32.mrf.mxu0
    %v1741 = vadd.f32 %v1709, %v1740
    %1742 = vmatmul.f32.gmra.mxu0 %v1615
    %v1743 = vpop.f32.mrf.mxu0
    %v1744 = vadd.f32 %v1712, %v1743
    %1745 = vdwg.mxu0
    %1746 = vmatpush.msra.mxu0 %v1665
    %1747 = vmatpush.msra.mxu0 %v1664
    %1748 = vmatpush.msra.mxu0 %v1663
    %1749 = vmatpush.msra.mxu0 %v1662
    %1750 = vmatpush.msra.mxu0 %v1661
    %1751 = vmatpush.msra.mxu0 %v1660
    %1752 = vmatpush.msra.mxu0 %v1659
    %1753 = vmatpush.msra.mxu0 %v1658
    %1754 = vmatpush.msra.mxu0 %v1657
    %1755 = vmatpush.msra.mxu0 %v1656
    %1756 = vmatpush.msra.mxu0 %v1655
    %1757 = vmatpush.msra.mxu0 %v1654
    %1758 = vmatpush.msra.mxu0 %v1653
    %1759 = vmatpush.msra.mxu0 %v1652
    %1760 = vmatpush.msra.mxu0 %v1651
    %1761 = vmatpush.msra.mxu0 %v1650
    %1762 = vmatmul.f32.gmra.mxu0 %v1600
    %v1763 = vpop.f32.mrf.mxu0
    %v1764 = vadd.f32 %v1732, %v1763
    %1765 = vmatmul.f32.gmra.mxu0 %v1604
    %v1766 = vpop.f32.mrf.mxu0
    %v1767 = vadd.f32 %v1735, %v1766
    %1768 = vmatmul.f32.gmra.mxu0 %v1608
    %v1769 = vpop.f32.mrf.mxu0
    %v1770 = vadd.f32 %v1738, %v1769
    %1771 = vmatmul.f32.gmra.mxu0 %v1612
    %v1772 = vpop.f32.mrf.mxu0
    %v1773 = vadd.f32 %v1741, %v1772
    %1774 = vmatmul.f32.gmra.mxu0 %v1616
    %v1775 = vpop.f32.mrf.mxu0
    %v1776 = vadd.f32 %v1744, %v1775
    %1777 = vdwg.mxu0
    %1778 = vmatpush.msra.mxu0 %v1681
    %1779 = vmatpush.msra.mxu0 %v1680
    %1780 = vmatpush.msra.mxu0 %v1679
    %1781 = vmatpush.msra.mxu0 %v1678
    %1782 = vmatpush.msra.mxu0 %v1677
    %1783 = vmatpush.msra.mxu0 %v1676
    %1784 = vmatpush.msra.mxu0 %v1675
    %1785 = vmatpush.msra.mxu0 %v1674
    %1786 = vmatpush.msra.mxu0 %v1673
    %1787 = vmatpush.msra.mxu0 %v1672
    %1788 = vmatpush.msra.mxu0 %v1671
    %1789 = vmatpush.msra.mxu0 %v1670
    %1790 = vmatpush.msra.mxu0 %v1669
    %1791 = vmatpush.msra.mxu0 %v1668
    %1792 = vmatpush.msra.mxu0 %v1667
    %1793 = vmatpush.msra.mxu0 %v1666
    %1794 = vmatmul.f32.gmra.mxu0 %v1601
    %v1795 = vpop.f32.mrf.mxu0
    %v1796 = vadd.f32 %v1764, %v1795
    %1797 = vmatmul.f32.gmra.mxu0 %v1605
    %v1798 = vpop.f32.mrf.mxu0
    %v1799 = vadd.f32 %v1767, %v1798
    %1800 = vmatmul.f32.gmra.mxu0 %v1609
    %v1801 = vpop.f32.mrf.mxu0
    %v1802 = vadd.f32 %v1770, %v1801
    %1803 = vmatmul.f32.gmra.mxu0 %v1613
    %v1804 = vpop.f32.mrf.mxu0
    %v1805 = vadd.f32 %v1773, %v1804
    %1806 = vmatmul.f32.gmra.mxu0 %v1617
    %v1807 = vpop.f32.mrf.mxu0
    %v1808 = vadd.f32 %v1776, %v1807
    %1809 = vdwg.mxu0
    %v1810 = vadd.f32 %v1287, %v1796
    %v1811 = vadd.f32 %v1288, %v1799
    %v1812 = vadd.f32 %v1289, %v1802
    %v1813 = vadd.f32 %v1290, %v1805
    %v1814 = vadd.f32 %v1291, %v1808
    %v1815 = vld [vmem:[%s61] sm:$0x1]
    %v1817 = vperm.slane %v1815, 0
    %v1819 = vadd.f32 %v1810, %v1817
    %v1820 = vadd.f32 %v1811, %v1817
    %v1821 = vadd.f32 %v1812, %v1817
    %v1822 = vadd.f32 %v1813, %v1817
    %v1823 = vadd.f32 %v1814, %v1817
    %v1824 = vld [vmem:[%s23] sm:$0xff]
    %v1825 = vld [vmem:[%s23 + $0x8] sm:$0xff]
    %v1826 = vld [vmem:[%s23 + $0x10] sm:$0xff]
    %v1827 = vld [vmem:[%s23 + $0x18] sm:$0xff]
    %v1828 = vld [vmem:[%s23 + $0x20] sm:$0xff]
    %s1829 = scalar_lea.vmem %s51, 2
    %v1830 = vld [vmem:[%s1829] sm:$0x3]
    %s1831 = scalar_lea.vmem %s53, 2
    %v1832 = vld [vmem:[%s1831] sm:$0x3]
    %v1833 = vsel %vm158, %v1819, 0.0
    %1834 = vadd.xlane.f32.xlu0 %v1833
    %v1835 = vpop.xlane.xlu0 %1834
    %v1836 = vsel %vm158, %v1820, 0.0
    %1837 = vadd.xlane.f32.xlu0 %v1836
    %v1838 = vpop.xlane.xlu0 %1837
    %v1839 = vsel %vm158, %v1821, 0.0
    %1840 = vadd.xlane.f32.xlu0 %v1839
    %v1841 = vpop.xlane.xlu0 %1840
    %v1842 = vsel %vm158, %v1822, 0.0
    %1843 = vadd.xlane.f32.xlu0 %v1842
    %v1844 = vpop.xlane.xlu0 %1843
    %v1845 = vsel %vm158, %v1823, 0.0
    %1846 = vadd.xlane.f32.xlu0 %v1845
    %v1847 = vpop.xlane.xlu0 %1846
    %v1848 = vmul.f32 %v1835, %v724
    %v1849 = vmul.f32 %v1838, %v724
    %v1850 = vmul.f32 %v1841, %v724
    %v1851 = vmul.f32 %v1844, %v724
    %v1852 = vmul.f32 %v1847, %v724
    %v1853 = vsub.f32 %v1819, %v1848
    %v1854 = vsub.f32 %v1820, %v1849
    %v1855 = vsub.f32 %v1821, %v1850
    %v1856 = vsub.f32 %v1822, %v1851
    %v1857 = vsub.f32 %v1823, %v1852
    %v1858 = vmul.f32 %v1853, %v1853
    %v1859 = vmul.f32 %v1854, %v1854
    %v1860 = vmul.f32 %v1855, %v1855
    %v1861 = vmul.f32 %v1856, %v1856
    %v1862 = vmul.f32 %v1857, %v1857
    %v1863 = vsel %vm158, %v1858, 0.0
    %1864 = vadd.xlane.f32.xlu0 %v1863
    %v1865 = vpop.xlane.xlu0 %1864
    %v1866 = vsel %vm158, %v1859, 0.0
    %1867 = vadd.xlane.f32.xlu0 %v1866
    %v1868 = vpop.xlane.xlu0 %1867
    %v1869 = vsel %vm158, %v1860, 0.0
    %1870 = vadd.xlane.f32.xlu0 %v1869
    %v1871 = vpop.xlane.xlu0 %1870
    %v1872 = vsel %vm158, %v1861, 0.0
    %1873 = vadd.xlane.f32.xlu0 %v1872
    %v1874 = vpop.xlane.xlu0 %1873
    %v1875 = vsel %vm158, %v1862, 0.0
    %1876 = vadd.xlane.f32.xlu0 %v1875
    %v1877 = vpop.xlane.xlu0 %1876
    %v1878 = vmul.f32 %v1865, 0.032258064
    %v1879 = vmul.f32 %v1868, 0.032258064
    %v1880 = vmul.f32 %v1871, 0.032258064
    %v1881 = vmul.f32 %v1874, 0.032258064
    %v1882 = vmul.f32 %v1877, 0.032258064
    %v1883 = vrsqrt.pop %v1878
    %v1884 = vmul.f32 %v1883, %v1878
    %v1885 = vmul.f32 %v1884, %v1883
    %v1886 = vmul.f32 0.5, %v1885
    %v1887 = vsub.f32 1.5, %v1886
    %v1888 = vmul.f32 %v1883, %v1887
    %v1889 = vmul.f32 %v1878, %v1888
    %vm1890 = vcmp.eq.f32.partialorder %v1878, inf
    %v1891 = vsel %vm1890, %v1878, %v1889
    %vm1892 = vcmp.eq.f32.partialorder %v1878, 0.0
    %v1893 = vand.u32 %v1878, 2147483648
    %v1894 = vsel %vm1892, %v1893, %v1891
    %v1895 = vrsqrt.pop %v1879
    %v1896 = vmul.f32 %v1895, %v1879
    %v1897 = vmul.f32 %v1896, %v1895
    %v1898 = vmul.f32 0.5, %v1897
    %v1899 = vsub.f32 1.5, %v1898
    %v1900 = vmul.f32 %v1895, %v1899
    %v1901 = vmul.f32 %v1879, %v1900
    %vm1902 = vcmp.eq.f32.partialorder %v1879, inf
    %v1903 = vsel %vm1902, %v1879, %v1901
    %vm1904 = vcmp.eq.f32.partialorder %v1879, 0.0
    %v1905 = vand.u32 %v1879, 2147483648
    %v1906 = vsel %vm1904, %v1905, %v1903
    %v1907 = vrsqrt.pop %v1880
    %v1908 = vmul.f32 %v1907, %v1880
    %v1909 = vmul.f32 %v1908, %v1907
    %v1910 = vmul.f32 0.5, %v1909
    %v1911 = vsub.f32 1.5, %v1910
    %v1912 = vmul.f32 %v1907, %v1911
    %v1913 = vmul.f32 %v1880, %v1912
    %vm1914 = vcmp.eq.f32.partialorder %v1880, inf
    %v1915 = vsel %vm1914, %v1880, %v1913
    %vm1916 = vcmp.eq.f32.partialorder %v1880, 0.0
    %v1917 = vand.u32 %v1880, 2147483648
    %v1918 = vsel %vm1916, %v1917, %v1915
    %v1919 = vrsqrt.pop %v1881
    %v1920 = vmul.f32 %v1919, %v1881
    %v1921 = vmul.f32 %v1920, %v1919
    %v1922 = vmul.f32 0.5, %v1921
    %v1923 = vsub.f32 1.5, %v1922
    %v1924 = vmul.f32 %v1919, %v1923
    %v1925 = vmul.f32 %v1881, %v1924
    %vm1926 = vcmp.eq.f32.partialorder %v1881, inf
    %v1927 = vsel %vm1926, %v1881, %v1925
    %vm1928 = vcmp.eq.f32.partialorder %v1881, 0.0
    %v1929 = vand.u32 %v1881, 2147483648
    %v1930 = vsel %vm1928, %v1929, %v1927
    %v1931 = vrsqrt.pop %v1882
    %v1932 = vmul.f32 %v1931, %v1882
    %v1933 = vmul.f32 %v1932, %v1931
    %v1934 = vmul.f32 0.5, %v1933
    %v1935 = vsub.f32 1.5, %v1934
    %v1936 = vmul.f32 %v1931, %v1935
    %v1937 = vmul.f32 %v1882, %v1936
    %vm1938 = vcmp.eq.f32.partialorder %v1882, inf
    %v1939 = vsel %vm1938, %v1882, %v1937
    %vm1940 = vcmp.eq.f32.partialorder %v1882, 0.0
    %v1941 = vand.u32 %v1882, 2147483648
    %v1942 = vsel %vm1940, %v1941, %v1939
    %v1943 = vadd.f32 %v1894, 1e-06
    %v1944 = vadd.f32 %v1906, 1e-06
    %v1945 = vadd.f32 %v1918, 1e-06
    %v1946 = vadd.f32 %v1930, 1e-06
    %v1947 = vadd.f32 %v1942, 1e-06
    %v1948 = vrcp.pop %v1943
    %v1949 = vrcp.pop %v1944
    %v1950 = vrcp.pop %v1945
    %v1951 = vrcp.pop %v1946
    %v1952 = vrcp.pop %v1947
    %v1953 = vmul.f32 %v1853, %v1948
    %v1954 = vmul.f32 %v1854, %v1949
    %v1955 = vmul.f32 %v1855, %v1950
    %v1956 = vmul.f32 %v1856, %v1951
    %v1957 = vmul.f32 %v1857, %v1952
    %v1958 = vperm.slane %v1830, 0
    %v1959 = vmul.f32 %v1958, %v1953
    %v1960 = vmul.f32 %v1958, %v1954
    %v1961 = vmul.f32 %v1958, %v1955
    %v1962 = vmul.f32 %v1958, %v1956
    %v1963 = vmul.f32 %v1958, %v1957
    %v1964 = vperm.slane %v1832, 0
    %v1965 = vadd.f32 %v1959, %v1964
    %v1966 = vadd.f32 %v1960, %v1964
    %v1967 = vadd.f32 %v1961, %v1964
    %v1968 = vadd.f32 %v1962, %v1964
    %v1969 = vadd.f32 %v1963, %v1964
    %v1970 = vmul.f32 %v1965, 0.17677669
    %v1971 = vmul.f32 %v1966, 0.17677669
    %v1972 = vmul.f32 %v1967, 0.17677669
    %v1973 = vmul.f32 %v1968, 0.17677669
    %v1974 = vmul.f32 %v1969, 0.17677669
    %v1976 = vsel %vm158, %v1970, 0
    %v1979 = vsel %vm158, %v1971, 0
    %v1982 = vsel %vm158, %v1972, 0
    %v1985 = vsel %vm158, %v1973, 0
    %v1988 = vsel %vm158, %v1974, 0
    %v1991 = vsel %vm158, %v1965, 0
    %v1994 = vsel %vm158, %v1966, 0
    %v1997 = vsel %vm158, %v1967, 0
    %v2000 = vsel %vm158, %v1968, 0
    %v2003 = vsel %vm158, %v1969, 0
    %2005 = vmatpush.xpose.msra.mxu0 0.0
    %2006 = vmatpush.xpose.msra.mxu0 0.0
    %2007 = vmatpush.xpose.msra.mxu0 0.0
    %2008 = vmatpush.xpose.msra.mxu0 0.0
    %2009 = vmatpush.xpose.msra.mxu0 0.0
    %2010 = vmatpush.xpose.msra.mxu0 0.0
    %2011 = vmatpush.xpose.msra.mxu0 0.0
    %2012 = vmatpush.xpose.msra.mxu0 0.0
    %2013 = vmatpush.xpose.msra.mxu0 0.0
    %2014 = vmatpush.xpose.msra.mxu0 0.0
    %2015 = vmatpush.xpose.msra.mxu0 0.0
    %2016 = vmatpush.xpose.msra.mxu0 %v2003
    %2017 = vmatpush.xpose.msra.mxu0 %v2000
    %2018 = vmatpush.xpose.msra.mxu0 %v1997
    %2019 = vmatpush.xpose.msra.mxu0 %v1994
    %2020 = vmatpush.xpose.msra.mxu0 %v1991
    %2021 = vmatmul.f32.gmra.mxu0 %v1976
    %v2022 = vpop.f32.mrf.mxu0
    %v2023 = vadd.f32 %v1824, %v2022
    %2024 = vmatmul.f32.gmra.mxu0 %v1979
    %v2025 = vpop.f32.mrf.mxu0
    %v2026 = vadd.f32 %v1825, %v2025
    %2027 = vmatmul.f32.gmra.mxu0 %v1982
    %v2028 = vpop.f32.mrf.mxu0
    %v2029 = vadd.f32 %v1826, %v2028
    %2030 = vmatmul.f32.gmra.mxu0 %v1985
    %v2031 = vpop.f32.mrf.mxu0
    %v2032 = vadd.f32 %v1827, %v2031
    %2033 = vmatmul.f32.gmra.mxu0 %v1988
    %v2034 = vpop.f32.mrf.mxu0
    %v2035 = vadd.f32 %v1828, %v2034
    %2036 = vdwg.mxu0
    %v2037 = vsel %vm1184, %v2023, -inf
    %2038 = vmax.xlane.f32.xlu0 %v2037
    %v2039 = vpop.xlane.xlu0 %2038
    %v2040 = vsel %vm1184, %v2026, -inf
    %2041 = vmax.xlane.f32.xlu0 %v2040
    %v2042 = vpop.xlane.xlu0 %2041
    %v2043 = vsel %vm1184, %v2029, -inf
    %2044 = vmax.xlane.f32.xlu0 %v2043
    %v2045 = vpop.xlane.xlu0 %2044
    %v2046 = vsel %vm1184, %v2032, -inf
    %2047 = vmax.xlane.f32.xlu0 %v2046
    %v2048 = vpop.xlane.xlu0 %2047
    %v2049 = vsel %vm1184, %v2035, -inf
    %2050 = vmax.xlane.f32.xlu0 %v2049
    %v2051 = vpop.xlane.xlu0 %2050
    %v2052 = vsub.f32 %v2023, %v2039
    %v2053 = vsub.f32 %v2026, %v2042
    %v2054 = vsub.f32 %v2029, %v2045
    %v2055 = vsub.f32 %v2032, %v2048
    %v2056 = vsub.f32 %v2035, %v2051
    %v2057 = vmul.f32 %v2052, 1.442695
    %v2058 = vpow.pop %v2057
    %v2059 = vmul.f32 %v2053, 1.442695
    %v2060 = vpow.pop %v2059
    %v2061 = vmul.f32 %v2054, 1.442695
    %v2062 = vpow.pop %v2061
    %v2063 = vmul.f32 %v2055, 1.442695
    %v2064 = vpow.pop %v2063
    %v2065 = vmul.f32 %v2056, 1.442695
    %v2066 = vpow.pop %v2065
    %v2067 = vsel %vm1184, %v2058, 0.0
    %2068 = vadd.xlane.f32.xlu0 %v2067
    %v2069 = vpop.xlane.xlu0 %2068
    %v2070 = vsel %vm1184, %v2060, 0.0
    %2071 = vadd.xlane.f32.xlu0 %v2070
    %v2072 = vpop.xlane.xlu0 %2071
    %v2073 = vsel %vm1184, %v2062, 0.0
    %2074 = vadd.xlane.f32.xlu0 %v2073
    %v2075 = vpop.xlane.xlu0 %2074
    %v2076 = vsel %vm1184, %v2064, 0.0
    %2077 = vadd.xlane.f32.xlu0 %v2076
    %v2078 = vpop.xlane.xlu0 %2077
    %v2079 = vsel %vm1184, %v2066, 0.0
    %2080 = vadd.xlane.f32.xlu0 %v2079
    %v2081 = vpop.xlane.xlu0 %2080
    %v2082 = vrcp.pop %v2069
    %v2083 = vrcp.pop %v2072
    %v2084 = vrcp.pop %v2075
    %v2085 = vrcp.pop %v2078
    %v2086 = vrcp.pop %v2081
    %v2087 = vmul.f32 %v2058, %v2082
    %v2088 = vmul.f32 %v2060, %v2083
    %v2089 = vmul.f32 %v2062, %v2084
    %v2090 = vmul.f32 %v2064, %v2085
    %v2091 = vmul.f32 %v2066, %v2086
    %v2093 = vsel %vm1184, %v2087, 0
    %v2096 = vsel %vm1184, %v2088, 0
    %v2099 = vsel %vm1184, %v2089, 0
    %v2102 = vsel %vm1184, %v2090, 0
    %v2105 = vsel %vm1184, %v2091, 0
    %2107 = vmatpush.msra.mxu0 0.0
    %2108 = vmatpush.msra.mxu0 0.0
    %2109 = vmatpush.msra.mxu0 0.0
    %2110 = vmatpush.msra.mxu0 0.0
    %2111 = vmatpush.msra.mxu0 0.0
    %2112 = vmatpush.msra.mxu0 0.0
    %2113 = vmatpush.msra.mxu0 0.0
    %2114 = vmatpush.msra.mxu0 0.0
    %2115 = vmatpush.msra.mxu0 0.0
    %2116 = vmatpush.msra.mxu0 0.0
    %2117 = vmatpush.msra.mxu0 0.0
    %2118 = vmatpush.msra.mxu0 %v1969
    %2119 = vmatpush.msra.mxu0 %v1968
    %2120 = vmatpush.msra.mxu0 %v1967
    %2121 = vmatpush.msra.mxu0 %v1966
    %2122 = vmatpush.msra.mxu0 %v1965
    %2123 = vmatmul.f32.gmra.mxu0 %v2093
    %v2124 = vpop.f32.mrf.mxu0
    %v2125 = vadd.f32 0.0, %v2124
    %2126 = vmatmul.f32.gmra.mxu0 %v2096
    %v2127 = vpop.f32.mrf.mxu0
    %v2128 = vadd.f32 0.0, %v2127
    %2129 = vmatmul.f32.gmra.mxu0 %v2099
    %v2130 = vpop.f32.mrf.mxu0
    %v2131 = vadd.f32 0.0, %v2130
    %2132 = vmatmul.f32.gmra.mxu0 %v2102
    %v2133 = vpop.f32.mrf.mxu0
    %v2134 = vadd.f32 0.0, %v2133
    %2135 = vmatmul.f32.gmra.mxu0 %v2105
    %v2136 = vpop.f32.mrf.mxu0
    %v2137 = vadd.f32 0.0, %v2136
    %2138 = vdwg.mxu0
    %v2139 = vadd.f32 %v1819, %v2125
    %v2140 = vadd.f32 %v1820, %v2128
    %v2141 = vadd.f32 %v1821, %v2131
    %v2142 = vadd.f32 %v1822, %v2134
    %v2143 = vadd.f32 %v1823, %v2137
    %v2144 = vsel %vm158, %v2139, 0.0
    %2145 = vadd.xlane.f32.xlu0 %v2144
    %v2146 = vpop.xlane.xlu0 %2145
    %v2147 = vsel %vm158, %v2140, 0.0
    %2148 = vadd.xlane.f32.xlu0 %v2147
    %v2149 = vpop.xlane.xlu0 %2148
    %v2150 = vsel %vm158, %v2141, 0.0
    %2151 = vadd.xlane.f32.xlu0 %v2150
    %v2152 = vpop.xlane.xlu0 %2151
    %v2153 = vsel %vm158, %v2142, 0.0
    %2154 = vadd.xlane.f32.xlu0 %v2153
    %v2155 = vpop.xlane.xlu0 %2154
    %v2156 = vsel %vm158, %v2143, 0.0
    %2157 = vadd.xlane.f32.xlu0 %v2156
    %v2158 = vpop.xlane.xlu0 %2157
    %v2159 = vmul.f32 %v2146, %v724
    %v2160 = vmul.f32 %v2149, %v724
    %v2161 = vmul.f32 %v2152, %v724
    %v2162 = vmul.f32 %v2155, %v724
    %v2163 = vmul.f32 %v2158, %v724
    %v2164 = vsub.f32 %v2139, %v2159
    %v2165 = vsub.f32 %v2140, %v2160
    %v2166 = vsub.f32 %v2141, %v2161
    %v2167 = vsub.f32 %v2142, %v2162
    %v2168 = vsub.f32 %v2143, %v2163
    %v2169 = vmul.f32 %v2164, %v2164
    %v2170 = vmul.f32 %v2165, %v2165
    %v2171 = vmul.f32 %v2166, %v2166
    %v2172 = vmul.f32 %v2167, %v2167
    %v2173 = vmul.f32 %v2168, %v2168
    %v2174 = vsel %vm158, %v2169, 0.0
    %2175 = vadd.xlane.f32.xlu0 %v2174
    %v2176 = vpop.xlane.xlu0 %2175
    %v2177 = vsel %vm158, %v2170, 0.0
    %2178 = vadd.xlane.f32.xlu0 %v2177
    %v2179 = vpop.xlane.xlu0 %2178
    %v2180 = vsel %vm158, %v2171, 0.0
    %2181 = vadd.xlane.f32.xlu0 %v2180
    %v2182 = vpop.xlane.xlu0 %2181
    %v2183 = vsel %vm158, %v2172, 0.0
    %2184 = vadd.xlane.f32.xlu0 %v2183
    %v2185 = vpop.xlane.xlu0 %2184
    %v2186 = vsel %vm158, %v2173, 0.0
    %2187 = vadd.xlane.f32.xlu0 %v2186
    %v2188 = vpop.xlane.xlu0 %2187
    %v2189 = vmul.f32 %v2176, 0.032258064
    %v2190 = vmul.f32 %v2179, 0.032258064
    %v2191 = vmul.f32 %v2182, 0.032258064
    %v2192 = vmul.f32 %v2185, 0.032258064
    %v2193 = vmul.f32 %v2188, 0.032258064
    %v2194 = vrsqrt.pop %v2189
    %v2195 = vmul.f32 %v2194, %v2189
    %v2196 = vmul.f32 %v2195, %v2194
    %v2197 = vmul.f32 0.5, %v2196
    %v2198 = vsub.f32 1.5, %v2197
    %v2199 = vmul.f32 %v2194, %v2198
    %v2200 = vmul.f32 %v2189, %v2199
    %vm2201 = vcmp.eq.f32.partialorder %v2189, inf
    %v2202 = vsel %vm2201, %v2189, %v2200
    %vm2203 = vcmp.eq.f32.partialorder %v2189, 0.0
    %v2204 = vand.u32 %v2189, 2147483648
    %v2205 = vsel %vm2203, %v2204, %v2202
    %v2206 = vrsqrt.pop %v2190
    %v2207 = vmul.f32 %v2206, %v2190
    %v2208 = vmul.f32 %v2207, %v2206
    %v2209 = vmul.f32 0.5, %v2208
    %v2210 = vsub.f32 1.5, %v2209
    %v2211 = vmul.f32 %v2206, %v2210
    %v2212 = vmul.f32 %v2190, %v2211
    %vm2213 = vcmp.eq.f32.partialorder %v2190, inf
    %v2214 = vsel %vm2213, %v2190, %v2212
    %vm2215 = vcmp.eq.f32.partialorder %v2190, 0.0
    %v2216 = vand.u32 %v2190, 2147483648
    %v2217 = vsel %vm2215, %v2216, %v2214
    %v2218 = vrsqrt.pop %v2191
    %v2219 = vmul.f32 %v2218, %v2191
    %v2220 = vmul.f32 %v2219, %v2218
    %v2221 = vmul.f32 0.5, %v2220
    %v2222 = vsub.f32 1.5, %v2221
    %v2223 = vmul.f32 %v2218, %v2222
    %v2224 = vmul.f32 %v2191, %v2223
    %vm2225 = vcmp.eq.f32.partialorder %v2191, inf
    %v2226 = vsel %vm2225, %v2191, %v2224
    %vm2227 = vcmp.eq.f32.partialorder %v2191, 0.0
    %v2228 = vand.u32 %v2191, 2147483648
    %v2229 = vsel %vm2227, %v2228, %v2226
    %v2230 = vrsqrt.pop %v2192
    %v2231 = vmul.f32 %v2230, %v2192
    %v2232 = vmul.f32 %v2231, %v2230
    %v2233 = vmul.f32 0.5, %v2232
    %v2234 = vsub.f32 1.5, %v2233
    %v2235 = vmul.f32 %v2230, %v2234
    %v2236 = vmul.f32 %v2192, %v2235
    %vm2237 = vcmp.eq.f32.partialorder %v2192, inf
    %v2238 = vsel %vm2237, %v2192, %v2236
    %vm2239 = vcmp.eq.f32.partialorder %v2192, 0.0
    %v2240 = vand.u32 %v2192, 2147483648
    %v2241 = vsel %vm2239, %v2240, %v2238
    %v2242 = vrsqrt.pop %v2193
    %v2243 = vmul.f32 %v2242, %v2193
    %v2244 = vmul.f32 %v2243, %v2242
    %v2245 = vmul.f32 0.5, %v2244
    %v2246 = vsub.f32 1.5, %v2245
    %v2247 = vmul.f32 %v2242, %v2246
    %v2248 = vmul.f32 %v2193, %v2247
    %vm2249 = vcmp.eq.f32.partialorder %v2193, inf
    %v2250 = vsel %vm2249, %v2193, %v2248
    %vm2251 = vcmp.eq.f32.partialorder %v2193, 0.0
    %v2252 = vand.u32 %v2193, 2147483648
    %v2253 = vsel %vm2251, %v2252, %v2250
    %v2254 = vadd.f32 %v2205, 1e-06
    %v2255 = vadd.f32 %v2217, 1e-06
    %v2256 = vadd.f32 %v2229, 1e-06
    %v2257 = vadd.f32 %v2241, 1e-06
    %v2258 = vadd.f32 %v2253, 1e-06
    %v2259 = vrcp.pop %v2254
    %v2260 = vrcp.pop %v2255
    %v2261 = vrcp.pop %v2256
    %v2262 = vrcp.pop %v2257
    %v2263 = vrcp.pop %v2258
    %v2264 = vmul.f32 %v2164, %v2259
    %v2265 = vmul.f32 %v2165, %v2260
    %v2266 = vmul.f32 %v2166, %v2261
    %v2267 = vmul.f32 %v2167, %v2262
    %v2268 = vmul.f32 %v2168, %v2263
    %v2269 = vperm.slane %v1830, 1
    %v2270 = vmul.f32 %v2269, %v2264
    %v2271 = vmul.f32 %v2269, %v2265
    %v2272 = vmul.f32 %v2269, %v2266
    %v2273 = vmul.f32 %v2269, %v2267
    %v2274 = vmul.f32 %v2269, %v2268
    %v2275 = vperm.slane %v1832, 1
    %v2276 = vadd.f32 %v2270, %v2275
    %v2277 = vadd.f32 %v2271, %v2275
    %v2278 = vadd.f32 %v2272, %v2275
    %v2279 = vadd.f32 %v2273, %v2275
    %v2280 = vadd.f32 %v2274, %v2275
    %s2281 = scalar_lea.vmem %s55, 128
    %v2282 = vld [vmem:[%s2281] sm:$0xff]
    %v2283 = vld [vmem:[%s2281 + $0x8] sm:$0xff]
    %v2284 = vld [vmem:[%s2281 + $0x10] sm:$0xff]
    %v2285 = vld [vmem:[%s2281 + $0x18] sm:$0xff]
    %v2286 = vld [vmem:[%s2281 + $0x20] sm:$0xff]
    %v2287 = vld [vmem:[%s2281 + $0x28] sm:$0xff]
    %v2288 = vld [vmem:[%s2281 + $0x30] sm:$0xff]
    %v2289 = vld [vmem:[%s2281 + $0x38] sm:$0xff]
    %v2290 = vld [vmem:[%s2281 + $0x40] sm:$0xff]
    %v2291 = vld [vmem:[%s2281 + $0x48] sm:$0xff]
    %v2292 = vld [vmem:[%s2281 + $0x50] sm:$0xff]
    %v2293 = vld [vmem:[%s2281 + $0x58] sm:$0xff]
    %v2294 = vld [vmem:[%s2281 + $0x60] sm:$0xff]
    %v2295 = vld [vmem:[%s2281 + $0x68] sm:$0xff]
    %v2296 = vld [vmem:[%s2281 + $0x70] sm:$0xff]
    %v2297 = vld [vmem:[%s2281 + $0x78] sm:$0xff]
    %s2298 = scalar_lea.vmem %s57, 4
    %v2299 = vld [vmem:[%s2298] sm:$0xf]
    %v2301 = vperm.slane %v2299, 0
    %v2302 = vperm.slane %v2299, 1
    %v2303 = vperm.slane %v2299, 2
    %v2304 = vperm.slane %v2299, 3
    %v2310 = vsel %vm158, %v2276, 0
    %v2313 = vsel %vm158, %v2277, 0
    %v2316 = vsel %vm158, %v2278, 0
    %v2319 = vsel %vm158, %v2279, 0
    %v2322 = vsel %vm158, %v2280, 0
    %2324 = vmatpush.msra.mxu0 0.0
    %2325 = vmatpush.msra.mxu0 0.0
    %2326 = vmatpush.msra.mxu0 0.0
    %2327 = vmatpush.msra.mxu0 0.0
    %2328 = vmatpush.msra.mxu0 0.0
    %2329 = vmatpush.msra.mxu0 0.0
    %2330 = vmatpush.msra.mxu0 0.0
    %2331 = vmatpush.msra.mxu0 0.0
    %2332 = vmatpush.msra.mxu0 0.0
    %2333 = vmatpush.msra.mxu0 0.0
    %2334 = vmatpush.msra.mxu0 0.0
    %2335 = vmatpush.msra.mxu0 0.0
    %2336 = vmatpush.msra.mxu0 %v2294
    %2337 = vmatpush.msra.mxu0 %v2290
    %2338 = vmatpush.msra.mxu0 %v2286
    %2339 = vmatpush.msra.mxu0 %v2282
    %2340 = vmatmul.f32.gmra.mxu0 %v2310
    %v2341 = vpop.f32.mrf.mxu0
    %v2342 = vadd.f32 %v2301, %v2341
    %2343 = vmatmul.f32.gmra.mxu0 %v2313
    %v2344 = vpop.f32.mrf.mxu0
    %v2345 = vadd.f32 %v2301, %v2344
    %2346 = vmatmul.f32.gmra.mxu0 %v2316
    %v2347 = vpop.f32.mrf.mxu0
    %v2348 = vadd.f32 %v2301, %v2347
    %2349 = vmatmul.f32.gmra.mxu0 %v2319
    %v2350 = vpop.f32.mrf.mxu0
    %v2351 = vadd.f32 %v2301, %v2350
    %2352 = vmatmul.f32.gmra.mxu0 %v2322
    %v2353 = vpop.f32.mrf.mxu0
    %v2354 = vadd.f32 %v2301, %v2353
    %2355 = vdwg.mxu0
    %2356 = vmatpush.msra.mxu0 0.0
    %2357 = vmatpush.msra.mxu0 0.0
    %2358 = vmatpush.msra.mxu0 0.0
    %2359 = vmatpush.msra.mxu0 0.0
    %2360 = vmatpush.msra.mxu0 0.0
    %2361 = vmatpush.msra.mxu0 0.0
    %2362 = vmatpush.msra.mxu0 0.0
    %2363 = vmatpush.msra.mxu0 0.0
    %2364 = vmatpush.msra.mxu0 0.0
    %2365 = vmatpush.msra.mxu0 0.0
    %2366 = vmatpush.msra.mxu0 0.0
    %2367 = vmatpush.msra.mxu0 0.0
    %2368 = vmatpush.msra.mxu0 %v2295
    %2369 = vmatpush.msra.mxu0 %v2291
    %2370 = vmatpush.msra.mxu0 %v2287
    %2371 = vmatpush.msra.mxu0 %v2283
    %2372 = vmatmul.f32.gmra.mxu0 %v2310
    %v2373 = vpop.f32.mrf.mxu0
    %v2374 = vadd.f32 %v2302, %v2373
    %2375 = vmatmul.f32.gmra.mxu0 %v2313
    %v2376 = vpop.f32.mrf.mxu0
    %v2377 = vadd.f32 %v2302, %v2376
    %2378 = vmatmul.f32.gmra.mxu0 %v2316
    %v2379 = vpop.f32.mrf.mxu0
    %v2380 = vadd.f32 %v2302, %v2379
    %2381 = vmatmul.f32.gmra.mxu0 %v2319
    %v2382 = vpop.f32.mrf.mxu0
    %v2383 = vadd.f32 %v2302, %v2382
    %2384 = vmatmul.f32.gmra.mxu0 %v2322
    %v2385 = vpop.f32.mrf.mxu0
    %v2386 = vadd.f32 %v2302, %v2385
    %2387 = vdwg.mxu0
    %2388 = vmatpush.msra.mxu0 0.0
    %2389 = vmatpush.msra.mxu0 0.0
    %2390 = vmatpush.msra.mxu0 0.0
    %2391 = vmatpush.msra.mxu0 0.0
    %2392 = vmatpush.msra.mxu0 0.0
    %2393 = vmatpush.msra.mxu0 0.0
    %2394 = vmatpush.msra.mxu0 0.0
    %2395 = vmatpush.msra.mxu0 0.0
    %2396 = vmatpush.msra.mxu0 0.0
    %2397 = vmatpush.msra.mxu0 0.0
    %2398 = vmatpush.msra.mxu0 0.0
    %2399 = vmatpush.msra.mxu0 0.0
    %2400 = vmatpush.msra.mxu0 %v2296
    %2401 = vmatpush.msra.mxu0 %v2292
    %2402 = vmatpush.msra.mxu0 %v2288
    %2403 = vmatpush.msra.mxu0 %v2284
    %2404 = vmatmul.f32.gmra.mxu0 %v2310
    %v2405 = vpop.f32.mrf.mxu0
    %v2406 = vadd.f32 %v2303, %v2405
    %2407 = vmatmul.f32.gmra.mxu0 %v2313
    %v2408 = vpop.f32.mrf.mxu0
    %v2409 = vadd.f32 %v2303, %v2408
    %2410 = vmatmul.f32.gmra.mxu0 %v2316
    %v2411 = vpop.f32.mrf.mxu0
    %v2412 = vadd.f32 %v2303, %v2411
    %2413 = vmatmul.f32.gmra.mxu0 %v2319
    %v2414 = vpop.f32.mrf.mxu0
    %v2415 = vadd.f32 %v2303, %v2414
    %2416 = vmatmul.f32.gmra.mxu0 %v2322
    %v2417 = vpop.f32.mrf.mxu0
    %v2418 = vadd.f32 %v2303, %v2417
    %2419 = vdwg.mxu0
    %2420 = vmatpush.msra.mxu0 0.0
    %2421 = vmatpush.msra.mxu0 0.0
    %2422 = vmatpush.msra.mxu0 0.0
    %2423 = vmatpush.msra.mxu0 0.0
    %2424 = vmatpush.msra.mxu0 0.0
    %2425 = vmatpush.msra.mxu0 0.0
    %2426 = vmatpush.msra.mxu0 0.0
    %2427 = vmatpush.msra.mxu0 0.0
    %2428 = vmatpush.msra.mxu0 0.0
    %2429 = vmatpush.msra.mxu0 0.0
    %2430 = vmatpush.msra.mxu0 0.0
    %2431 = vmatpush.msra.mxu0 0.0
    %2432 = vmatpush.msra.mxu0 %v2297
    %2433 = vmatpush.msra.mxu0 %v2293
    %2434 = vmatpush.msra.mxu0 %v2289
    %2435 = vmatpush.msra.mxu0 %v2285
    %2436 = vmatmul.f32.gmra.mxu0 %v2310
    %v2437 = vpop.f32.mrf.mxu0
    %v2438 = vadd.f32 %v2304, %v2437
    %2439 = vmatmul.f32.gmra.mxu0 %v2313
    %v2440 = vpop.f32.mrf.mxu0
    %v2441 = vadd.f32 %v2304, %v2440
    %2442 = vmatmul.f32.gmra.mxu0 %v2316
    %v2443 = vpop.f32.mrf.mxu0
    %v2444 = vadd.f32 %v2304, %v2443
    %2445 = vmatmul.f32.gmra.mxu0 %v2319
    %v2446 = vpop.f32.mrf.mxu0
    %v2447 = vadd.f32 %v2304, %v2446
    %2448 = vmatmul.f32.gmra.mxu0 %v2322
    %v2449 = vpop.f32.mrf.mxu0
    %v2450 = vadd.f32 %v2304, %v2449
    %2451 = vdwg.mxu0
    %v2452 = vmax.f32 %v2342, 0.0
    %v2453 = vmax.f32 %v2374, 0.0
    %v2454 = vmax.f32 %v2406, 0.0
    %v2455 = vmax.f32 %v2438, 0.0
    %v2456 = vmax.f32 %v2345, 0.0
    %v2457 = vmax.f32 %v2377, 0.0
    %v2458 = vmax.f32 %v2409, 0.0
    %v2459 = vmax.f32 %v2441, 0.0
    %v2460 = vmax.f32 %v2348, 0.0
    %v2461 = vmax.f32 %v2380, 0.0
    %v2462 = vmax.f32 %v2412, 0.0
    %v2463 = vmax.f32 %v2444, 0.0
    %v2464 = vmax.f32 %v2351, 0.0
    %v2465 = vmax.f32 %v2383, 0.0
    %v2466 = vmax.f32 %v2415, 0.0
    %v2467 = vmax.f32 %v2447, 0.0
    %v2468 = vmax.f32 %v2354, 0.0
    %v2469 = vmax.f32 %v2386, 0.0
    %v2470 = vmax.f32 %v2418, 0.0
    %v2471 = vmax.f32 %v2450, 0.0
    %s2472 = scalar_lea.vmem %s59, 512
    %v2473 = vld [vmem:[%s2472] sm:$0xff]
    %v2474 = vld [vmem:[%s2472 + $0x8] sm:$0xff]
    %v2475 = vld [vmem:[%s2472 + $0x10] sm:$0xff]
    %v2476 = vld [vmem:[%s2472 + $0x18] sm:$0xff]
    %v2477 = vld [vmem:[%s2472 + $0x20] sm:$0xff]
    %v2478 = vld [vmem:[%s2472 + $0x28] sm:$0xff]
    %v2479 = vld [vmem:[%s2472 + $0x30] sm:$0xff]
    %v2480 = vld [vmem:[%s2472 + $0x38] sm:$0xff]
    %v2481 = vld [vmem:[%s2472 + $0x40] sm:$0xff]
    %v2482 = vld [vmem:[%s2472 + $0x48] sm:$0xff]
    %v2483 = vld [vmem:[%s2472 + $0x50] sm:$0xff]
    %v2484 = vld [vmem:[%s2472 + $0x58] sm:$0xff]
    %v2485 = vld [vmem:[%s2472 + $0x60] sm:$0xff]
    %v2486 = vld [vmem:[%s2472 + $0x68] sm:$0xff]
    %v2487 = vld [vmem:[%s2472 + $0x70] sm:$0xff]
    %v2488 = vld [vmem:[%s2472 + $0x78] sm:$0xff]
    %v2489 = vld [vmem:[%s2472 + $0x80] sm:$0xff]
    %v2490 = vld [vmem:[%s2472 + $0x88] sm:$0xff]
    %v2491 = vld [vmem:[%s2472 + $0x90] sm:$0xff]
    %v2492 = vld [vmem:[%s2472 + $0x98] sm:$0xff]
    %v2493 = vld [vmem:[%s2472 + $0xa0] sm:$0xff]
    %v2494 = vld [vmem:[%s2472 + $0xa8] sm:$0xff]
    %v2495 = vld [vmem:[%s2472 + $0xb0] sm:$0xff]
    %v2496 = vld [vmem:[%s2472 + $0xb8] sm:$0xff]
    %v2497 = vld [vmem:[%s2472 + $0xc0] sm:$0xff]
    %v2498 = vld [vmem:[%s2472 + $0xc8] sm:$0xff]
    %v2499 = vld [vmem:[%s2472 + $0xd0] sm:$0xff]
    %v2500 = vld [vmem:[%s2472 + $0xd8] sm:$0xff]
    %v2501 = vld [vmem:[%s2472 + $0xe0] sm:$0xff]
    %v2502 = vld [vmem:[%s2472 + $0xe8] sm:$0xff]
    %v2503 = vld [vmem:[%s2472 + $0xf0] sm:$0xff]
    %v2504 = vld [vmem:[%s2472 + $0xf8] sm:$0xff]
    %v2505 = vld [vmem:[%s2472 + $0x100] sm:$0xff]
    %v2506 = vld [vmem:[%s2472 + $0x108] sm:$0xff]
    %v2507 = vld [vmem:[%s2472 + $0x110] sm:$0xff]
    %v2508 = vld [vmem:[%s2472 + $0x118] sm:$0xff]
    %v2509 = vld [vmem:[%s2472 + $0x120] sm:$0xff]
    %v2510 = vld [vmem:[%s2472 + $0x128] sm:$0xff]
    %v2511 = vld [vmem:[%s2472 + $0x130] sm:$0xff]
    %v2512 = vld [vmem:[%s2472 + $0x138] sm:$0xff]
    %v2513 = vld [vmem:[%s2472 + $0x140] sm:$0xff]
    %v2514 = vld [vmem:[%s2472 + $0x148] sm:$0xff]
    %v2515 = vld [vmem:[%s2472 + $0x150] sm:$0xff]
    %v2516 = vld [vmem:[%s2472 + $0x158] sm:$0xff]
    %v2517 = vld [vmem:[%s2472 + $0x160] sm:$0xff]
    %v2518 = vld [vmem:[%s2472 + $0x168] sm:$0xff]
    %v2519 = vld [vmem:[%s2472 + $0x170] sm:$0xff]
    %v2520 = vld [vmem:[%s2472 + $0x178] sm:$0xff]
    %v2521 = vld [vmem:[%s2472 + $0x180] sm:$0xff]
    %v2522 = vld [vmem:[%s2472 + $0x188] sm:$0xff]
    %v2523 = vld [vmem:[%s2472 + $0x190] sm:$0xff]
    %v2524 = vld [vmem:[%s2472 + $0x198] sm:$0xff]
    %v2525 = vld [vmem:[%s2472 + $0x1a0] sm:$0xff]
    %v2526 = vld [vmem:[%s2472 + $0x1a8] sm:$0xff]
    %v2527 = vld [vmem:[%s2472 + $0x1b0] sm:$0xff]
    %v2528 = vld [vmem:[%s2472 + $0x1b8] sm:$0xff]
    %v2529 = vld [vmem:[%s2472 + $0x1c0] sm:$0xff]
    %v2530 = vld [vmem:[%s2472 + $0x1c8] sm:$0xff]
    %v2531 = vld [vmem:[%s2472 + $0x1d0] sm:$0xff]
    %v2532 = vld [vmem:[%s2472 + $0x1d8] sm:$0xff]
    %v2533 = vld [vmem:[%s2472 + $0x1e0] sm:$0xff]
    %v2534 = vld [vmem:[%s2472 + $0x1e8] sm:$0xff]
    %v2535 = vld [vmem:[%s2472 + $0x1f0] sm:$0xff]
    %v2536 = vld [vmem:[%s2472 + $0x1f8] sm:$0xff]
    %2537 = vmatpush.msra.mxu0 %v2488
    %2538 = vmatpush.msra.mxu0 %v2487
    %2539 = vmatpush.msra.mxu0 %v2486
    %2540 = vmatpush.msra.mxu0 %v2485
    %2541 = vmatpush.msra.mxu0 %v2484
    %2542 = vmatpush.msra.mxu0 %v2483
    %2543 = vmatpush.msra.mxu0 %v2482
    %2544 = vmatpush.msra.mxu0 %v2481
    %2545 = vmatpush.msra.mxu0 %v2480
    %2546 = vmatpush.msra.mxu0 %v2479
    %2547 = vmatpush.msra.mxu0 %v2478
    %2548 = vmatpush.msra.mxu0 %v2477
    %2549 = vmatpush.msra.mxu0 %v2476
    %2550 = vmatpush.msra.mxu0 %v2475
    %2551 = vmatpush.msra.mxu0 %v2474
    %2552 = vmatpush.msra.mxu0 %v2473
    %2553 = vmatmul.f32.gmra.mxu0 %v2452
    %v2554 = vpop.f32.mrf.mxu0
    %v2555 = vadd.f32 0.0, %v2554
    %2556 = vmatmul.f32.gmra.mxu0 %v2456
    %v2557 = vpop.f32.mrf.mxu0
    %v2558 = vadd.f32 0.0, %v2557
    %2559 = vmatmul.f32.gmra.mxu0 %v2460
    %v2560 = vpop.f32.mrf.mxu0
    %v2561 = vadd.f32 0.0, %v2560
    %2562 = vmatmul.f32.gmra.mxu0 %v2464
    %v2563 = vpop.f32.mrf.mxu0
    %v2564 = vadd.f32 0.0, %v2563
    %2565 = vmatmul.f32.gmra.mxu0 %v2468
    %v2566 = vpop.f32.mrf.mxu0
    %v2567 = vadd.f32 0.0, %v2566
    %2568 = vdwg.mxu0
    %2569 = vmatpush.msra.mxu0 %v2504
    %2570 = vmatpush.msra.mxu0 %v2503
    %2571 = vmatpush.msra.mxu0 %v2502
    %2572 = vmatpush.msra.mxu0 %v2501
    %2573 = vmatpush.msra.mxu0 %v2500
    %2574 = vmatpush.msra.mxu0 %v2499
    %2575 = vmatpush.msra.mxu0 %v2498
    %2576 = vmatpush.msra.mxu0 %v2497
    %2577 = vmatpush.msra.mxu0 %v2496
    %2578 = vmatpush.msra.mxu0 %v2495
    %2579 = vmatpush.msra.mxu0 %v2494
    %2580 = vmatpush.msra.mxu0 %v2493
    %2581 = vmatpush.msra.mxu0 %v2492
    %2582 = vmatpush.msra.mxu0 %v2491
    %2583 = vmatpush.msra.mxu0 %v2490
    %2584 = vmatpush.msra.mxu0 %v2489
    %2585 = vmatmul.f32.gmra.mxu0 %v2453
    %v2586 = vpop.f32.mrf.mxu0
    %v2587 = vadd.f32 %v2555, %v2586
    %2588 = vmatmul.f32.gmra.mxu0 %v2457
    %v2589 = vpop.f32.mrf.mxu0
    %v2590 = vadd.f32 %v2558, %v2589
    %2591 = vmatmul.f32.gmra.mxu0 %v2461
    %v2592 = vpop.f32.mrf.mxu0
    %v2593 = vadd.f32 %v2561, %v2592
    %2594 = vmatmul.f32.gmra.mxu0 %v2465
    %v2595 = vpop.f32.mrf.mxu0
    %v2596 = vadd.f32 %v2564, %v2595
    %2597 = vmatmul.f32.gmra.mxu0 %v2469
    %v2598 = vpop.f32.mrf.mxu0
    %v2599 = vadd.f32 %v2567, %v2598
    %2600 = vdwg.mxu0
    %2601 = vmatpush.msra.mxu0 %v2520
    %2602 = vmatpush.msra.mxu0 %v2519
    %2603 = vmatpush.msra.mxu0 %v2518
    %2604 = vmatpush.msra.mxu0 %v2517
    %2605 = vmatpush.msra.mxu0 %v2516
    %2606 = vmatpush.msra.mxu0 %v2515
    %2607 = vmatpush.msra.mxu0 %v2514
    %2608 = vmatpush.msra.mxu0 %v2513
    %2609 = vmatpush.msra.mxu0 %v2512
    %2610 = vmatpush.msra.mxu0 %v2511
    %2611 = vmatpush.msra.mxu0 %v2510
    %2612 = vmatpush.msra.mxu0 %v2509
    %2613 = vmatpush.msra.mxu0 %v2508
    %2614 = vmatpush.msra.mxu0 %v2507
    %2615 = vmatpush.msra.mxu0 %v2506
    %2616 = vmatpush.msra.mxu0 %v2505
    %2617 = vmatmul.f32.gmra.mxu0 %v2454
    %v2618 = vpop.f32.mrf.mxu0
    %v2619 = vadd.f32 %v2587, %v2618
    %2620 = vmatmul.f32.gmra.mxu0 %v2458
    %v2621 = vpop.f32.mrf.mxu0
    %v2622 = vadd.f32 %v2590, %v2621
    %2623 = vmatmul.f32.gmra.mxu0 %v2462
    %v2624 = vpop.f32.mrf.mxu0
    %v2625 = vadd.f32 %v2593, %v2624
    %2626 = vmatmul.f32.gmra.mxu0 %v2466
    %v2627 = vpop.f32.mrf.mxu0
    %v2628 = vadd.f32 %v2596, %v2627
    %2629 = vmatmul.f32.gmra.mxu0 %v2470
    %v2630 = vpop.f32.mrf.mxu0
    %v2631 = vadd.f32 %v2599, %v2630
    %2632 = vdwg.mxu0
    %2633 = vmatpush.msra.mxu0 %v2536
    %2634 = vmatpush.msra.mxu0 %v2535
    %2635 = vmatpush.msra.mxu0 %v2534
    %2636 = vmatpush.msra.mxu0 %v2533
    %2637 = vmatpush.msra.mxu0 %v2532
    %2638 = vmatpush.msra.mxu0 %v2531
    %2639 = vmatpush.msra.mxu0 %v2530
    %2640 = vmatpush.msra.mxu0 %v2529
    %2641 = vmatpush.msra.mxu0 %v2528
    %2642 = vmatpush.msra.mxu0 %v2527
    %2643 = vmatpush.msra.mxu0 %v2526
    %2644 = vmatpush.msra.mxu0 %v2525
    %2645 = vmatpush.msra.mxu0 %v2524
    %2646 = vmatpush.msra.mxu0 %v2523
    %2647 = vmatpush.msra.mxu0 %v2522
    %2648 = vmatpush.msra.mxu0 %v2521
    %2649 = vmatmul.f32.gmra.mxu0 %v2455
    %v2650 = vpop.f32.mrf.mxu0
    %v2651 = vadd.f32 %v2619, %v2650
    %2652 = vmatmul.f32.gmra.mxu0 %v2459
    %v2653 = vpop.f32.mrf.mxu0
    %v2654 = vadd.f32 %v2622, %v2653
    %2655 = vmatmul.f32.gmra.mxu0 %v2463
    %v2656 = vpop.f32.mrf.mxu0
    %v2657 = vadd.f32 %v2625, %v2656
    %2658 = vmatmul.f32.gmra.mxu0 %v2467
    %v2659 = vpop.f32.mrf.mxu0
    %v2660 = vadd.f32 %v2628, %v2659
    %2661 = vmatmul.f32.gmra.mxu0 %v2471
    %v2662 = vpop.f32.mrf.mxu0
    %v2663 = vadd.f32 %v2631, %v2662
    %2664 = vdwg.mxu0
    %v2665 = vadd.f32 %v2139, %v2651
    %v2666 = vadd.f32 %v2140, %v2654
    %v2667 = vadd.f32 %v2141, %v2657
    %v2668 = vadd.f32 %v2142, %v2660
    %v2669 = vadd.f32 %v2143, %v2663
    %s2670 = scalar_lea.vmem %s61, 1
    %v2671 = vld [vmem:[%s2670] sm:$0x1]
    %v2673 = vperm.slane %v2671, 0
    %v2675 = vadd.f32 %v2665, %v2673
    %v2676 = vadd.f32 %v2666, %v2673
    %v2677 = vadd.f32 %v2667, %v2673
    %v2678 = vadd.f32 %v2668, %v2673
    %v2679 = vadd.f32 %v2669, %v2673
    %s2680 = scalar_lea.vmem %s51, 4
    %v2681 = vld [vmem:[%s2680] sm:$0x3]
    %s2682 = scalar_lea.vmem %s53, 4
    %v2683 = vld [vmem:[%s2682] sm:$0x3]
    %v2684 = vsel %vm158, %v2675, 0.0
    %2685 = vadd.xlane.f32.xlu0 %v2684
    %v2686 = vpop.xlane.xlu0 %2685
    %v2687 = vsel %vm158, %v2676, 0.0
    %2688 = vadd.xlane.f32.xlu0 %v2687
    %v2689 = vpop.xlane.xlu0 %2688
    %v2690 = vsel %vm158, %v2677, 0.0
    %2691 = vadd.xlane.f32.xlu0 %v2690
    %v2692 = vpop.xlane.xlu0 %2691
    %v2693 = vsel %vm158, %v2678, 0.0
    %2694 = vadd.xlane.f32.xlu0 %v2693
    %v2695 = vpop.xlane.xlu0 %2694
    %v2696 = vsel %vm158, %v2679, 0.0
    %2697 = vadd.xlane.f32.xlu0 %v2696
    %v2698 = vpop.xlane.xlu0 %2697
    %v2699 = vmul.f32 %v2686, %v724
    %v2700 = vmul.f32 %v2689, %v724
    %v2701 = vmul.f32 %v2692, %v724
    %v2702 = vmul.f32 %v2695, %v724
    %v2703 = vmul.f32 %v2698, %v724
    %v2704 = vsub.f32 %v2675, %v2699
    %v2705 = vsub.f32 %v2676, %v2700
    %v2706 = vsub.f32 %v2677, %v2701
    %v2707 = vsub.f32 %v2678, %v2702
    %v2708 = vsub.f32 %v2679, %v2703
    %v2709 = vmul.f32 %v2704, %v2704
    %v2710 = vmul.f32 %v2705, %v2705
    %v2711 = vmul.f32 %v2706, %v2706
    %v2712 = vmul.f32 %v2707, %v2707
    %v2713 = vmul.f32 %v2708, %v2708
    %v2714 = vsel %vm158, %v2709, 0.0
    %2715 = vadd.xlane.f32.xlu0 %v2714
    %v2716 = vpop.xlane.xlu0 %2715
    %v2717 = vsel %vm158, %v2710, 0.0
    %2718 = vadd.xlane.f32.xlu0 %v2717
    %v2719 = vpop.xlane.xlu0 %2718
    %v2720 = vsel %vm158, %v2711, 0.0
    %2721 = vadd.xlane.f32.xlu0 %v2720
    %v2722 = vpop.xlane.xlu0 %2721
    %v2723 = vsel %vm158, %v2712, 0.0
    %2724 = vadd.xlane.f32.xlu0 %v2723
    %v2725 = vpop.xlane.xlu0 %2724
    %v2726 = vsel %vm158, %v2713, 0.0
    %2727 = vadd.xlane.f32.xlu0 %v2726
    %v2728 = vpop.xlane.xlu0 %2727
    %v2729 = vmul.f32 %v2716, 0.032258064
    %v2730 = vmul.f32 %v2719, 0.032258064
    %v2731 = vmul.f32 %v2722, 0.032258064
    %v2732 = vmul.f32 %v2725, 0.032258064
    %v2733 = vmul.f32 %v2728, 0.032258064
    %v2734 = vrsqrt.pop %v2729
    %v2735 = vmul.f32 %v2734, %v2729
    %v2736 = vmul.f32 %v2735, %v2734
    %v2737 = vmul.f32 0.5, %v2736
    %v2738 = vsub.f32 1.5, %v2737
    %v2739 = vmul.f32 %v2734, %v2738
    %v2740 = vmul.f32 %v2729, %v2739
    %vm2741 = vcmp.eq.f32.partialorder %v2729, inf
    %v2742 = vsel %vm2741, %v2729, %v2740
    %vm2743 = vcmp.eq.f32.partialorder %v2729, 0.0
    %v2744 = vand.u32 %v2729, 2147483648
    %v2745 = vsel %vm2743, %v2744, %v2742
    %v2746 = vrsqrt.pop %v2730
    %v2747 = vmul.f32 %v2746, %v2730
    %v2748 = vmul.f32 %v2747, %v2746
    %v2749 = vmul.f32 0.5, %v2748
    %v2750 = vsub.f32 1.5, %v2749
    %v2751 = vmul.f32 %v2746, %v2750
    %v2752 = vmul.f32 %v2730, %v2751
    %vm2753 = vcmp.eq.f32.partialorder %v2730, inf
    %v2754 = vsel %vm2753, %v2730, %v2752
    %vm2755 = vcmp.eq.f32.partialorder %v2730, 0.0
    %v2756 = vand.u32 %v2730, 2147483648
    %v2757 = vsel %vm2755, %v2756, %v2754
    %v2758 = vrsqrt.pop %v2731
    %v2759 = vmul.f32 %v2758, %v2731
    %v2760 = vmul.f32 %v2759, %v2758
    %v2761 = vmul.f32 0.5, %v2760
    %v2762 = vsub.f32 1.5, %v2761
    %v2763 = vmul.f32 %v2758, %v2762
    %v2764 = vmul.f32 %v2731, %v2763
    %vm2765 = vcmp.eq.f32.partialorder %v2731, inf
    %v2766 = vsel %vm2765, %v2731, %v2764
    %vm2767 = vcmp.eq.f32.partialorder %v2731, 0.0
    %v2768 = vand.u32 %v2731, 2147483648
    %v2769 = vsel %vm2767, %v2768, %v2766
    %v2770 = vrsqrt.pop %v2732
    %v2771 = vmul.f32 %v2770, %v2732
    %v2772 = vmul.f32 %v2771, %v2770
    %v2773 = vmul.f32 0.5, %v2772
    %v2774 = vsub.f32 1.5, %v2773
    %v2775 = vmul.f32 %v2770, %v2774
    %v2776 = vmul.f32 %v2732, %v2775
    %vm2777 = vcmp.eq.f32.partialorder %v2732, inf
    %v2778 = vsel %vm2777, %v2732, %v2776
    %vm2779 = vcmp.eq.f32.partialorder %v2732, 0.0
    %v2780 = vand.u32 %v2732, 2147483648
    %v2781 = vsel %vm2779, %v2780, %v2778
    %v2782 = vrsqrt.pop %v2733
    %v2783 = vmul.f32 %v2782, %v2733
    %v2784 = vmul.f32 %v2783, %v2782
    %v2785 = vmul.f32 0.5, %v2784
    %v2786 = vsub.f32 1.5, %v2785
    %v2787 = vmul.f32 %v2782, %v2786
    %v2788 = vmul.f32 %v2733, %v2787
    %vm2789 = vcmp.eq.f32.partialorder %v2733, inf
    %v2790 = vsel %vm2789, %v2733, %v2788
    %vm2791 = vcmp.eq.f32.partialorder %v2733, 0.0
    %v2792 = vand.u32 %v2733, 2147483648
    %v2793 = vsel %vm2791, %v2792, %v2790
    %v2794 = vadd.f32 %v2745, 1e-06
    %v2795 = vadd.f32 %v2757, 1e-06
    %v2796 = vadd.f32 %v2769, 1e-06
    %v2797 = vadd.f32 %v2781, 1e-06
    %v2798 = vadd.f32 %v2793, 1e-06
    %v2799 = vrcp.pop %v2794
    %v2800 = vrcp.pop %v2795
    %v2801 = vrcp.pop %v2796
    %v2802 = vrcp.pop %v2797
    %v2803 = vrcp.pop %v2798
    %v2804 = vmul.f32 %v2704, %v2799
    %v2805 = vmul.f32 %v2705, %v2800
    %v2806 = vmul.f32 %v2706, %v2801
    %v2807 = vmul.f32 %v2707, %v2802
    %v2808 = vmul.f32 %v2708, %v2803
    %v2809 = vperm.slane %v2681, 0
    %v2810 = vmul.f32 %v2809, %v2804
    %v2811 = vmul.f32 %v2809, %v2805
    %v2812 = vmul.f32 %v2809, %v2806
    %v2813 = vmul.f32 %v2809, %v2807
    %v2814 = vmul.f32 %v2809, %v2808
    %v2815 = vperm.slane %v2683, 0
    %v2816 = vadd.f32 %v2810, %v2815
    %v2817 = vadd.f32 %v2811, %v2815
    %v2818 = vadd.f32 %v2812, %v2815
    %v2819 = vadd.f32 %v2813, %v2815
    %v2820 = vadd.f32 %v2814, %v2815
    %v2821 = vmul.f32 %v2816, 0.17677669
    %v2822 = vmul.f32 %v2817, 0.17677669
    %v2823 = vmul.f32 %v2818, 0.17677669
    %v2824 = vmul.f32 %v2819, 0.17677669
    %v2825 = vmul.f32 %v2820, 0.17677669
    %v2827 = vsel %vm158, %v2821, 0
    %v2830 = vsel %vm158, %v2822, 0
    %v2833 = vsel %vm158, %v2823, 0
    %v2836 = vsel %vm158, %v2824, 0
    %v2839 = vsel %vm158, %v2825, 0
    %v2842 = vsel %vm158, %v2816, 0
    %v2845 = vsel %vm158, %v2817, 0
    %v2848 = vsel %vm158, %v2818, 0
    %v2851 = vsel %vm158, %v2819, 0
    %v2854 = vsel %vm158, %v2820, 0
    %2856 = vmatpush.xpose.msra.mxu0 0.0
    %2857 = vmatpush.xpose.msra.mxu0 0.0
    %2858 = vmatpush.xpose.msra.mxu0 0.0
    %2859 = vmatpush.xpose.msra.mxu0 0.0
    %2860 = vmatpush.xpose.msra.mxu0 0.0
    %2861 = vmatpush.xpose.msra.mxu0 0.0
    %2862 = vmatpush.xpose.msra.mxu0 0.0
    %2863 = vmatpush.xpose.msra.mxu0 0.0
    %2864 = vmatpush.xpose.msra.mxu0 0.0
    %2865 = vmatpush.xpose.msra.mxu0 0.0
    %2866 = vmatpush.xpose.msra.mxu0 0.0
    %2867 = vmatpush.xpose.msra.mxu0 %v2854
    %2868 = vmatpush.xpose.msra.mxu0 %v2851
    %2869 = vmatpush.xpose.msra.mxu0 %v2848
    %2870 = vmatpush.xpose.msra.mxu0 %v2845
    %2871 = vmatpush.xpose.msra.mxu0 %v2842
    %2872 = vmatmul.f32.gmra.mxu0 %v2827
    %v2873 = vpop.f32.mrf.mxu0
    %v2874 = vadd.f32 %v1824, %v2873
    %2875 = vmatmul.f32.gmra.mxu0 %v2830
    %v2876 = vpop.f32.mrf.mxu0
    %v2877 = vadd.f32 %v1825, %v2876
    %2878 = vmatmul.f32.gmra.mxu0 %v2833
    %v2879 = vpop.f32.mrf.mxu0
    %v2880 = vadd.f32 %v1826, %v2879
    %2881 = vmatmul.f32.gmra.mxu0 %v2836
    %v2882 = vpop.f32.mrf.mxu0
    %v2883 = vadd.f32 %v1827, %v2882
    %2884 = vmatmul.f32.gmra.mxu0 %v2839
    %v2885 = vpop.f32.mrf.mxu0
    %v2886 = vadd.f32 %v1828, %v2885
    %2887 = vdwg.mxu0
    %v2888 = vsel %vm1184, %v2874, -inf
    %2889 = vmax.xlane.f32.xlu0 %v2888
    %v2890 = vpop.xlane.xlu0 %2889
    %v2891 = vsel %vm1184, %v2877, -inf
    %2892 = vmax.xlane.f32.xlu0 %v2891
    %v2893 = vpop.xlane.xlu0 %2892
    %v2894 = vsel %vm1184, %v2880, -inf
    %2895 = vmax.xlane.f32.xlu0 %v2894
    %v2896 = vpop.xlane.xlu0 %2895
    %v2897 = vsel %vm1184, %v2883, -inf
    %2898 = vmax.xlane.f32.xlu0 %v2897
    %v2899 = vpop.xlane.xlu0 %2898
    %v2900 = vsel %vm1184, %v2886, -inf
    %2901 = vmax.xlane.f32.xlu0 %v2900
    %v2902 = vpop.xlane.xlu0 %2901
    %v2903 = vsub.f32 %v2874, %v2890
    %v2904 = vsub.f32 %v2877, %v2893
    %v2905 = vsub.f32 %v2880, %v2896
    %v2906 = vsub.f32 %v2883, %v2899
    %v2907 = vsub.f32 %v2886, %v2902
    %v2908 = vmul.f32 %v2903, 1.442695
    %v2909 = vpow.pop %v2908
    %v2910 = vmul.f32 %v2904, 1.442695
    %v2911 = vpow.pop %v2910
    %v2912 = vmul.f32 %v2905, 1.442695
    %v2913 = vpow.pop %v2912
    %v2914 = vmul.f32 %v2906, 1.442695
    %v2915 = vpow.pop %v2914
    %v2916 = vmul.f32 %v2907, 1.442695
    %v2917 = vpow.pop %v2916
    %v2918 = vsel %vm1184, %v2909, 0.0
    %2919 = vadd.xlane.f32.xlu0 %v2918
    %v2920 = vpop.xlane.xlu0 %2919
    %v2921 = vsel %vm1184, %v2911, 0.0
    %2922 = vadd.xlane.f32.xlu0 %v2921
    %v2923 = vpop.xlane.xlu0 %2922
    %v2924 = vsel %vm1184, %v2913, 0.0
    %2925 = vadd.xlane.f32.xlu0 %v2924
    %v2926 = vpop.xlane.xlu0 %2925
    %v2927 = vsel %vm1184, %v2915, 0.0
    %2928 = vadd.xlane.f32.xlu0 %v2927
    %v2929 = vpop.xlane.xlu0 %2928
    %v2930 = vsel %vm1184, %v2917, 0.0
    %2931 = vadd.xlane.f32.xlu0 %v2930
    %v2932 = vpop.xlane.xlu0 %2931
    %v2933 = vrcp.pop %v2920
    %v2934 = vrcp.pop %v2923
    %v2935 = vrcp.pop %v2926
    %v2936 = vrcp.pop %v2929
    %v2937 = vrcp.pop %v2932
    %v2938 = vmul.f32 %v2909, %v2933
    %v2939 = vmul.f32 %v2911, %v2934
    %v2940 = vmul.f32 %v2913, %v2935
    %v2941 = vmul.f32 %v2915, %v2936
    %v2942 = vmul.f32 %v2917, %v2937
    %v2944 = vsel %vm1184, %v2938, 0
    %v2947 = vsel %vm1184, %v2939, 0
    %v2950 = vsel %vm1184, %v2940, 0
    %v2953 = vsel %vm1184, %v2941, 0
    %v2956 = vsel %vm1184, %v2942, 0
    %2958 = vmatpush.msra.mxu0 0.0
    %2959 = vmatpush.msra.mxu0 0.0
    %2960 = vmatpush.msra.mxu0 0.0
    %2961 = vmatpush.msra.mxu0 0.0
    %2962 = vmatpush.msra.mxu0 0.0
    %2963 = vmatpush.msra.mxu0 0.0
    %2964 = vmatpush.msra.mxu0 0.0
    %2965 = vmatpush.msra.mxu0 0.0
    %2966 = vmatpush.msra.mxu0 0.0
    %2967 = vmatpush.msra.mxu0 0.0
    %2968 = vmatpush.msra.mxu0 0.0
    %2969 = vmatpush.msra.mxu0 %v2820
    %2970 = vmatpush.msra.mxu0 %v2819
    %2971 = vmatpush.msra.mxu0 %v2818
    %2972 = vmatpush.msra.mxu0 %v2817
    %2973 = vmatpush.msra.mxu0 %v2816
    %2974 = vmatmul.f32.gmra.mxu0 %v2944
    %v2975 = vpop.f32.mrf.mxu0
    %v2976 = vadd.f32 0.0, %v2975
    %2977 = vmatmul.f32.gmra.mxu0 %v2947
    %v2978 = vpop.f32.mrf.mxu0
    %v2979 = vadd.f32 0.0, %v2978
    %2980 = vmatmul.f32.gmra.mxu0 %v2950
    %v2981 = vpop.f32.mrf.mxu0
    %v2982 = vadd.f32 0.0, %v2981
    %2983 = vmatmul.f32.gmra.mxu0 %v2953
    %v2984 = vpop.f32.mrf.mxu0
    %v2985 = vadd.f32 0.0, %v2984
    %2986 = vmatmul.f32.gmra.mxu0 %v2956
    %v2987 = vpop.f32.mrf.mxu0
    %v2988 = vadd.f32 0.0, %v2987
    %2989 = vdwg.mxu0
    %v2990 = vadd.f32 %v2675, %v2976
    %v2991 = vadd.f32 %v2676, %v2979
    %v2992 = vadd.f32 %v2677, %v2982
    %v2993 = vadd.f32 %v2678, %v2985
    %v2994 = vadd.f32 %v2679, %v2988
    %v2995 = vsel %vm158, %v2990, 0.0
    %2996 = vadd.xlane.f32.xlu0 %v2995
    %v2997 = vpop.xlane.xlu0 %2996
    %v2998 = vsel %vm158, %v2991, 0.0
    %2999 = vadd.xlane.f32.xlu0 %v2998
    %v3000 = vpop.xlane.xlu0 %2999
    %v3001 = vsel %vm158, %v2992, 0.0
    %3002 = vadd.xlane.f32.xlu0 %v3001
    %v3003 = vpop.xlane.xlu0 %3002
    %v3004 = vsel %vm158, %v2993, 0.0
    %3005 = vadd.xlane.f32.xlu0 %v3004
    %v3006 = vpop.xlane.xlu0 %3005
    %v3007 = vsel %vm158, %v2994, 0.0
    %3008 = vadd.xlane.f32.xlu0 %v3007
    %v3009 = vpop.xlane.xlu0 %3008
    %v3010 = vmul.f32 %v2997, %v724
    %v3011 = vmul.f32 %v3000, %v724
    %v3012 = vmul.f32 %v3003, %v724
    %v3013 = vmul.f32 %v3006, %v724
    %v3014 = vmul.f32 %v3009, %v724
    %v3015 = vsub.f32 %v2990, %v3010
    %v3016 = vsub.f32 %v2991, %v3011
    %v3017 = vsub.f32 %v2992, %v3012
    %v3018 = vsub.f32 %v2993, %v3013
    %v3019 = vsub.f32 %v2994, %v3014
    %v3020 = vmul.f32 %v3015, %v3015
    %v3021 = vmul.f32 %v3016, %v3016
    %v3022 = vmul.f32 %v3017, %v3017
    %v3023 = vmul.f32 %v3018, %v3018
    %v3024 = vmul.f32 %v3019, %v3019
    %v3025 = vsel %vm158, %v3020, 0.0
    %3026 = vadd.xlane.f32.xlu0 %v3025
    %v3027 = vpop.xlane.xlu0 %3026
    %v3028 = vsel %vm158, %v3021, 0.0
    %3029 = vadd.xlane.f32.xlu0 %v3028
    %v3030 = vpop.xlane.xlu0 %3029
    %v3031 = vsel %vm158, %v3022, 0.0
    %3032 = vadd.xlane.f32.xlu0 %v3031
    %v3033 = vpop.xlane.xlu0 %3032
    %v3034 = vsel %vm158, %v3023, 0.0
    %3035 = vadd.xlane.f32.xlu0 %v3034
    %v3036 = vpop.xlane.xlu0 %3035
    %v3037 = vsel %vm158, %v3024, 0.0
    %3038 = vadd.xlane.f32.xlu0 %v3037
    %v3039 = vpop.xlane.xlu0 %3038
    %v3040 = vmul.f32 %v3027, 0.032258064
    %v3041 = vmul.f32 %v3030, 0.032258064
    %v3042 = vmul.f32 %v3033, 0.032258064
    %v3043 = vmul.f32 %v3036, 0.032258064
    %v3044 = vmul.f32 %v3039, 0.032258064
    %v3045 = vrsqrt.pop %v3040
    %v3046 = vmul.f32 %v3045, %v3040
    %v3047 = vmul.f32 %v3046, %v3045
    %v3048 = vmul.f32 0.5, %v3047
    %v3049 = vsub.f32 1.5, %v3048
    %v3050 = vmul.f32 %v3045, %v3049
    %v3051 = vmul.f32 %v3040, %v3050
    %vm3052 = vcmp.eq.f32.partialorder %v3040, inf
    %v3053 = vsel %vm3052, %v3040, %v3051
    %vm3054 = vcmp.eq.f32.partialorder %v3040, 0.0
    %v3055 = vand.u32 %v3040, 2147483648
    %v3056 = vsel %vm3054, %v3055, %v3053
    %v3057 = vrsqrt.pop %v3041
    %v3058 = vmul.f32 %v3057, %v3041
    %v3059 = vmul.f32 %v3058, %v3057
    %v3060 = vmul.f32 0.5, %v3059
    %v3061 = vsub.f32 1.5, %v3060
    %v3062 = vmul.f32 %v3057, %v3061
    %v3063 = vmul.f32 %v3041, %v3062
    %vm3064 = vcmp.eq.f32.partialorder %v3041, inf
    %v3065 = vsel %vm3064, %v3041, %v3063
    %vm3066 = vcmp.eq.f32.partialorder %v3041, 0.0
    %v3067 = vand.u32 %v3041, 2147483648
    %v3068 = vsel %vm3066, %v3067, %v3065
    %v3069 = vrsqrt.pop %v3042
    %v3070 = vmul.f32 %v3069, %v3042
    %v3071 = vmul.f32 %v3070, %v3069
    %v3072 = vmul.f32 0.5, %v3071
    %v3073 = vsub.f32 1.5, %v3072
    %v3074 = vmul.f32 %v3069, %v3073
    %v3075 = vmul.f32 %v3042, %v3074
    %vm3076 = vcmp.eq.f32.partialorder %v3042, inf
    %v3077 = vsel %vm3076, %v3042, %v3075
    %vm3078 = vcmp.eq.f32.partialorder %v3042, 0.0
    %v3079 = vand.u32 %v3042, 2147483648
    %v3080 = vsel %vm3078, %v3079, %v3077
    %v3081 = vrsqrt.pop %v3043
    %v3082 = vmul.f32 %v3081, %v3043
    %v3083 = vmul.f32 %v3082, %v3081
    %v3084 = vmul.f32 0.5, %v3083
    %v3085 = vsub.f32 1.5, %v3084
    %v3086 = vmul.f32 %v3081, %v3085
    %v3087 = vmul.f32 %v3043, %v3086
    %vm3088 = vcmp.eq.f32.partialorder %v3043, inf
    %v3089 = vsel %vm3088, %v3043, %v3087
    %vm3090 = vcmp.eq.f32.partialorder %v3043, 0.0
    %v3091 = vand.u32 %v3043, 2147483648
    %v3092 = vsel %vm3090, %v3091, %v3089
    %v3093 = vrsqrt.pop %v3044
    %v3094 = vmul.f32 %v3093, %v3044
    %v3095 = vmul.f32 %v3094, %v3093
    %v3096 = vmul.f32 0.5, %v3095
    %v3097 = vsub.f32 1.5, %v3096
    %v3098 = vmul.f32 %v3093, %v3097
    %v3099 = vmul.f32 %v3044, %v3098
    %vm3100 = vcmp.eq.f32.partialorder %v3044, inf
    %v3101 = vsel %vm3100, %v3044, %v3099
    %vm3102 = vcmp.eq.f32.partialorder %v3044, 0.0
    %v3103 = vand.u32 %v3044, 2147483648
    %v3104 = vsel %vm3102, %v3103, %v3101
    %v3105 = vadd.f32 %v3056, 1e-06
    %v3106 = vadd.f32 %v3068, 1e-06
    %v3107 = vadd.f32 %v3080, 1e-06
    %v3108 = vadd.f32 %v3092, 1e-06
    %v3109 = vadd.f32 %v3104, 1e-06
    %v3110 = vrcp.pop %v3105
    %v3111 = vrcp.pop %v3106
    %v3112 = vrcp.pop %v3107
    %v3113 = vrcp.pop %v3108
    %v3114 = vrcp.pop %v3109
    %v3115 = vmul.f32 %v3015, %v3110
    %v3116 = vmul.f32 %v3016, %v3111
    %v3117 = vmul.f32 %v3017, %v3112
    %v3118 = vmul.f32 %v3018, %v3113
    %v3119 = vmul.f32 %v3019, %v3114
    %v3120 = vperm.slane %v2681, 1
    %v3121 = vmul.f32 %v3120, %v3115
    %v3122 = vmul.f32 %v3120, %v3116
    %v3123 = vmul.f32 %v3120, %v3117
    %v3124 = vmul.f32 %v3120, %v3118
    %v3125 = vmul.f32 %v3120, %v3119
    %v3126 = vperm.slane %v2683, 1
    %v3127 = vadd.f32 %v3121, %v3126
    %v3128 = vadd.f32 %v3122, %v3126
    %v3129 = vadd.f32 %v3123, %v3126
    %v3130 = vadd.f32 %v3124, %v3126
    %v3131 = vadd.f32 %v3125, %v3126
    %s3132 = scalar_lea.vmem %s55, 256
    %v3133 = vld [vmem:[%s3132] sm:$0xff]
    %v3134 = vld [vmem:[%s3132 + $0x8] sm:$0xff]
    %v3135 = vld [vmem:[%s3132 + $0x10] sm:$0xff]
    %v3136 = vld [vmem:[%s3132 + $0x18] sm:$0xff]
    %v3137 = vld [vmem:[%s3132 + $0x20] sm:$0xff]
    %v3138 = vld [vmem:[%s3132 + $0x28] sm:$0xff]
    %v3139 = vld [vmem:[%s3132 + $0x30] sm:$0xff]
    %v3140 = vld [vmem:[%s3132 + $0x38] sm:$0xff]
    %v3141 = vld [vmem:[%s3132 + $0x40] sm:$0xff]
    %v3142 = vld [vmem:[%s3132 + $0x48] sm:$0xff]
    %v3143 = vld [vmem:[%s3132 + $0x50] sm:$0xff]
    %v3144 = vld [vmem:[%s3132 + $0x58] sm:$0xff]
    %v3145 = vld [vmem:[%s3132 + $0x60] sm:$0xff]
    %v3146 = vld [vmem:[%s3132 + $0x68] sm:$0xff]
    %v3147 = vld [vmem:[%s3132 + $0x70] sm:$0xff]
    %v3148 = vld [vmem:[%s3132 + $0x78] sm:$0xff]
    %s3149 = scalar_lea.vmem %s57, 8
    %v3150 = vld [vmem:[%s3149] sm:$0xf]
    %v3152 = vperm.slane %v3150, 0
    %v3153 = vperm.slane %v3150, 1
    %v3154 = vperm.slane %v3150, 2
    %v3155 = vperm.slane %v3150, 3
    %v3161 = vsel %vm158, %v3127, 0
    %v3164 = vsel %vm158, %v3128, 0
    %v3167 = vsel %vm158, %v3129, 0
    %v3170 = vsel %vm158, %v3130, 0
    %v3173 = vsel %vm158, %v3131, 0
    %3175 = vmatpush.msra.mxu0 0.0
    %3176 = vmatpush.msra.mxu0 0.0
    %3177 = vmatpush.msra.mxu0 0.0
    %3178 = vmatpush.msra.mxu0 0.0
    %3179 = vmatpush.msra.mxu0 0.0
    %3180 = vmatpush.msra.mxu0 0.0
    %3181 = vmatpush.msra.mxu0 0.0
    %3182 = vmatpush.msra.mxu0 0.0
    %3183 = vmatpush.msra.mxu0 0.0
    %3184 = vmatpush.msra.mxu0 0.0
    %3185 = vmatpush.msra.mxu0 0.0
    %3186 = vmatpush.msra.mxu0 0.0
    %3187 = vmatpush.msra.mxu0 %v3145
    %3188 = vmatpush.msra.mxu0 %v3141
    %3189 = vmatpush.msra.mxu0 %v3137
    %3190 = vmatpush.msra.mxu0 %v3133
    %3191 = vmatmul.f32.gmra.mxu0 %v3161
    %v3192 = vpop.f32.mrf.mxu0
    %v3193 = vadd.f32 %v3152, %v3192
    %3194 = vmatmul.f32.gmra.mxu0 %v3164
    %v3195 = vpop.f32.mrf.mxu0
    %v3196 = vadd.f32 %v3152, %v3195
    %3197 = vmatmul.f32.gmra.mxu0 %v3167
    %v3198 = vpop.f32.mrf.mxu0
    %v3199 = vadd.f32 %v3152, %v3198
    %3200 = vmatmul.f32.gmra.mxu0 %v3170
    %v3201 = vpop.f32.mrf.mxu0
    %v3202 = vadd.f32 %v3152, %v3201
    %3203 = vmatmul.f32.gmra.mxu0 %v3173
    %v3204 = vpop.f32.mrf.mxu0
    %v3205 = vadd.f32 %v3152, %v3204
    %3206 = vdwg.mxu0
    %3207 = vmatpush.msra.mxu0 0.0
    %3208 = vmatpush.msra.mxu0 0.0
    %3209 = vmatpush.msra.mxu0 0.0
    %3210 = vmatpush.msra.mxu0 0.0
    %3211 = vmatpush.msra.mxu0 0.0
    %3212 = vmatpush.msra.mxu0 0.0
    %3213 = vmatpush.msra.mxu0 0.0
    %3214 = vmatpush.msra.mxu0 0.0
    %3215 = vmatpush.msra.mxu0 0.0
    %3216 = vmatpush.msra.mxu0 0.0
    %3217 = vmatpush.msra.mxu0 0.0
    %3218 = vmatpush.msra.mxu0 0.0
    %3219 = vmatpush.msra.mxu0 %v3146
    %3220 = vmatpush.msra.mxu0 %v3142
    %3221 = vmatpush.msra.mxu0 %v3138
    %3222 = vmatpush.msra.mxu0 %v3134
    %3223 = vmatmul.f32.gmra.mxu0 %v3161
    %v3224 = vpop.f32.mrf.mxu0
    %v3225 = vadd.f32 %v3153, %v3224
    %3226 = vmatmul.f32.gmra.mxu0 %v3164
    %v3227 = vpop.f32.mrf.mxu0
    %v3228 = vadd.f32 %v3153, %v3227
    %3229 = vmatmul.f32.gmra.mxu0 %v3167
    %v3230 = vpop.f32.mrf.mxu0
    %v3231 = vadd.f32 %v3153, %v3230
    %3232 = vmatmul.f32.gmra.mxu0 %v3170
    %v3233 = vpop.f32.mrf.mxu0
    %v3234 = vadd.f32 %v3153, %v3233
    %3235 = vmatmul.f32.gmra.mxu0 %v3173
    %v3236 = vpop.f32.mrf.mxu0
    %v3237 = vadd.f32 %v3153, %v3236
    %3238 = vdwg.mxu0
    %3239 = vmatpush.msra.mxu0 0.0
    %3240 = vmatpush.msra.mxu0 0.0
    %3241 = vmatpush.msra.mxu0 0.0
    %3242 = vmatpush.msra.mxu0 0.0
    %3243 = vmatpush.msra.mxu0 0.0
    %3244 = vmatpush.msra.mxu0 0.0
    %3245 = vmatpush.msra.mxu0 0.0
    %3246 = vmatpush.msra.mxu0 0.0
    %3247 = vmatpush.msra.mxu0 0.0
    %3248 = vmatpush.msra.mxu0 0.0
    %3249 = vmatpush.msra.mxu0 0.0
    %3250 = vmatpush.msra.mxu0 0.0
    %3251 = vmatpush.msra.mxu0 %v3147
    %3252 = vmatpush.msra.mxu0 %v3143
    %3253 = vmatpush.msra.mxu0 %v3139
    %3254 = vmatpush.msra.mxu0 %v3135
    %3255 = vmatmul.f32.gmra.mxu0 %v3161
    %v3256 = vpop.f32.mrf.mxu0
    %v3257 = vadd.f32 %v3154, %v3256
    %3258 = vmatmul.f32.gmra.mxu0 %v3164
    %v3259 = vpop.f32.mrf.mxu0
    %v3260 = vadd.f32 %v3154, %v3259
    %3261 = vmatmul.f32.gmra.mxu0 %v3167
    %v3262 = vpop.f32.mrf.mxu0
    %v3263 = vadd.f32 %v3154, %v3262
    %3264 = vmatmul.f32.gmra.mxu0 %v3170
    %v3265 = vpop.f32.mrf.mxu0
    %v3266 = vadd.f32 %v3154, %v3265
    %3267 = vmatmul.f32.gmra.mxu0 %v3173
    %v3268 = vpop.f32.mrf.mxu0
    %v3269 = vadd.f32 %v3154, %v3268
    %3270 = vdwg.mxu0
    %3271 = vmatpush.msra.mxu0 0.0
    %3272 = vmatpush.msra.mxu0 0.0
    %3273 = vmatpush.msra.mxu0 0.0
    %3274 = vmatpush.msra.mxu0 0.0
    %3275 = vmatpush.msra.mxu0 0.0
    %3276 = vmatpush.msra.mxu0 0.0
    %3277 = vmatpush.msra.mxu0 0.0
    %3278 = vmatpush.msra.mxu0 0.0
    %3279 = vmatpush.msra.mxu0 0.0
    %3280 = vmatpush.msra.mxu0 0.0
    %3281 = vmatpush.msra.mxu0 0.0
    %3282 = vmatpush.msra.mxu0 0.0
    %3283 = vmatpush.msra.mxu0 %v3148
    %3284 = vmatpush.msra.mxu0 %v3144
    %3285 = vmatpush.msra.mxu0 %v3140
    %3286 = vmatpush.msra.mxu0 %v3136
    %3287 = vmatmul.f32.gmra.mxu0 %v3161
    %v3288 = vpop.f32.mrf.mxu0
    %v3289 = vadd.f32 %v3155, %v3288
    %3290 = vmatmul.f32.gmra.mxu0 %v3164
    %v3291 = vpop.f32.mrf.mxu0
    %v3292 = vadd.f32 %v3155, %v3291
    %3293 = vmatmul.f32.gmra.mxu0 %v3167
    %v3294 = vpop.f32.mrf.mxu0
    %v3295 = vadd.f32 %v3155, %v3294
    %3296 = vmatmul.f32.gmra.mxu0 %v3170
    %v3297 = vpop.f32.mrf.mxu0
    %v3298 = vadd.f32 %v3155, %v3297
    %3299 = vmatmul.f32.gmra.mxu0 %v3173
    %v3300 = vpop.f32.mrf.mxu0
    %v3301 = vadd.f32 %v3155, %v3300
    %3302 = vdwg.mxu0
    %v3303 = vmax.f32 %v3193, 0.0
    %v3304 = vmax.f32 %v3225, 0.0
    %v3305 = vmax.f32 %v3257, 0.0
    %v3306 = vmax.f32 %v3289, 0.0
    %v3307 = vmax.f32 %v3196, 0.0
    %v3308 = vmax.f32 %v3228, 0.0
    %v3309 = vmax.f32 %v3260, 0.0
    %v3310 = vmax.f32 %v3292, 0.0
    %v3311 = vmax.f32 %v3199, 0.0
    %v3312 = vmax.f32 %v3231, 0.0
    %v3313 = vmax.f32 %v3263, 0.0
    %v3314 = vmax.f32 %v3295, 0.0
    %v3315 = vmax.f32 %v3202, 0.0
    %v3316 = vmax.f32 %v3234, 0.0
    %v3317 = vmax.f32 %v3266, 0.0
    %v3318 = vmax.f32 %v3298, 0.0
    %v3319 = vmax.f32 %v3205, 0.0
    %v3320 = vmax.f32 %v3237, 0.0
    %v3321 = vmax.f32 %v3269, 0.0
    %v3322 = vmax.f32 %v3301, 0.0
    %s3323 = scalar_lea.vmem %s59, 1024
    %v3324 = vld [vmem:[%s3323] sm:$0xff]
    %v3325 = vld [vmem:[%s3323 + $0x8] sm:$0xff]
    %v3326 = vld [vmem:[%s3323 + $0x10] sm:$0xff]
    %v3327 = vld [vmem:[%s3323 + $0x18] sm:$0xff]
    %v3328 = vld [vmem:[%s3323 + $0x20] sm:$0xff]
    %v3329 = vld [vmem:[%s3323 + $0x28] sm:$0xff]
    %v3330 = vld [vmem:[%s3323 + $0x30] sm:$0xff]
    %v3331 = vld [vmem:[%s3323 + $0x38] sm:$0xff]
    %v3332 = vld [vmem:[%s3323 + $0x40] sm:$0xff]
    %v3333 = vld [vmem:[%s3323 + $0x48] sm:$0xff]
    %v3334 = vld [vmem:[%s3323 + $0x50] sm:$0xff]
    %v3335 = vld [vmem:[%s3323 + $0x58] sm:$0xff]
    %v3336 = vld [vmem:[%s3323 + $0x60] sm:$0xff]
    %v3337 = vld [vmem:[%s3323 + $0x68] sm:$0xff]
    %v3338 = vld [vmem:[%s3323 + $0x70] sm:$0xff]
    %v3339 = vld [vmem:[%s3323 + $0x78] sm:$0xff]
    %v3340 = vld [vmem:[%s3323 + $0x80] sm:$0xff]
    %v3341 = vld [vmem:[%s3323 + $0x88] sm:$0xff]
    %v3342 = vld [vmem:[%s3323 + $0x90] sm:$0xff]
    %v3343 = vld [vmem:[%s3323 + $0x98] sm:$0xff]
    %v3344 = vld [vmem:[%s3323 + $0xa0] sm:$0xff]
    %v3345 = vld [vmem:[%s3323 + $0xa8] sm:$0xff]
    %v3346 = vld [vmem:[%s3323 + $0xb0] sm:$0xff]
    %v3347 = vld [vmem:[%s3323 + $0xb8] sm:$0xff]
    %v3348 = vld [vmem:[%s3323 + $0xc0] sm:$0xff]
    %v3349 = vld [vmem:[%s3323 + $0xc8] sm:$0xff]
    %v3350 = vld [vmem:[%s3323 + $0xd0] sm:$0xff]
    %v3351 = vld [vmem:[%s3323 + $0xd8] sm:$0xff]
    %v3352 = vld [vmem:[%s3323 + $0xe0] sm:$0xff]
    %v3353 = vld [vmem:[%s3323 + $0xe8] sm:$0xff]
    %v3354 = vld [vmem:[%s3323 + $0xf0] sm:$0xff]
    %v3355 = vld [vmem:[%s3323 + $0xf8] sm:$0xff]
    %v3356 = vld [vmem:[%s3323 + $0x100] sm:$0xff]
    %v3357 = vld [vmem:[%s3323 + $0x108] sm:$0xff]
    %v3358 = vld [vmem:[%s3323 + $0x110] sm:$0xff]
    %v3359 = vld [vmem:[%s3323 + $0x118] sm:$0xff]
    %v3360 = vld [vmem:[%s3323 + $0x120] sm:$0xff]
    %v3361 = vld [vmem:[%s3323 + $0x128] sm:$0xff]
    %v3362 = vld [vmem:[%s3323 + $0x130] sm:$0xff]
    %v3363 = vld [vmem:[%s3323 + $0x138] sm:$0xff]
    %v3364 = vld [vmem:[%s3323 + $0x140] sm:$0xff]
    %v3365 = vld [vmem:[%s3323 + $0x148] sm:$0xff]
    %v3366 = vld [vmem:[%s3323 + $0x150] sm:$0xff]
    %v3367 = vld [vmem:[%s3323 + $0x158] sm:$0xff]
    %v3368 = vld [vmem:[%s3323 + $0x160] sm:$0xff]
    %v3369 = vld [vmem:[%s3323 + $0x168] sm:$0xff]
    %v3370 = vld [vmem:[%s3323 + $0x170] sm:$0xff]
    %v3371 = vld [vmem:[%s3323 + $0x178] sm:$0xff]
    %v3372 = vld [vmem:[%s3323 + $0x180] sm:$0xff]
    %v3373 = vld [vmem:[%s3323 + $0x188] sm:$0xff]
    %v3374 = vld [vmem:[%s3323 + $0x190] sm:$0xff]
    %v3375 = vld [vmem:[%s3323 + $0x198] sm:$0xff]
    %v3376 = vld [vmem:[%s3323 + $0x1a0] sm:$0xff]
    %v3377 = vld [vmem:[%s3323 + $0x1a8] sm:$0xff]
    %v3378 = vld [vmem:[%s3323 + $0x1b0] sm:$0xff]
    %v3379 = vld [vmem:[%s3323 + $0x1b8] sm:$0xff]
    %v3380 = vld [vmem:[%s3323 + $0x1c0] sm:$0xff]
    %v3381 = vld [vmem:[%s3323 + $0x1c8] sm:$0xff]
    %v3382 = vld [vmem:[%s3323 + $0x1d0] sm:$0xff]
    %v3383 = vld [vmem:[%s3323 + $0x1d8] sm:$0xff]
    %v3384 = vld [vmem:[%s3323 + $0x1e0] sm:$0xff]
    %v3385 = vld [vmem:[%s3323 + $0x1e8] sm:$0xff]
    %v3386 = vld [vmem:[%s3323 + $0x1f0] sm:$0xff]
    %v3387 = vld [vmem:[%s3323 + $0x1f8] sm:$0xff]
    %3388 = vmatpush.msra.mxu0 %v3339
    %3389 = vmatpush.msra.mxu0 %v3338
    %3390 = vmatpush.msra.mxu0 %v3337
    %3391 = vmatpush.msra.mxu0 %v3336
    %3392 = vmatpush.msra.mxu0 %v3335
    %3393 = vmatpush.msra.mxu0 %v3334
    %3394 = vmatpush.msra.mxu0 %v3333
    %3395 = vmatpush.msra.mxu0 %v3332
    %3396 = vmatpush.msra.mxu0 %v3331
    %3397 = vmatpush.msra.mxu0 %v3330
    %3398 = vmatpush.msra.mxu0 %v3329
    %3399 = vmatpush.msra.mxu0 %v3328
    %3400 = vmatpush.msra.mxu0 %v3327
    %3401 = vmatpush.msra.mxu0 %v3326
    %3402 = vmatpush.msra.mxu0 %v3325
    %3403 = vmatpush.msra.mxu0 %v3324
    %3404 = vmatmul.f32.gmra.mxu0 %v3303
    %v3405 = vpop.f32.mrf.mxu0
    %v3406 = vadd.f32 0.0, %v3405
    %3407 = vmatmul.f32.gmra.mxu0 %v3307
    %v3408 = vpop.f32.mrf.mxu0
    %v3409 = vadd.f32 0.0, %v3408
    %3410 = vmatmul.f32.gmra.mxu0 %v3311
    %v3411 = vpop.f32.mrf.mxu0
    %v3412 = vadd.f32 0.0, %v3411
    %3413 = vmatmul.f32.gmra.mxu0 %v3315
    %v3414 = vpop.f32.mrf.mxu0
    %v3415 = vadd.f32 0.0, %v3414
    %3416 = vmatmul.f32.gmra.mxu0 %v3319
    %v3417 = vpop.f32.mrf.mxu0
    %v3418 = vadd.f32 0.0, %v3417
    %3419 = vdwg.mxu0
    %3420 = vmatpush.msra.mxu0 %v3355
    %3421 = vmatpush.msra.mxu0 %v3354
    %3422 = vmatpush.msra.mxu0 %v3353
    %3423 = vmatpush.msra.mxu0 %v3352
    %3424 = vmatpush.msra.mxu0 %v3351
    %3425 = vmatpush.msra.mxu0 %v3350
    %3426 = vmatpush.msra.mxu0 %v3349
    %3427 = vmatpush.msra.mxu0 %v3348
    %3428 = vmatpush.msra.mxu0 %v3347
    %3429 = vmatpush.msra.mxu0 %v3346
    %3430 = vmatpush.msra.mxu0 %v3345
    %3431 = vmatpush.msra.mxu0 %v3344
    %3432 = vmatpush.msra.mxu0 %v3343
    %3433 = vmatpush.msra.mxu0 %v3342
    %3434 = vmatpush.msra.mxu0 %v3341
    %3435 = vmatpush.msra.mxu0 %v3340
    %3436 = vmatmul.f32.gmra.mxu0 %v3304
    %v3437 = vpop.f32.mrf.mxu0
    %v3438 = vadd.f32 %v3406, %v3437
    %3439 = vmatmul.f32.gmra.mxu0 %v3308
    %v3440 = vpop.f32.mrf.mxu0
    %v3441 = vadd.f32 %v3409, %v3440
    %3442 = vmatmul.f32.gmra.mxu0 %v3312
    %v3443 = vpop.f32.mrf.mxu0
    %v3444 = vadd.f32 %v3412, %v3443
    %3445 = vmatmul.f32.gmra.mxu0 %v3316
    %v3446 = vpop.f32.mrf.mxu0
    %v3447 = vadd.f32 %v3415, %v3446
    %3448 = vmatmul.f32.gmra.mxu0 %v3320
    %v3449 = vpop.f32.mrf.mxu0
    %v3450 = vadd.f32 %v3418, %v3449
    %3451 = vdwg.mxu0
    %3452 = vmatpush.msra.mxu0 %v3371
    %3453 = vmatpush.msra.mxu0 %v3370
    %3454 = vmatpush.msra.mxu0 %v3369
    %3455 = vmatpush.msra.mxu0 %v3368
    %3456 = vmatpush.msra.mxu0 %v3367
    %3457 = vmatpush.msra.mxu0 %v3366
    %3458 = vmatpush.msra.mxu0 %v3365
    %3459 = vmatpush.msra.mxu0 %v3364
    %3460 = vmatpush.msra.mxu0 %v3363
    %3461 = vmatpush.msra.mxu0 %v3362
    %3462 = vmatpush.msra.mxu0 %v3361
    %3463 = vmatpush.msra.mxu0 %v3360
    %3464 = vmatpush.msra.mxu0 %v3359
    %3465 = vmatpush.msra.mxu0 %v3358
    %3466 = vmatpush.msra.mxu0 %v3357
    %3467 = vmatpush.msra.mxu0 %v3356
    %3468 = vmatmul.f32.gmra.mxu0 %v3305
    %v3469 = vpop.f32.mrf.mxu0
    %v3470 = vadd.f32 %v3438, %v3469
    %3471 = vmatmul.f32.gmra.mxu0 %v3309
    %v3472 = vpop.f32.mrf.mxu0
    %v3473 = vadd.f32 %v3441, %v3472
    %3474 = vmatmul.f32.gmra.mxu0 %v3313
    %v3475 = vpop.f32.mrf.mxu0
    %v3476 = vadd.f32 %v3444, %v3475
    %3477 = vmatmul.f32.gmra.mxu0 %v3317
    %v3478 = vpop.f32.mrf.mxu0
    %v3479 = vadd.f32 %v3447, %v3478
    %3480 = vmatmul.f32.gmra.mxu0 %v3321
    %v3481 = vpop.f32.mrf.mxu0
    %v3482 = vadd.f32 %v3450, %v3481
    %3483 = vdwg.mxu0
    %3484 = vmatpush.msra.mxu0 %v3387
    %3485 = vmatpush.msra.mxu0 %v3386
    %3486 = vmatpush.msra.mxu0 %v3385
    %3487 = vmatpush.msra.mxu0 %v3384
    %3488 = vmatpush.msra.mxu0 %v3383
    %3489 = vmatpush.msra.mxu0 %v3382
    %3490 = vmatpush.msra.mxu0 %v3381
    %3491 = vmatpush.msra.mxu0 %v3380
    %3492 = vmatpush.msra.mxu0 %v3379
    %3493 = vmatpush.msra.mxu0 %v3378
    %3494 = vmatpush.msra.mxu0 %v3377
    %3495 = vmatpush.msra.mxu0 %v3376
    %3496 = vmatpush.msra.mxu0 %v3375
    %3497 = vmatpush.msra.mxu0 %v3374
    %3498 = vmatpush.msra.mxu0 %v3373
    %3499 = vmatpush.msra.mxu0 %v3372
    %3500 = vmatmul.f32.gmra.mxu0 %v3306
    %v3501 = vpop.f32.mrf.mxu0
    %v3502 = vadd.f32 %v3470, %v3501
    %3503 = vmatmul.f32.gmra.mxu0 %v3310
    %v3504 = vpop.f32.mrf.mxu0
    %v3505 = vadd.f32 %v3473, %v3504
    %3506 = vmatmul.f32.gmra.mxu0 %v3314
    %v3507 = vpop.f32.mrf.mxu0
    %v3508 = vadd.f32 %v3476, %v3507
    %3509 = vmatmul.f32.gmra.mxu0 %v3318
    %v3510 = vpop.f32.mrf.mxu0
    %v3511 = vadd.f32 %v3479, %v3510
    %3512 = vmatmul.f32.gmra.mxu0 %v3322
    %v3513 = vpop.f32.mrf.mxu0
    %v3514 = vadd.f32 %v3482, %v3513
    %3515 = vdwg.mxu0
    %v3516 = vadd.f32 %v2990, %v3502
    %v3517 = vadd.f32 %v2991, %v3505
    %v3518 = vadd.f32 %v2992, %v3508
    %v3519 = vadd.f32 %v2993, %v3511
    %v3520 = vadd.f32 %v2994, %v3514
    %s3521 = scalar_lea.vmem %s61, 2
    %v3522 = vld [vmem:[%s3521] sm:$0x1]
    %v3524 = vperm.slane %v3522, 0
    %v3526 = vadd.f32 %v3516, %v3524
    %v3527 = vadd.f32 %v3517, %v3524
    %v3528 = vadd.f32 %v3518, %v3524
    %v3529 = vadd.f32 %v3519, %v3524
    %v3530 = vadd.f32 %v3520, %v3524
    %v3531 = vmax.f32 %v3526, 0.0
    %v3532 = vmax.f32 %v3527, 0.0
    %v3533 = vmax.f32 %v3528, 0.0
    %v3534 = vmax.f32 %v3529, 0.0
    %v3535 = vmax.f32 %v3530, 0.0
    %v3536 = vld [vmem:[%s63] sm:$0xff]
    %v3537 = vld [vmem:[%s63 + $0x8] sm:$0xff]
    %v3538 = vld [vmem:[%s63 + $0x10] sm:$0xff]
    %v3539 = vld [vmem:[%s63 + $0x18] sm:$0xff]
    %v3540 = vld [vmem:[%s65] sm:$0x1]
    %v3542 = vperm.slane %v3540, 0
    %v3545 = vsel %vm158, %v3531, 0
    %v3548 = vsel %vm158, %v3532, 0
    %v3551 = vsel %vm158, %v3533, 0
    %v3554 = vsel %vm158, %v3534, 0
    %v3557 = vsel %vm158, %v3535, 0
    %3559 = vmatpush.msra.mxu0 0.0
    %3560 = vmatpush.msra.mxu0 0.0
    %3561 = vmatpush.msra.mxu0 0.0
    %3562 = vmatpush.msra.mxu0 0.0
    %3563 = vmatpush.msra.mxu0 0.0
    %3564 = vmatpush.msra.mxu0 0.0
    %3565 = vmatpush.msra.mxu0 0.0
    %3566 = vmatpush.msra.mxu0 0.0
    %3567 = vmatpush.msra.mxu0 0.0
    %3568 = vmatpush.msra.mxu0 0.0
    %3569 = vmatpush.msra.mxu0 0.0
    %3570 = vmatpush.msra.mxu0 0.0
    %3571 = vmatpush.msra.mxu0 %v3539
    %3572 = vmatpush.msra.mxu0 %v3538
    %3573 = vmatpush.msra.mxu0 %v3537
    %3574 = vmatpush.msra.mxu0 %v3536
    %3575 = vmatmul.f32.gmra.mxu0 %v3545
    %v3576 = vpop.f32.mrf.mxu0
    %v3577 = vadd.f32 %v3542, %v3576
    %3578 = vmatmul.f32.gmra.mxu0 %v3548
    %v3579 = vpop.f32.mrf.mxu0
    %v3580 = vadd.f32 %v3542, %v3579
    %3581 = vmatmul.f32.gmra.mxu0 %v3551
    %v3582 = vpop.f32.mrf.mxu0
    %v3583 = vadd.f32 %v3542, %v3582
    %3584 = vmatmul.f32.gmra.mxu0 %v3554
    %v3585 = vpop.f32.mrf.mxu0
    %v3586 = vadd.f32 %v3542, %v3585
    %3587 = vmatmul.f32.gmra.mxu0 %v3557
    %v3588 = vpop.f32.mrf.mxu0
    %v3589 = vadd.f32 %v3542, %v3588
    %3590 = vdwg.mxu0
    %v3591 = vld [vmem:[%s17] sm:$0xff]
    %v3592 = vld [vmem:[%s17 + $0x8] sm:$0xff]
    %v3593 = vld [vmem:[%s17 + $0x10] sm:$0xff]
    %v3594 = vld [vmem:[%s17 + $0x18] sm:$0xff]
    %v3595 = vld [vmem:[%s17 + $0x20] sm:$0xff]
    %v3596 = vld [vmem:[%s67] sm:$0x1f]
    %v3598 = vsel %vm307, %v3591, 0
    %v3601 = vsel %vm307, %v3592, 0
    %v3604 = vsel %vm307, %v3593, 0
    %v3607 = vsel %vm307, %v3594, 0
    %v3610 = vsel %vm307, %v3595, 0
    %v3613 = vsel %vm311, %v3596, 0
    %3615 = vmatpush.msra.mxu0 0.0
    %3616 = vmatpush.msra.mxu0 0.0
    %3617 = vmatpush.msra.mxu0 0.0
    %3618 = vmatpush.msra.mxu0 0.0
    %3619 = vmatpush.msra.mxu0 0.0
    %3620 = vmatpush.msra.mxu0 0.0
    %3621 = vmatpush.msra.mxu0 0.0
    %3622 = vmatpush.msra.mxu0 0.0
    %3623 = vmatpush.msra.mxu0 0.0
    %3624 = vmatpush.msra.mxu0 0.0
    %3625 = vmatpush.msra.mxu0 0.0
    %3626 = vmatpush.msra.mxu0 0.0
    %3627 = vmatpush.msra.mxu0 0.0
    %3628 = vmatpush.msra.mxu0 0.0
    %3629 = vmatpush.msra.mxu0 0.0
    %3630 = vmatpush.msra.mxu0 %v3613
    %3631 = vmatmul.f32.gmra.mxu0 %v3598
    %v3632 = vpop.f32.mrf.mxu0
    %v3633 = vadd.f32 0.0, %v3632
    %3634 = vmatmul.f32.gmra.mxu0 %v3601
    %v3635 = vpop.f32.mrf.mxu0
    %v3636 = vadd.f32 0.0, %v3635
    %3637 = vmatmul.f32.gmra.mxu0 %v3604
    %v3638 = vpop.f32.mrf.mxu0
    %v3639 = vadd.f32 0.0, %v3638
    %3640 = vmatmul.f32.gmra.mxu0 %v3607
    %v3641 = vpop.f32.mrf.mxu0
    %v3642 = vadd.f32 0.0, %v3641
    %3643 = vmatmul.f32.gmra.mxu0 %v3610
    %v3644 = vpop.f32.mrf.mxu0
    %v3645 = vadd.f32 0.0, %v3644
    %3646 = vdwg.mxu0
    %v3647 = vld [vmem:[%s19] sm:$0xff]
    %3649 = vset.pattern.permute.xlu0 0
    %3650 = vperm.xlu0 %3649, %v3633
    %v3651 = vpop.permute.xlu0 %3650
    %3654 = vset.pattern.permute.xlu0 0
    %3655 = vperm.xlu0 %3654, %v3636
    %v3656 = vpop.permute.xlu0 %3655
    %3659 = vset.pattern.permute.xlu0 0
    %3660 = vperm.xlu0 %3659, %v3639
    %v3661 = vpop.permute.xlu0 %3660
    %3664 = vset.pattern.permute.xlu0 0
    %3665 = vperm.xlu0 %3664, %v3642
    %v3666 = vpop.permute.xlu0 %3665
    %3669 = vset.pattern.permute.xlu0 0
    %3670 = vperm.xlu0 %3669, %v3645
    %v3671 = vpop.permute.xlu0 %3670
    %v3673 = vmul.f32 %v3577, %v3651
    %v3674 = vmul.f32 %v3580, %v3656
    %v3675 = vmul.f32 %v3583, %v3661
    %v3676 = vmul.f32 %v3586, %v3666
    %v3677 = vmul.f32 %v3589, %v3671
    %v3678 = vld [vmem:[#allocation2] sm:$0x1]
    %v3680 = vperm.slane %v3678, 0
    %3681 = vset.pattern.permute.xlu0 0
    %3682 = vperm.xlu0 %3681, %v3680
    %v3683 = vpop.permute.xlu0 %3682
    %v3686 = vsel %vm1184, %v3647, 0
    %3688 = vmatpush.msra.mxu0 0.0
    %3689 = vmatpush.msra.mxu0 0.0
    %3690 = vmatpush.msra.mxu0 0.0
    %3691 = vmatpush.msra.mxu0 0.0
    %3692 = vmatpush.msra.mxu0 0.0
    %3693 = vmatpush.msra.mxu0 0.0
    %3694 = vmatpush.msra.mxu0 0.0
    %3695 = vmatpush.msra.mxu0 0.0
    %3696 = vmatpush.msra.mxu0 0.0
    %3697 = vmatpush.msra.mxu0 0.0
    %3698 = vmatpush.msra.mxu0 0.0
    %3699 = vmatpush.msra.mxu0 %v3677
    %3700 = vmatpush.msra.mxu0 %v3676
    %3701 = vmatpush.msra.mxu0 %v3675
    %3702 = vmatpush.msra.mxu0 %v3674
    %3703 = vmatpush.msra.mxu0 %v3673
    %3704 = vmatmul.f32.gmra.mxu0 %v3686
    %v3705 = vpop.f32.mrf.mxu0
    %v3706 = vadd.f32 %v3683, %v3705
    %3707 = vdwg.mxu0
    %3708 = vst.msk [vmem:[#allocation3] sm:$0xff] %vm433, %v3706
    // Predicated region
    $region142: #{tpu_custom_call.1} parent=1 // pred_check
      _
    $region143: #{tpu_custom_call.1} parent=1 // pred_check_branch
      %3710 = sbr.rel (0) target = $region145
    $region144: #{tpu_custom_call.1} parent=1 // pred_region
      %3712 = vsyncadd [#allocation4], 0
      %s3714 = sshll.u32 [#allocation3], 4
      %s3715 = int_to_ptr.vmem [resolvable:$true] %s3714
      %s3716 = sshll.u32 %s71, 4
      %s3717 = int_to_ptr.hbm [resolvable:$true] %s3716
      %3719 = dma.vmem_to_hbm [thread:$0]  %s3715, 128, %s3717, [#allocation4]
    $region145: #{tpu_custom_call.1} parent=1 // pred_fallthru
      _
    // Predicated region
    $region146: #{tpu_custom_call.1} parent=1 // pred_check
      _
    $region147: #{tpu_custom_call.1} parent=1 // pred_check_branch
      %3721 = sbr.rel (0) target = $region149
    $region148: #{tpu_custom_call.1} parent=1 // pred_region
      %3723 = dma.done [#allocation4], 128
    $region149: #{tpu_custom_call.1} parent=1 // pred_fallthru
      _
    %3724 = vsyncpa [#allocation4], 1

</llo_original>
